<compile_context>
chip_gen: v7x
topology: tpu7x:2x2x1
jax: 0.10.0
libtpu: 0.0.40
codegen_flags: <defaults>
</compile_context>

<pallas_src>
import functools

import jax
import jax.numpy as jnp
import numpy as np
from jax import lax
from jax.experimental import pallas as pl
from jax.experimental.pallas import tpu as pltpu

LEAKY_SLOPE = 0.02   # matches nn.LeakyReLU(negative_slope=0.02) in the spec
BN_EPS = 1e-5
KS = 4               # conv kernel size everywhere in this module

# (stride, padding, has_batchnorm) for conv1..conv4
LAYERS = ((2, 3, False), (2, 1, True), (2, 1, True), (1, 0, False))


# --------------------- host-side operand packing (init-time) -----------------
def _out_size(size, stride, pad):
    return (size + 2 * pad - KS) // stride + 1


def _m_stack(w4, w_in, w_out, stride, pad):
    """Fold W-direction tap selection / stride / zero-pad with the conv weights.

    Returns (KS, W_in*Cin, W_out*Cout):
      M[kh, w*Cin+ci, wo*Cout+co] = W4[co, ci, kh, w - stride*wo + pad] if valid.
    """
    w4 = np.asarray(w4, np.float32)
    cout, cin = w4.shape[0], w4.shape[1]
    m = np.zeros((KS, w_in * cin, w_out * cout), np.float32)
    for kh in range(KS):
        for w in range(w_in):
            for wo in range(w_out):
                kw = w - stride * wo + pad
                if 0 <= kw < KS:
                    m[kh, w * cin:(w + 1) * cin, wo * cout:(wo + 1) * cout] = (
                        w4[:, :, kh, kw].T)
    return m


def _s_stack(h_in, h_out, stride, pad):
    """Batch-free 0/1 row-selection matrix for all KS taps: (KS*h_out, h_in).

    Row kh*h_out + ho selects input row stride*ho + kh - pad (zero row if the
    tap falls in the H zero-padding), independent of the batch size.
    """
    s = np.zeros((KS * h_out, h_in), np.float32)
    for kh in range(KS):
        for ho in range(h_out):
            h = stride * ho + kh - pad
            if 0 <= h < h_in:
                s[kh * h_out + ho, h] = 1.0
    return s


def _channel_pool(w_out, c):
    """P[(w,c),(w',c')] = [c == c'] : folds per-column sums into per-channel
    means that come out already replicated on every column (stat fold + lane
    broadcast in a single operand -> no separate broadcast matmul/tile)."""
    return np.tile(np.eye(c, dtype=np.float32), (w_out, w_out))


def _row(vec, w_out):
    """Per-channel vector replicated over the W groups: (1, w_out*C) f32."""
    v = np.asarray(vec, np.float32).reshape(1, -1)
    return np.tile(v, (1, w_out))


def pack_discriminator(params, h, w, c_in):
    """Precompute all GEMM operands (bf16 matmul operands, f32 epilogue rows)."""
    names = ("conv1", "conv2", "conv3", "conv4")
    bf = jnp.bfloat16

    geom = []
    hc, wc, cc = h, w, c_in
    for name, (stride, pad, _) in zip(names, LAYERS):
        cout = int(np.asarray(params[name]["w"]).shape[0])
        ho, wo = _out_size(hc, stride, pad), _out_size(wc, stride, pad)
        geom.append((hc, wc, cc, ho, wo, cout, stride, pad))
        hc, wc, cc = ho, wo, cout

    ops = []
    # conv1: taps are pre-stacked into the LHS on the XLA side, so the weights
    # collapse to a single (KS*W_in*Cin, W_out*Cout) matrix -> one GEMM.
    hi, wi, ci, ho, wo, co, s, p = geom[0]
    m1 = _m_stack(params["conv1"]["w"], wi, wo, s, p).reshape(KS * wi * ci, wo * co)
    ops += [jnp.asarray(m1, bf), jnp.asarray(_row(params["conv1"]["b"], wo))]

    # conv2 / conv3: batch-free S + per-tap folded weights + BN operands.
    for li in (1, 2):
        hi, wi, ci, ho, wo, co, s, p = geom[li]
        pr = params[names[li]]
        ops += [jnp.asarray(_s_stack(hi, ho, s, p), bf),
                jnp.asarray(_m_stack(pr["w"], wi, wo, s, p), bf),
                jnp.asarray(_row(pr["b"], wo)),
                jnp.asarray(_channel_pool(wo, co)),
                jnp.asarray(_row(pr["gamma"], wo)),
                jnp.asarray(_row(pr["beta"], wo))]

    # conv4 (stride 1, pad 0): taps are static row slices in-kernel.
    hi, wi, ci, ho, wo, co, s, p = geom[3]
    ops += [jnp.asarray(_m_stack(params["conv4"]["w"], wi, wo, s, p), bf),
            jnp.asarray(_row(params["conv4"]["b"], wo))]
    return tuple(ops)


# ------------------------------ fused Pallas kernel ---------------------------
def _disc_kernel(xl_ref,
                 m1_ref, b1_ref,
                 s2_ref, m2_ref, b2_ref, p2_ref, g2_ref, be2_ref,
                 s3_ref, m3_ref, b3_ref, p3_ref, g3_ref, be3_ref,
                 m4_ref, b4_ref,
                 o_ref, *, n, h2, h3, inv_counts):
    f32, bf16 = jnp.float32, jnp.bfloat16

    def leaky(v):
        return jnp.where(v >= 0, v, LEAKY_SLOPE * v)

    def conv_taps(y, s_ref, m_ref, b_ref, h_out):
        # Batch-free row selection for all KS taps in one small MXU dot
        # (stride + H zero-padding are baked into s_ref), then accumulate the
        # KS per-tap weight GEMMs.  bf16 operands, f32 accumulation.
        a_all = jnp.dot(s_ref[...], y.astype(bf16),
                        preferred_element_type=f32)        # (KS*h_out, Win*Cin)
        acc = None
        for kh in range(KS):
            a = a_all[kh * h_out:(kh + 1) * h_out, :].astype(bf16)
            t = jnp.dot(a, m_ref[kh], preferred_element_type=f32)
            acc = t if acc is None else acc + t
        return acc + b_ref[...]

    def bn_scale_shift(sum_row, sq_row, p_ref, g_row, be_row, inv_count):
        # Training-mode BN (biased variance), all statistics in f32.  The 0/1
        # pooling matrix P returns per-channel mean / E[y^2] already replicated
        # per column, so no broadcast matmul / tile is needed afterwards.
        mean_c = jnp.dot(sum_row, p_ref[...], preferred_element_type=f32) * inv_count
        ex2_c = jnp.dot(sq_row, p_ref[...], preferred_element_type=f32) * inv_count
        var_c = ex2_c - mean_c * mean_c
        scale_c = g_row[...] * lax.rsqrt(var_c + BN_EPS)    # (1, W*C)
        shift_c = be_row[...] - mean_c * scale_c            # (1, W*C)
        return scale_c, shift_c

    # ---- Stage A: conv1 (single fused-tap GEMM) + LeakyReLU + conv2; BN2 stats.
    z2, sum2, sq2 = [], None, None
    for i in range(n):
        z1 = jnp.dot(xl_ref[i], m1_ref[...],
                     preferred_element_type=f32) + b1_ref[...]
        y1 = leaky(z1)                                      # (H1, W1*C1) f32
        z = conv_taps(y1, s2_ref, m2_ref, b2_ref, h2)       # (H2, W2*C2) f32
        z2.append(z)
        s_r = jnp.sum(z, axis=0, keepdims=True)
        q_r = jnp.sum(z * z, axis=0, keepdims=True)
        sum2 = s_r if sum2 is None else sum2 + s_r
        sq2 = q_r if sq2 is None else sq2 + q_r
    sc2, sh2 = bn_scale_shift(sum2, sq2, p2_ref, g2_ref, be2_ref, inv_counts[0])

    # ---- Stage B: BN2 + LeakyReLU + conv3; BN3 stats.
    z3, sum3, sq3 = [], None, None
    for i in range(n):
        y2 = leaky(z2[i] * sc2 + sh2)
        z = conv_taps(y2, s3_ref, m3_ref, b3_ref, h3)       # (H3, W3*C3) f32
        z3.append(z)
        s_r = jnp.sum(z, axis=0, keepdims=True)
        q_r = jnp.sum(z * z, axis=0, keepdims=True)
        sum3 = s_r if sum3 is None else sum3 + s_r
        sq3 = q_r if sq3 is None else sq3 + q_r
    sc3, sh3 = bn_scale_shift(sum3, sq3, p3_ref, g3_ref, be3_ref, inv_counts[1])

    # ---- Stage C: BN3 + LeakyReLU + conv4 (4x4, stride 1: static row slices)
    #      + numerically stable sigmoid on the EUP.
    for i in range(n):
        y3 = leaky(z3[i] * sc3 + sh3).astype(bf16)          # (4, 4*C3)
        acc = None
        for kh in range(KS):
            t = jnp.dot(y3[kh:kh + 1, :], m4_ref[kh], preferred_element_type=f32)
            acc = t if acc is None else acc + t
        logit = acc + b4_ref[...]                           # (1, 1)
        o_ref[pl.ds(i, 1), :] = 0.5 * (jnp.tanh(0.5 * logit) + 1.0)


# ------------------------------ forward pass ----------------------------------
@jax.jit
def discriminator_forward(x, packed_ops):
    n, c, h, w = x.shape
    # Static layer geometry.
    hs = [h]
    for stride, pad, _ in LAYERS:
        hs.append(_out_size(hs[-1], stride, pad))
    h1, h2, h3 = hs[1], hs[2], hs[3]
    s1, p1 = LAYERS[0][0], LAYERS[0][1]
    w2 = _out_size(_out_size(w, s1, p1), LAYERS[1][0], LAYERS[1][1])
    w3 = _out_size(w2, LAYERS[2][0], LAYERS[2][1])

    # NCHW -> lane-dense (N, H, W*C), zero-pad H, pre-stack the KS conv1 taps
    # along the contraction axis: conv1 becomes a single in-kernel GEMM with no
    # row-selection operand at all.  (Negligible extra HBM traffic at this
    # size; at scale fold this prep into the kernel from a pl.ANY HBM ref.)
    xh = jnp.transpose(x, (0, 2, 3, 1)).reshape(n, h, w * c)
    back = max(s1 * (h1 - 1) + KS - h - p1, 0)
    xp = jnp.pad(xh, ((0, 0), (p1, back), (0, 0)))
    lhs1 = jnp.concatenate(
        [xp[:, kh:kh + s1 * (h1 - 1) + 1:s1, :] for kh in range(KS)],
        axis=-1).astype(jnp.bfloat16)                       # (N, H1, KS*W*C)

    kernel = functools.partial(
        _disc_kernel, n=n, h2=h2, h3=h3,
        inv_counts=(1.0 / float(n * h2 * w2), 1.0 / float(n * h3 * w3)))
    out = pl.pallas_call(
        kernel,
        out_shape=jax.ShapeDtypeStruct((n, 1), jnp.float32),
        in_specs=[pl.BlockSpec(memory_space=pltpu.MemorySpace.VMEM)]
        * (1 + len(packed_ops)),
        out_specs=pl.BlockSpec(memory_space=pltpu.MemorySpace.VMEM),
        compiler_params=pltpu.CompilerParams(
            vmem_limit_bytes=32 * 1024 * 1024),   # explicit budget (v7x: 64 MiB phys.)
    )(lhs1, *packed_ops)
    return out.reshape(n, 1, 1, 1)


# --------------------------- deterministic params -----------------------------
def init_params(key, n_channels, nf):
    ks = jax.random.split(key, 8)

    def conv_w(k, cout, cin):
        return 0.05 * jax.random.normal(k, (cout, cin, KS, KS), jnp.float32)

    def bias(k, cout):
        return 0.05 * jax.random.normal(k, (cout,), jnp.float32)

    return {
        "conv1": {"w": conv_w(ks[0], nf, n_channels), "b": bias(ks[1], nf)},
        "conv2": {"w": conv_w(ks[2], 2 * nf, nf), "b": bias(ks[3], 2 * nf),
                  "gamma": jnp.ones((2 * nf,), jnp.float32),
                  "beta": jnp.zeros((2 * nf,), jnp.float32)},
        "conv3": {"w": conv_w(ks[4], 4 * nf, 2 * nf), "b": bias(ks[5], 4 * nf),
                  "gamma": jnp.ones((4 * nf,), jnp.float32),
                  "beta": jnp.zeros((4 * nf,), jnp.float32)},
        "conv4": {"w": conv_w(ks[6], 1, 4 * nf), "b": bias(ks[7], 1)},
    }


# --------------------------- pure-JAX reference -------------------------------
def _ref_forward(x, params):
    def conv(x, w4, b, stride, pad):
        y = lax.conv_general_dilated(
            x, w4, window_strides=(stride, stride),
            padding=((pad, pad), (pad, pad)),
            dimension_numbers=("NCHW", "OIHW", "NCHW"))
        return y + b.reshape(1, -1, 1, 1)

    def bn(y, g, be):
        mean = jnp.mean(y, axis=(0, 2, 3), keepdims=True)
        var = jnp.mean((y - mean) ** 2, axis=(0, 2, 3), keepdims=True)
        return ((y - mean) * lax.rsqrt(var + BN_EPS)
                * g.reshape(1, -1, 1, 1) + be.reshape(1, -1, 1, 1))

    lrelu = lambda y: jnp.where(y >= 0, y, LEAKY_SLOPE * y)
    p = params["conv1"]; y = lrelu(conv(x, p["w"], p["b"], 2, 3))
    p = params["conv2"]; y = lrelu(bn(conv(y, p["w"], p["b"], 2, 1), p["gamma"], p["beta"]))
    p = params["conv3"]; y = lrelu(bn(conv(y, p["w"], p["b"], 2, 1), p["gamma"], p["beta"]))
    p = params["conv4"]; return jax.nn.sigmoid(conv(y, p["w"], p["b"], 1, 0))


# ----------------------------------- main --------------------------------------
if __name__ == "__main__":
    # TODO(synk): BatchNorm running_mean/running_var buffer updates (a training
    # side effect) are not modeled; normalization uses batch statistics exactly
    # like PyTorch training-mode forward.
    n_channels, nf = 3, 8
    key = jax.random.PRNGKey(0)
    k_x, k_p = jax.random.split(key)
    # 32x32 input -> 18 -> 9 -> 4 -> 1 spatial, matching the conv stack.
    x = jax.random.normal(k_x, (2, n_channels, 32, 32), jnp.float32)
    params = init_params(k_p, n_channels, nf)
    packed_ops = pack_discriminator(params, h=32, w=32, c_in=n_channels)

    out = jax.block_until_ready(discriminator_forward(x, packed_ops))
    ref = jax.block_until_ready(_ref_forward(x, params))

    assert out.shape == (2, 1, 1, 1), out.shape
    np.testing.assert_allclose(np.asarray(out), np.asarray(ref),
                               rtol=2e-2, atol=2e-2)
    print("KERNEL_OK")
</pallas_src>

<mosaic_0001>
module attributes {stable_mosaic.version = 11 : i64} {
  func.func @_disc_kernel(%arg0: memref<2x18x384xbf16, #tpu.memory_space<vmem>>, %arg1: memref<384x144xbf16, #tpu.memory_space<vmem>>, %arg2: memref<1x144xf32, #tpu.memory_space<vmem>>, %arg3: memref<36x18xbf16, #tpu.memory_space<vmem>>, %arg4: memref<4x144x144xbf16, #tpu.memory_space<vmem>>, %arg5: memref<1x144xf32, #tpu.memory_space<vmem>>, %arg6: memref<144x144xf32, #tpu.memory_space<vmem>>, %arg7: memref<1x144xf32, #tpu.memory_space<vmem>>, %arg8: memref<1x144xf32, #tpu.memory_space<vmem>>, %arg9: memref<16x9xbf16, #tpu.memory_space<vmem>>, %arg10: memref<4x144x128xbf16, #tpu.memory_space<vmem>>, %arg11: memref<1x128xf32, #tpu.memory_space<vmem>>, %arg12: memref<128x128xf32, #tpu.memory_space<vmem>>, %arg13: memref<1x128xf32, #tpu.memory_space<vmem>>, %arg14: memref<1x128xf32, #tpu.memory_space<vmem>>, %arg15: memref<4x128x1xbf16, #tpu.memory_space<vmem>>, %arg16: memref<1x1xf32, #tpu.memory_space<vmem>>, %arg17: memref<2x1xf32, #tpu.memory_space<vmem>>) attributes {dimension_semantics = [], scalar_prefetch = 0 : i64, scratch_operands = 0 : i64, tpu.core_type = #tpu.core_type<tc>} {
    %c0 = arith.constant 0 : index
    %c0_0 = arith.constant 0 : index
    %c0_1 = arith.constant 0 : index
    %0 = vector.load %arg0[%c0, %c0_0, %c0_1] : memref<2x18x384xbf16, #tpu.memory_space<vmem>>, vector<1x18x384xbf16>
    %1 = vector.shape_cast %0 : vector<1x18x384xbf16> to vector<18x384xbf16>
    %c0_2 = arith.constant 0 : index
    %c0_3 = arith.constant 0 : index
    %2 = vector.load %arg1[%c0_2, %c0_3] : memref<384x144xbf16, #tpu.memory_space<vmem>>, vector<384x144xbf16>
    %cst = arith.constant dense<0.000000e+00> : vector<18x144xf32>
    %3 = tpu.matmul %1, %2, %cst {dimension_numbers = #tpu.dot_dimension_numbers<[1], [0], [0], [1], [0, 0, 1, 1], [], []>} : vector<18x384xbf16>, vector<384x144xbf16>, vector<18x144xf32> -> vector<18x144xf32>
    %c0_4 = arith.constant 0 : index
    %c0_5 = arith.constant 0 : index
    %4 = vector.load %arg2[%c0_4, %c0_5] : memref<1x144xf32, #tpu.memory_space<vmem>>, vector<1x144xf32>
    %5 = vector.broadcast %4 : vector<1x144xf32> to vector<18x144xf32>
    %6 = arith.addf %3, %5 : vector<18x144xf32>
    %cst_6 = arith.constant 0.000000e+00 : f32
    %7 = vector.broadcast %cst_6 : f32 to vector<18x144xf32>
    %8 = arith.cmpf oge, %6, %7 : vector<18x144xf32>
    %cst_7 = arith.constant 2.000000e-02 : f32
    %9 = vector.broadcast %cst_7 : f32 to vector<18x144xf32>
    %10 = arith.mulf %9, %6 : vector<18x144xf32>
    %11 = arith.select %8, %6, %10 : vector<18x144xi1>, vector<18x144xf32>
    %c0_8 = arith.constant 0 : index
    %c0_9 = arith.constant 0 : index
    %12 = vector.load %arg3[%c0_8, %c0_9] : memref<36x18xbf16, #tpu.memory_space<vmem>>, vector<36x18xbf16>
    %13 = arith.truncf %11 : vector<18x144xf32> to vector<18x144xbf16>
    %cst_10 = arith.constant dense<0.000000e+00> : vector<36x144xf32>
    %14 = tpu.matmul %12, %13, %cst_10 {dimension_numbers = #tpu.dot_dimension_numbers<[1], [0], [0], [1], [0, 0, 1, 1], [], []>} : vector<36x18xbf16>, vector<18x144xbf16>, vector<36x144xf32> -> vector<36x144xf32>
    %15 = vector.extract_strided_slice %14 {offsets = [0, 0], sizes = [9, 144], strides = [1, 1]} : vector<36x144xf32> to vector<9x144xf32>
    %16 = arith.truncf %15 : vector<9x144xf32> to vector<9x144xbf16>
    %c0_11 = arith.constant 0 : index
    %c0_12 = arith.constant 0 : index
    %c0_13 = arith.constant 0 : index
    %17 = vector.load %arg4[%c0_11, %c0_12, %c0_13] : memref<4x144x144xbf16, #tpu.memory_space<vmem>>, vector<1x144x144xbf16>
    %18 = vector.shape_cast %17 : vector<1x144x144xbf16> to vector<144x144xbf16>
    %cst_14 = arith.constant dense<0.000000e+00> : vector<9x144xf32>
    %19 = tpu.matmul %16, %18, %cst_14 {dimension_numbers = #tpu.dot_dimension_numbers<[1], [0], [0], [1], [0, 0, 1, 1], [], []>} : vector<9x144xbf16>, vector<144x144xbf16>, vector<9x144xf32> -> vector<9x144xf32>
    %20 = vector.extract_strided_slice %14 {offsets = [9, 0], sizes = [9, 144], strides = [1, 1]} : vector<36x144xf32> to vector<9x144xf32>
    %21 = arith.truncf %20 : vector<9x144xf32> to vector<9x144xbf16>
    %c1 = arith.constant 1 : index
    %c0_15 = arith.constant 0 : index
    %c0_16 = arith.constant 0 : index
    %22 = vector.load %arg4[%c1, %c0_15, %c0_16] : memref<4x144x144xbf16, #tpu.memory_space<vmem>>, vector<1x144x144xbf16>
    %23 = vector.shape_cast %22 : vector<1x144x144xbf16> to vector<144x144xbf16>
    %cst_17 = arith.constant dense<0.000000e+00> : vector<9x144xf32>
    %24 = tpu.matmul %21, %23, %cst_17 {dimension_numbers = #tpu.dot_dimension_numbers<[1], [0], [0], [1], [0, 0, 1, 1], [], []>} : vector<9x144xbf16>, vector<144x144xbf16>, vector<9x144xf32> -> vector<9x144xf32>
    %25 = arith.addf %19, %24 : vector<9x144xf32>
    %26 = vector.extract_strided_slice %14 {offsets = [18, 0], sizes = [9, 144], strides = [1, 1]} : vector<36x144xf32> to vector<9x144xf32>
    %27 = arith.truncf %26 : vector<9x144xf32> to vector<9x144xbf16>
    %c2 = arith.constant 2 : index
    %c0_18 = arith.constant 0 : index
    %c0_19 = arith.constant 0 : index
    %28 = vector.load %arg4[%c2, %c0_18, %c0_19] : memref<4x144x144xbf16, #tpu.memory_space<vmem>>, vector<1x144x144xbf16>
    %29 = vector.shape_cast %28 : vector<1x144x144xbf16> to vector<144x144xbf16>
    %cst_20 = arith.constant dense<0.000000e+00> : vector<9x144xf32>
    %30 = tpu.matmul %27, %29, %cst_20 {dimension_numbers = #tpu.dot_dimension_numbers<[1], [0], [0], [1], [0, 0, 1, 1], [], []>} : vector<9x144xbf16>, vector<144x144xbf16>, vector<9x144xf32> -> vector<9x144xf32>
    %31 = arith.addf %25, %30 : vector<9x144xf32>
    %32 = vector.extract_strided_slice %14 {offsets = [27, 0], sizes = [9, 144], strides = [1, 1]} : vector<36x144xf32> to vector<9x144xf32>
    %33 = arith.truncf %32 : vector<9x144xf32> to vector<9x144xbf16>
    %c3 = arith.constant 3 : index
    %c0_21 = arith.constant 0 : index
    %c0_22 = arith.constant 0 : index
    %34 = vector.load %arg4[%c3, %c0_21, %c0_22] : memref<4x144x144xbf16, #tpu.memory_space<vmem>>, vector<1x144x144xbf16>
    %35 = vector.shape_cast %34 : vector<1x144x144xbf16> to vector<144x144xbf16>
    %cst_23 = arith.constant dense<0.000000e+00> : vector<9x144xf32>
    %36 = tpu.matmul %33, %35, %cst_23 {dimension_numbers = #tpu.dot_dimension_numbers<[1], [0], [0], [1], [0, 0, 1, 1], [], []>} : vector<9x144xbf16>, vector<144x144xbf16>, vector<9x144xf32> -> vector<9x144xf32>
    %37 = arith.addf %31, %36 : vector<9x144xf32>
    %c0_24 = arith.constant 0 : index
    %c0_25 = arith.constant 0 : index
    %38 = vector.load %arg5[%c0_24, %c0_25] : memref<1x144xf32, #tpu.memory_space<vmem>>, vector<1x144xf32>
    %39 = vector.broadcast %38 : vector<1x144xf32> to vector<9x144xf32>
    %40 = arith.addf %37, %39 : vector<9x144xf32>
    %cst_26 = arith.constant dense<0.000000e+00> : vector<144xf32>
    %41 = vector.multi_reduction <add>, %40, %cst_26 [0] : vector<9x144xf32> to vector<144xf32>
    %42 = vector.shape_cast %41 : vector<144xf32> to vector<1x144xf32>
    %43 = arith.mulf %40, %40 : vector<9x144xf32>
    %cst_27 = arith.constant dense<0.000000e+00> : vector<144xf32>
    %44 = vector.multi_reduction <add>, %43, %cst_27 [0] : vector<9x144xf32> to vector<144xf32>
    %45 = vector.shape_cast %44 : vector<144xf32> to vector<1x144xf32>
    %c1_28 = arith.constant 1 : index
    %c0_29 = arith.constant 0 : index
    %c0_30 = arith.constant 0 : index
    %46 = vector.load %arg0[%c1_28, %c0_29, %c0_30] : memref<2x18x384xbf16, #tpu.memory_space<vmem>>, vector<1x18x384xbf16>
    %47 = vector.shape_cast %46 : vector<1x18x384xbf16> to vector<18x384xbf16>
    %c0_31 = arith.constant 0 : index
    %c0_32 = arith.constant 0 : index
    %48 = vector.load %arg1[%c0_31, %c0_32] : memref<384x144xbf16, #tpu.memory_space<vmem>>, vector<384x144xbf16>
    %cst_33 = arith.constant dense<0.000000e+00> : vector<18x144xf32>
    %49 = tpu.matmul %47, %48, %cst_33 {dimension_numbers = #tpu.dot_dimension_numbers<[1], [0], [0], [1], [0, 0, 1, 1], [], []>} : vector<18x384xbf16>, vector<384x144xbf16>, vector<18x144xf32> -> vector<18x144xf32>
    %c0_34 = arith.constant 0 : index
    %c0_35 = arith.constant 0 : index
    %50 = vector.load %arg2[%c0_34, %c0_35] : memref<1x144xf32, #tpu.memory_space<vmem>>, vector<1x144xf32>
    %51 = vector.broadcast %50 : vector<1x144xf32> to vector<18x144xf32>
    %52 = arith.addf %49, %51 : vector<18x144xf32>
    %cst_36 = arith.constant 0.000000e+00 : f32
    %53 = vector.broadcast %cst_36 : f32 to vector<18x144xf32>
    %54 = arith.cmpf oge, %52, %53 : vector<18x144xf32>
    %cst_37 = arith.constant 2.000000e-02 : f32
    %55 = vector.broadcast %cst_37 : f32 to vector<18x144xf32>
    %56 = arith.mulf %55, %52 : vector<18x144xf32>
    %57 = arith.select %54, %52, %56 : vector<18x144xi1>, vector<18x144xf32>
    %c0_38 = arith.constant 0 : index
    %c0_39 = arith.constant 0 : index
    %58 = vector.load %arg3[%c0_38, %c0_39] : memref<36x18xbf16, #tpu.memory_space<vmem>>, vector<36x18xbf16>
    %59 = arith.truncf %57 : vector<18x144xf32> to vector<18x144xbf16>
    %cst_40 = arith.constant dense<0.000000e+00> : vector<36x144xf32>
    %60 = tpu.matmul %58, %59, %cst_40 {dimension_numbers = #tpu.dot_dimension_numbers<[1], [0], [0], [1], [0, 0, 1, 1], [], []>} : vector<36x18xbf16>, vector<18x144xbf16>, vector<36x144xf32> -> vector<36x144xf32>
    %61 = vector.extract_strided_slice %60 {offsets = [0, 0], sizes = [9, 144], strides = [1, 1]} : vector<36x144xf32> to vector<9x144xf32>
    %62 = arith.truncf %61 : vector<9x144xf32> to vector<9x144xbf16>
    %c0_41 = arith.constant 0 : index
    %c0_42 = arith.constant 0 : index
    %c0_43 = arith.constant 0 : index
    %63 = vector.load %arg4[%c0_41, %c0_42, %c0_43] : memref<4x144x144xbf16, #tpu.memory_space<vmem>>, vector<1x144x144xbf16>
    %64 = vector.shape_cast %63 : vector<1x144x144xbf16> to vector<144x144xbf16>
    %cst_44 = arith.constant dense<0.000000e+00> : vector<9x144xf32>
    %65 = tpu.matmul %62, %64, %cst_44 {dimension_numbers = #tpu.dot_dimension_numbers<[1], [0], [0], [1], [0, 0, 1, 1], [], []>} : vector<9x144xbf16>, vector<144x144xbf16>, vector<9x144xf32> -> vector<9x144xf32>
    %66 = vector.extract_strided_slice %60 {offsets = [9, 0], sizes = [9, 144], strides = [1, 1]} : vector<36x144xf32> to vector<9x144xf32>
    %67 = arith.truncf %66 : vector<9x144xf32> to vector<9x144xbf16>
    %c1_45 = arith.constant 1 : index
    %c0_46 = arith.constant 0 : index
    %c0_47 = arith.constant 0 : index
    %68 = vector.load %arg4[%c1_45, %c0_46, %c0_47] : memref<4x144x144xbf16, #tpu.memory_space<vmem>>, vector<1x144x144xbf16>
    %69 = vector.shape_cast %68 : vector<1x144x144xbf16> to vector<144x144xbf16>
    %cst_48 = arith.constant dense<0.000000e+00> : vector<9x144xf32>
    %70 = tpu.matmul %67, %69, %cst_48 {dimension_numbers = #tpu.dot_dimension_numbers<[1], [0], [0], [1], [0, 0, 1, 1], [], []>} : vector<9x144xbf16>, vector<144x144xbf16>, vector<9x144xf32> -> vector<9x144xf32>
    %71 = arith.addf %65, %70 : vector<9x144xf32>
    %72 = vector.extract_strided_slice %60 {offsets = [18, 0], sizes = [9, 144], strides = [1, 1]} : vector<36x144xf32> to vector<9x144xf32>
    %73 = arith.truncf %72 : vector<9x144xf32> to vector<9x144xbf16>
    %c2_49 = arith.constant 2 : index
    %c0_50 = arith.constant 0 : index
    %c0_51 = arith.constant 0 : index
    %74 = vector.load %arg4[%c2_49, %c0_50, %c0_51] : memref<4x144x144xbf16, #tpu.memory_space<vmem>>, vector<1x144x144xbf16>
    %75 = vector.shape_cast %74 : vector<1x144x144xbf16> to vector<144x144xbf16>
    %cst_52 = arith.constant dense<0.000000e+00> : vector<9x144xf32>
    %76 = tpu.matmul %73, %75, %cst_52 {dimension_numbers = #tpu.dot_dimension_numbers<[1], [0], [0], [1], [0, 0, 1, 1], [], []>} : vector<9x144xbf16>, vector<144x144xbf16>, vector<9x144xf32> -> vector<9x144xf32>
    %77 = arith.addf %71, %76 : vector<9x144xf32>
    %78 = vector.extract_strided_slice %60 {offsets = [27, 0], sizes = [9, 144], strides = [1, 1]} : vector<36x144xf32> to vector<9x144xf32>
    %79 = arith.truncf %78 : vector<9x144xf32> to vector<9x144xbf16>
    %c3_53 = arith.constant 3 : index
    %c0_54 = arith.constant 0 : index
    %c0_55 = arith.constant 0 : index
    %80 = vector.load %arg4[%c3_53, %c0_54, %c0_55] : memref<4x144x144xbf16, #tpu.memory_space<vmem>>, vector<1x144x144xbf16>
    %81 = vector.shape_cast %80 : vector<1x144x144xbf16> to vector<144x144xbf16>
    %cst_56 = arith.constant dense<0.000000e+00> : vector<9x144xf32>
    %82 = tpu.matmul %79, %81, %cst_56 {dimension_numbers = #tpu.dot_dimension_numbers<[1], [0], [0], [1], [0, 0, 1, 1], [], []>} : vector<9x144xbf16>, vector<144x144xbf16>, vector<9x144xf32> -> vector<9x144xf32>
    %83 = arith.addf %77, %82 : vector<9x144xf32>
    %c0_57 = arith.constant 0 : index
    %c0_58 = arith.constant 0 : index
    %84 = vector.load %arg5[%c0_57, %c0_58] : memref<1x144xf32, #tpu.memory_space<vmem>>, vector<1x144xf32>
    %85 = vector.broadcast %84 : vector<1x144xf32> to vector<9x144xf32>
    %86 = arith.addf %83, %85 : vector<9x144xf32>
    %cst_59 = arith.constant dense<0.000000e+00> : vector<144xf32>
    %87 = vector.multi_reduction <add>, %86, %cst_59 [0] : vector<9x144xf32> to vector<144xf32>
    %88 = vector.shape_cast %87 : vector<144xf32> to vector<1x144xf32>
    %89 = arith.mulf %86, %86 : vector<9x144xf32>
    %cst_60 = arith.constant dense<0.000000e+00> : vector<144xf32>
    %90 = vector.multi_reduction <add>, %89, %cst_60 [0] : vector<9x144xf32> to vector<144xf32>
    %91 = vector.shape_cast %90 : vector<144xf32> to vector<1x144xf32>
    %92 = arith.addf %42, %88 : vector<1x144xf32>
    %93 = arith.addf %45, %91 : vector<1x144xf32>
    %c0_61 = arith.constant 0 : index
    %c0_62 = arith.constant 0 : index
    %94 = vector.load %arg6[%c0_61, %c0_62] : memref<144x144xf32, #tpu.memory_space<vmem>>, vector<144x144xf32>
    %cst_63 = arith.constant dense<0.000000e+00> : vector<1x144xf32>
    %95 = tpu.matmul %92, %94, %cst_63 {dimension_numbers = #tpu.dot_dimension_numbers<[1], [0], [0], [1], [0, 0, 1, 1], [], []>} : vector<1x144xf32>, vector<144x144xf32>, vector<1x144xf32> -> vector<1x144xf32>
    %cst_64 = arith.constant 0.00617283955 : f32
    %96 = vector.broadcast %cst_64 : f32 to vector<1x144xf32>
    %97 = arith.mulf %95, %96 : vector<1x144xf32>
    %c0_65 = arith.constant 0 : index
    %c0_66 = arith.constant 0 : index
    %98 = vector.load %arg6[%c0_65, %c0_66] : memref<144x144xf32, #tpu.memory_space<vmem>>, vector<144x144xf32>
    %cst_67 = arith.constant dense<0.000000e+00> : vector<1x144xf32>
    %99 = tpu.matmul %93, %98, %cst_67 {dimension_numbers = #tpu.dot_dimension_numbers<[1], [0], [0], [1], [0, 0, 1, 1], [], []>} : vector<1x144xf32>, vector<144x144xf32>, vector<1x144xf32> -> vector<1x144xf32>
    %cst_68 = arith.constant 0.00617283955 : f32
    %100 = vector.broadcast %cst_68 : f32 to vector<1x144xf32>
    %101 = arith.mulf %99, %100 : vector<1x144xf32>
    %102 = arith.mulf %97, %97 : vector<1x144xf32>
    %103 = arith.subf %101, %102 : vector<1x144xf32>
    %c0_69 = arith.constant 0 : index
    %c0_70 = arith.constant 0 : index
    %104 = vector.load %arg7[%c0_69, %c0_70] : memref<1x144xf32, #tpu.memory_space<vmem>>, vector<1x144xf32>
    %cst_71 = arith.constant 9.99999974E-6 : f32
    %105 = vector.broadcast %cst_71 : f32 to vector<1x144xf32>
    %106 = arith.addf %103, %105 : vector<1x144xf32>
    %107 = math.rsqrt %106 : vector<1x144xf32>
    %108 = arith.mulf %104, %107 : vector<1x144xf32>
    %c0_72 = arith.constant 0 : index
    %c0_73 = arith.constant 0 : index
    %109 = vector.load %arg8[%c0_72, %c0_73] : memref<1x144xf32, #tpu.memory_space<vmem>>, vector<1x144xf32>
    %110 = arith.mulf %97, %108 : vector<1x144xf32>
    %111 = arith.subf %109, %110 : vector<1x144xf32>
    %112 = vector.broadcast %108 : vector<1x144xf32> to vector<9x144xf32>
    %113 = arith.mulf %40, %112 : vector<9x144xf32>
    %114 = vector.broadcast %111 : vector<1x144xf32> to vector<9x144xf32>
    %115 = arith.addf %113, %114 : vector<9x144xf32>
    %cst_74 = arith.constant 0.000000e+00 : f32
    %116 = vector.broadcast %cst_74 : f32 to vector<9x144xf32>
    %117 = arith.cmpf oge, %115, %116 : vector<9x144xf32>
    %cst_75 = arith.constant 2.000000e-02 : f32
    %118 = vector.broadcast %cst_75 : f32 to vector<9x144xf32>
    %119 = arith.mulf %118, %115 : vector<9x144xf32>
    %120 = arith.select %117, %115, %119 : vector<9x144xi1>, vector<9x144xf32>
    %c0_76 = arith.constant 0 : index
    %c0_77 = arith.constant 0 : index
    %121 = vector.load %arg9[%c0_76, %c0_77] : memref<16x9xbf16, #tpu.memory_space<vmem>>, vector<16x9xbf16>
    %122 = arith.truncf %120 : vector<9x144xf32> to vector<9x144xbf16>
    %cst_78 = arith.constant dense<0.000000e+00> : vector<16x144xf32>
    %123 = tpu.matmul %121, %122, %cst_78 {dimension_numbers = #tpu.dot_dimension_numbers<[1], [0], [0], [1], [0, 0, 1, 1], [], []>} : vector<16x9xbf16>, vector<9x144xbf16>, vector<16x144xf32> -> vector<16x144xf32>
    %124 = vector.extract_strided_slice %123 {offsets = [0, 0], sizes = [4, 144], strides = [1, 1]} : vector<16x144xf32> to vector<4x144xf32>
    %125 = arith.truncf %124 : vector<4x144xf32> to vector<4x144xbf16>
    %c0_79 = arith.constant 0 : index
    %c0_80 = arith.constant 0 : index
    %c0_81 = arith.constant 0 : index
    %126 = vector.load %arg10[%c0_79, %c0_80, %c0_81] : memref<4x144x128xbf16, #tpu.memory_space<vmem>>, vector<1x144x128xbf16>
    %127 = vector.shape_cast %126 : vector<1x144x128xbf16> to vector<144x128xbf16>
    %cst_82 = arith.constant dense<0.000000e+00> : vector<4x128xf32>
    %128 = tpu.matmul %125, %127, %cst_82 {dimension_numbers = #tpu.dot_dimension_numbers<[1], [0], [0], [1], [0, 0, 1, 1], [], []>} : vector<4x144xbf16>, vector<144x128xbf16>, vector<4x128xf32> -> vector<4x128xf32>
    %129 = vector.extract_strided_slice %123 {offsets = [4, 0], sizes = [4, 144], strides = [1, 1]} : vector<16x144xf32> to vector<4x144xf32>
    %130 = arith.truncf %129 : vector<4x144xf32> to vector<4x144xbf16>
    %c1_83 = arith.constant 1 : index
    %c0_84 = arith.constant 0 : index
    %c0_85 = arith.constant 0 : index
    %131 = vector.load %arg10[%c1_83, %c0_84, %c0_85] : memref<4x144x128xbf16, #tpu.memory_space<vmem>>, vector<1x144x128xbf16>
    %132 = vector.shape_cast %131 : vector<1x144x128xbf16> to vector<144x128xbf16>
    %cst_86 = arith.constant dense<0.000000e+00> : vector<4x128xf32>
    %133 = tpu.matmul %130, %132, %cst_86 {dimension_numbers = #tpu.dot_dimension_numbers<[1], [0], [0], [1], [0, 0, 1, 1], [], []>} : vector<4x144xbf16>, vector<144x128xbf16>, vector<4x128xf32> -> vector<4x128xf32>
    %134 = arith.addf %128, %133 : vector<4x128xf32>
    %135 = vector.extract_strided_slice %123 {offsets = [8, 0], sizes = [4, 144], strides = [1, 1]} : vector<16x144xf32> to vector<4x144xf32>
    %136 = arith.truncf %135 : vector<4x144xf32> to vector<4x144xbf16>
    %c2_87 = arith.constant 2 : index
    %c0_88 = arith.constant 0 : index
    %c0_89 = arith.constant 0 : index
    %137 = vector.load %arg10[%c2_87, %c0_88, %c0_89] : memref<4x144x128xbf16, #tpu.memory_space<vmem>>, vector<1x144x128xbf16>
    %138 = vector.shape_cast %137 : vector<1x144x128xbf16> to vector<144x128xbf16>
    %cst_90 = arith.constant dense<0.000000e+00> : vector<4x128xf32>
    %139 = tpu.matmul %136, %138, %cst_90 {dimension_numbers = #tpu.dot_dimension_numbers<[1], [0], [0], [1], [0, 0, 1, 1], [], []>} : vector<4x144xbf16>, vector<144x128xbf16>, vector<4x128xf32> -> vector<4x128xf32>
    %140 = arith.addf %134, %139 : vector<4x128xf32>
    %141 = vector.extract_strided_slice %123 {offsets = [12, 0], sizes = [4, 144], strides = [1, 1]} : vector<16x144xf32> to vector<4x144xf32>
    %142 = arith.truncf %141 : vector<4x144xf32> to vector<4x144xbf16>
    %c3_91 = arith.constant 3 : index
    %c0_92 = arith.constant 0 : index
    %c0_93 = arith.constant 0 : index
    %143 = vector.load %arg10[%c3_91, %c0_92, %c0_93] : memref<4x144x128xbf16, #tpu.memory_space<vmem>>, vector<1x144x128xbf16>
    %144 = vector.shape_cast %143 : vector<1x144x128xbf16> to vector<144x128xbf16>
    %cst_94 = arith.constant dense<0.000000e+00> : vector<4x128xf32>
    %145 = tpu.matmul %142, %144, %cst_94 {dimension_numbers = #tpu.dot_dimension_numbers<[1], [0], [0], [1], [0, 0, 1, 1], [], []>} : vector<4x144xbf16>, vector<144x128xbf16>, vector<4x128xf32> -> vector<4x128xf32>
    %146 = arith.addf %140, %145 : vector<4x128xf32>
    %c0_95 = arith.constant 0 : index
    %c0_96 = arith.constant 0 : index
    %147 = vector.load %arg11[%c0_95, %c0_96] : memref<1x128xf32, #tpu.memory_space<vmem>>, vector<1x128xf32>
    %148 = vector.broadcast %147 : vector<1x128xf32> to vector<4x128xf32>
    %149 = arith.addf %146, %148 : vector<4x128xf32>
    %cst_97 = arith.constant dense<0.000000e+00> : vector<128xf32>
    %150 = vector.multi_reduction <add>, %149, %cst_97 [0] : vector<4x128xf32> to vector<128xf32>
    %151 = vector.shape_cast %150 : vector<128xf32> to vector<1x128xf32>
    %152 = arith.mulf %149, %149 : vector<4x128xf32>
    %cst_98 = arith.constant dense<0.000000e+00> : vector<128xf32>
    %153 = vector.multi_reduction <add>, %152, %cst_98 [0] : vector<4x128xf32> to vector<128xf32>
    %154 = vector.shape_cast %153 : vector<128xf32> to vector<1x128xf32>
    %155 = vector.broadcast %108 : vector<1x144xf32> to vector<9x144xf32>
    %156 = arith.mulf %86, %155 : vector<9x144xf32>
    %157 = vector.broadcast %111 : vector<1x144xf32> to vector<9x144xf32>
    %158 = arith.addf %156, %157 : vector<9x144xf32>
    %cst_99 = arith.constant 0.000000e+00 : f32
    %159 = vector.broadcast %cst_99 : f32 to vector<9x144xf32>
    %160 = arith.cmpf oge, %158, %159 : vector<9x144xf32>
    %cst_100 = arith.constant 2.000000e-02 : f32
    %161 = vector.broadcast %cst_100 : f32 to vector<9x144xf32>
    %162 = arith.mulf %161, %158 : vector<9x144xf32>
    %163 = arith.select %160, %158, %162 : vector<9x144xi1>, vector<9x144xf32>
    %c0_101 = arith.constant 0 : index
    %c0_102 = arith.constant 0 : index
    %164 = vector.load %arg9[%c0_101, %c0_102] : memref<16x9xbf16, #tpu.memory_space<vmem>>, vector<16x9xbf16>
    %165 = arith.truncf %163 : vector<9x144xf32> to vector<9x144xbf16>
    %cst_103 = arith.constant dense<0.000000e+00> : vector<16x144xf32>
    %166 = tpu.matmul %164, %165, %cst_103 {dimension_numbers = #tpu.dot_dimension_numbers<[1], [0], [0], [1], [0, 0, 1, 1], [], []>} : vector<16x9xbf16>, vector<9x144xbf16>, vector<16x144xf32> -> vector<16x144xf32>
    %167 = vector.extract_strided_slice %166 {offsets = [0, 0], sizes = [4, 144], strides = [1, 1]} : vector<16x144xf32> to vector<4x144xf32>
    %168 = arith.truncf %167 : vector<4x144xf32> to vector<4x144xbf16>
    %c0_104 = arith.constant 0 : index
    %c0_105 = arith.constant 0 : index
    %c0_106 = arith.constant 0 : index
    %169 = vector.load %arg10[%c0_104, %c0_105, %c0_106] : memref<4x144x128xbf16, #tpu.memory_space<vmem>>, vector<1x144x128xbf16>
    %170 = vector.shape_cast %169 : vector<1x144x128xbf16> to vector<144x128xbf16>
    %cst_107 = arith.constant dense<0.000000e+00> : vector<4x128xf32>
    %171 = tpu.matmul %168, %170, %cst_107 {dimension_numbers = #tpu.dot_dimension_numbers<[1], [0], [0], [1], [0, 0, 1, 1], [], []>} : vector<4x144xbf16>, vector<144x128xbf16>, vector<4x128xf32> -> vector<4x128xf32>
    %172 = vector.extract_strided_slice %166 {offsets = [4, 0], sizes = [4, 144], strides = [1, 1]} : vector<16x144xf32> to vector<4x144xf32>
    %173 = arith.truncf %172 : vector<4x144xf32> to vector<4x144xbf16>
    %c1_108 = arith.constant 1 : index
    %c0_109 = arith.constant 0 : index
    %c0_110 = arith.constant 0 : index
    %174 = vector.load %arg10[%c1_108, %c0_109, %c0_110] : memref<4x144x128xbf16, #tpu.memory_space<vmem>>, vector<1x144x128xbf16>
    %175 = vector.shape_cast %174 : vector<1x144x128xbf16> to vector<144x128xbf16>
    %cst_111 = arith.constant dense<0.000000e+00> : vector<4x128xf32>
    %176 = tpu.matmul %173, %175, %cst_111 {dimension_numbers = #tpu.dot_dimension_numbers<[1], [0], [0], [1], [0, 0, 1, 1], [], []>} : vector<4x144xbf16>, vector<144x128xbf16>, vector<4x128xf32> -> vector<4x128xf32>
    %177 = arith.addf %171, %176 : vector<4x128xf32>
    %178 = vector.extract_strided_slice %166 {offsets = [8, 0], sizes = [4, 144], strides = [1, 1]} : vector<16x144xf32> to vector<4x144xf32>
    %179 = arith.truncf %178 : vector<4x144xf32> to vector<4x144xbf16>
    %c2_112 = arith.constant 2 : index
    %c0_113 = arith.constant 0 : index
    %c0_114 = arith.constant 0 : index
    %180 = vector.load %arg10[%c2_112, %c0_113, %c0_114] : memref<4x144x128xbf16, #tpu.memory_space<vmem>>, vector<1x144x128xbf16>
    %181 = vector.shape_cast %180 : vector<1x144x128xbf16> to vector<144x128xbf16>
    %cst_115 = arith.constant dense<0.000000e+00> : vector<4x128xf32>
    %182 = tpu.matmul %179, %181, %cst_115 {dimension_numbers = #tpu.dot_dimension_numbers<[1], [0], [0], [1], [0, 0, 1, 1], [], []>} : vector<4x144xbf16>, vector<144x128xbf16>, vector<4x128xf32> -> vector<4x128xf32>
    %183 = arith.addf %177, %182 : vector<4x128xf32>
    %184 = vector.extract_strided_slice %166 {offsets = [12, 0], sizes = [4, 144], strides = [1, 1]} : vector<16x144xf32> to vector<4x144xf32>
    %185 = arith.truncf %184 : vector<4x144xf32> to vector<4x144xbf16>
    %c3_116 = arith.constant 3 : index
    %c0_117 = arith.constant 0 : index
    %c0_118 = arith.constant 0 : index
    %186 = vector.load %arg10[%c3_116, %c0_117, %c0_118] : memref<4x144x128xbf16, #tpu.memory_space<vmem>>, vector<1x144x128xbf16>
    %187 = vector.shape_cast %186 : vector<1x144x128xbf16> to vector<144x128xbf16>
    %cst_119 = arith.constant dense<0.000000e+00> : vector<4x128xf32>
    %188 = tpu.matmul %185, %187, %cst_119 {dimension_numbers = #tpu.dot_dimension_numbers<[1], [0], [0], [1], [0, 0, 1, 1], [], []>} : vector<4x144xbf16>, vector<144x128xbf16>, vector<4x128xf32> -> vector<4x128xf32>
    %189 = arith.addf %183, %188 : vector<4x128xf32>
    %c0_120 = arith.constant 0 : index
    %c0_121 = arith.constant 0 : index
    %190 = vector.load %arg11[%c0_120, %c0_121] : memref<1x128xf32, #tpu.memory_space<vmem>>, vector<1x128xf32>
    %191 = vector.broadcast %190 : vector<1x128xf32> to vector<4x128xf32>
    %192 = arith.addf %189, %191 : vector<4x128xf32>
    %cst_122 = arith.constant dense<0.000000e+00> : vector<128xf32>
    %193 = vector.multi_reduction <add>, %192, %cst_122 [0] : vector<4x128xf32> to vector<128xf32>
    %194 = vector.shape_cast %193 : vector<128xf32> to vector<1x128xf32>
    %195 = arith.mulf %192, %192 : vector<4x128xf32>
    %cst_123 = arith.constant dense<0.000000e+00> : vector<128xf32>
    %196 = vector.multi_reduction <add>, %195, %cst_123 [0] : vector<4x128xf32> to vector<128xf32>
    %197 = vector.shape_cast %196 : vector<128xf32> to vector<1x128xf32>
    %198 = arith.addf %151, %194 : vector<1x128xf32>
    %199 = arith.addf %154, %197 : vector<1x128xf32>
    %c0_124 = arith.constant 0 : index
    %c0_125 = arith.constant 0 : index
    %200 = vector.load %arg12[%c0_124, %c0_125] : memref<128x128xf32, #tpu.memory_space<vmem>>, vector<128x128xf32>
    %cst_126 = arith.constant dense<0.000000e+00> : vector<1x128xf32>
    %201 = tpu.matmul %198, %200, %cst_126 {dimension_numbers = #tpu.dot_dimension_numbers<[1], [0], [0], [1], [0, 0, 1, 1], [], []>} : vector<1x128xf32>, vector<128x128xf32>, vector<1x128xf32> -> vector<1x128xf32>
    %cst_127 = arith.constant 3.125000e-02 : f32
    %202 = vector.broadcast %cst_127 : f32 to vector<1x128xf32>
    %203 = arith.mulf %201, %202 : vector<1x128xf32>
    %c0_128 = arith.constant 0 : index
    %c0_129 = arith.constant 0 : index
    %204 = vector.load %arg12[%c0_128, %c0_129] : memref<128x128xf32, #tpu.memory_space<vmem>>, vector<128x128xf32>
    %cst_130 = arith.constant dense<0.000000e+00> : vector<1x128xf32>
    %205 = tpu.matmul %199, %204, %cst_130 {dimension_numbers = #tpu.dot_dimension_numbers<[1], [0], [0], [1], [0, 0, 1, 1], [], []>} : vector<1x128xf32>, vector<128x128xf32>, vector<1x128xf32> -> vector<1x128xf32>
    %cst_131 = arith.constant 3.125000e-02 : f32
    %206 = vector.broadcast %cst_131 : f32 to vector<1x128xf32>
    %207 = arith.mulf %205, %206 : vector<1x128xf32>
    %208 = arith.mulf %203, %203 : vector<1x128xf32>
    %209 = arith.subf %207, %208 : vector<1x128xf32>
    %c0_132 = arith.constant 0 : index
    %c0_133 = arith.constant 0 : index
    %210 = vector.load %arg13[%c0_132, %c0_133] : memref<1x128xf32, #tpu.memory_space<vmem>>, vector<1x128xf32>
    %cst_134 = arith.constant 9.99999974E-6 : f32
    %211 = vector.broadcast %cst_134 : f32 to vector<1x128xf32>
    %212 = arith.addf %209, %211 : vector<1x128xf32>
    %213 = math.rsqrt %212 : vector<1x128xf32>
    %214 = arith.mulf %210, %213 : vector<1x128xf32>
    %c0_135 = arith.constant 0 : index
    %c0_136 = arith.constant 0 : index
    %215 = vector.load %arg14[%c0_135, %c0_136] : memref<1x128xf32, #tpu.memory_space<vmem>>, vector<1x128xf32>
    %216 = arith.mulf %203, %214 : vector<1x128xf32>
    %217 = arith.subf %215, %216 : vector<1x128xf32>
    %218 = vector.broadcast %214 : vector<1x128xf32> to vector<4x128xf32>
    %219 = arith.mulf %149, %218 : vector<4x128xf32>
    %220 = vector.broadcast %217 : vector<1x128xf32> to vector<4x128xf32>
    %221 = arith.addf %219, %220 : vector<4x128xf32>
    %cst_137 = arith.constant 0.000000e+00 : f32
    %222 = vector.broadcast %cst_137 : f32 to vector<4x128xf32>
    %223 = arith.cmpf oge, %221, %222 : vector<4x128xf32>
    %cst_138 = arith.constant 2.000000e-02 : f32
    %224 = vector.broadcast %cst_138 : f32 to vector<4x128xf32>
    %225 = arith.mulf %224, %221 : vector<4x128xf32>
    %226 = arith.select %223, %221, %225 : vector<4x128xi1>, vector<4x128xf32>
    %227 = arith.truncf %226 : vector<4x128xf32> to vector<4x128xbf16>
    %228 = vector.extract_strided_slice %227 {offsets = [0, 0], sizes = [1, 128], strides = [1, 1]} : vector<4x128xbf16> to vector<1x128xbf16>
    %c0_139 = arith.constant 0 : index
    %c0_140 = arith.constant 0 : index
    %c0_141 = arith.constant 0 : index
    %229 = vector.load %arg15[%c0_139, %c0_140, %c0_141] : memref<4x128x1xbf16, #tpu.memory_space<vmem>>, vector<1x128x1xbf16>
    %230 = vector.shape_cast %229 : vector<1x128x1xbf16> to vector<128x1xbf16>
    %cst_142 = arith.constant dense<0.000000e+00> : vector<1x1xf32>
    %231 = tpu.matmul %228, %230, %cst_142 {dimension_numbers = #tpu.dot_dimension_numbers<[1], [0], [0], [1], [0, 0, 1, 1], [], []>} : vector<1x128xbf16>, vector<128x1xbf16>, vector<1x1xf32> -> vector<1x1xf32>
    %232 = vector.extract_strided_slice %227 {offsets = [1, 0], sizes = [1, 128], strides = [1, 1]} : vector<4x128xbf16> to vector<1x128xbf16>
    %c1_143 = arith.constant 1 : index
    %c0_144 = arith.constant 0 : index
    %c0_145 = arith.constant 0 : index
    %233 = vector.load %arg15[%c1_143, %c0_144, %c0_145] : memref<4x128x1xbf16, #tpu.memory_space<vmem>>, vector<1x128x1xbf16>
    %234 = vector.shape_cast %233 : vector<1x128x1xbf16> to vector<128x1xbf16>
    %cst_146 = arith.constant dense<0.000000e+00> : vector<1x1xf32>
    %235 = tpu.matmul %232, %234, %cst_146 {dimension_numbers = #tpu.dot_dimension_numbers<[1], [0], [0], [1], [0, 0, 1, 1], [], []>} : vector<1x128xbf16>, vector<128x1xbf16>, vector<1x1xf32> -> vector<1x1xf32>
    %236 = arith.addf %231, %235 : vector<1x1xf32>
    %237 = vector.extract_strided_slice %227 {offsets = [2, 0], sizes = [1, 128], strides = [1, 1]} : vector<4x128xbf16> to vector<1x128xbf16>
    %c2_147 = arith.constant 2 : index
    %c0_148 = arith.constant 0 : index
    %c0_149 = arith.constant 0 : index
    %238 = vector.load %arg15[%c2_147, %c0_148, %c0_149] : memref<4x128x1xbf16, #tpu.memory_space<vmem>>, vector<1x128x1xbf16>
    %239 = vector.shape_cast %238 : vector<1x128x1xbf16> to vector<128x1xbf16>
    %cst_150 = arith.constant dense<0.000000e+00> : vector<1x1xf32>
    %240 = tpu.matmul %237, %239, %cst_150 {dimension_numbers = #tpu.dot_dimension_numbers<[1], [0], [0], [1], [0, 0, 1, 1], [], []>} : vector<1x128xbf16>, vector<128x1xbf16>, vector<1x1xf32> -> vector<1x1xf32>
    %241 = arith.addf %236, %240 : vector<1x1xf32>
    %242 = vector.extract_strided_slice %227 {offsets = [3, 0], sizes = [1, 128], strides = [1, 1]} : vector<4x128xbf16> to vector<1x128xbf16>
    %c3_151 = arith.constant 3 : index
    %c0_152 = arith.constant 0 : index
    %c0_153 = arith.constant 0 : index
    %243 = vector.load %arg15[%c3_151, %c0_152, %c0_153] : memref<4x128x1xbf16, #tpu.memory_space<vmem>>, vector<1x128x1xbf16>
    %244 = vector.shape_cast %243 : vector<1x128x1xbf16> to vector<128x1xbf16>
    %cst_154 = arith.constant dense<0.000000e+00> : vector<1x1xf32>
    %245 = tpu.matmul %242, %244, %cst_154 {dimension_numbers = #tpu.dot_dimension_numbers<[1], [0], [0], [1], [0, 0, 1, 1], [], []>} : vector<1x128xbf16>, vector<128x1xbf16>, vector<1x1xf32> -> vector<1x1xf32>
    %246 = arith.addf %241, %245 : vector<1x1xf32>
    %c0_155 = arith.constant 0 : index
    %c0_156 = arith.constant 0 : index
    %247 = vector.load %arg16[%c0_155, %c0_156] : memref<1x1xf32, #tpu.memory_space<vmem>>, vector<1x1xf32>
    %248 = arith.addf %246, %247 : vector<1x1xf32>
    %cst_157 = arith.constant 5.000000e-01 : f32
    %249 = vector.broadcast %cst_157 : f32 to vector<1x1xf32>
    %250 = arith.mulf %249, %248 : vector<1x1xf32>
    %251 = math.tanh %250 : vector<1x1xf32>
    %cst_158 = arith.constant 1.000000e+00 : f32
    %252 = vector.broadcast %cst_158 : f32 to vector<1x1xf32>
    %253 = arith.addf %251, %252 : vector<1x1xf32>
    %cst_159 = arith.constant 5.000000e-01 : f32
    %254 = vector.broadcast %cst_159 : f32 to vector<1x1xf32>
    %255 = arith.mulf %254, %253 : vector<1x1xf32>
    %c0_160 = arith.constant 0 : index
    %c0_161 = arith.constant 0 : index
    %256 = vector.load %arg17[%c0_160, %c0_161] : memref<2x1xf32, #tpu.memory_space<vmem>>, vector<1x1xf32>
    tpu.vector_store %arg17[%c0_160, %c0_161], %255 {strides = array<i32>} : memref<2x1xf32, #tpu.memory_space<vmem>>, vector<1x1xf32>,
    %257 = vector.broadcast %214 : vector<1x128xf32> to vector<4x128xf32>
    %258 = arith.mulf %192, %257 : vector<4x128xf32>
    %259 = vector.broadcast %217 : vector<1x128xf32> to vector<4x128xf32>
    %260 = arith.addf %258, %259 : vector<4x128xf32>
    %cst_162 = arith.constant 0.000000e+00 : f32
    %261 = vector.broadcast %cst_162 : f32 to vector<4x128xf32>
    %262 = arith.cmpf oge, %260, %261 : vector<4x128xf32>
    %cst_163 = arith.constant 2.000000e-02 : f32
    %263 = vector.broadcast %cst_163 : f32 to vector<4x128xf32>
    %264 = arith.mulf %263, %260 : vector<4x128xf32>
    %265 = arith.select %262, %260, %264 : vector<4x128xi1>, vector<4x128xf32>
    %266 = arith.truncf %265 : vector<4x128xf32> to vector<4x128xbf16>
    %267 = vector.extract_strided_slice %266 {offsets = [0, 0], sizes = [1, 128], strides = [1, 1]} : vector<4x128xbf16> to vector<1x128xbf16>
    %c0_164 = arith.constant 0 : index
    %c0_165 = arith.constant 0 : index
    %c0_166 = arith.constant 0 : index
    %268 = vector.load %arg15[%c0_164, %c0_165, %c0_166] : memref<4x128x1xbf16, #tpu.memory_space<vmem>>, vector<1x128x1xbf16>
    %269 = vector.shape_cast %268 : vector<1x128x1xbf16> to vector<128x1xbf16>
    %cst_167 = arith.constant dense<0.000000e+00> : vector<1x1xf32>
    %270 = tpu.matmul %267, %269, %cst_167 {dimension_numbers = #tpu.dot_dimension_numbers<[1], [0], [0], [1], [0, 0, 1, 1], [], []>} : vector<1x128xbf16>, vector<128x1xbf16>, vector<1x1xf32> -> vector<1x1xf32>
    %271 = vector.extract_strided_slice %266 {offsets = [1, 0], sizes = [1, 128], strides = [1, 1]} : vector<4x128xbf16> to vector<1x128xbf16>
    %c1_168 = arith.constant 1 : index
    %c0_169 = arith.constant 0 : index
    %c0_170 = arith.constant 0 : index
    %272 = vector.load %arg15[%c1_168, %c0_169, %c0_170] : memref<4x128x1xbf16, #tpu.memory_space<vmem>>, vector<1x128x1xbf16>
    %273 = vector.shape_cast %272 : vector<1x128x1xbf16> to vector<128x1xbf16>
    %cst_171 = arith.constant dense<0.000000e+00> : vector<1x1xf32>
    %274 = tpu.matmul %271, %273, %cst_171 {dimension_numbers = #tpu.dot_dimension_numbers<[1], [0], [0], [1], [0, 0, 1, 1], [], []>} : vector<1x128xbf16>, vector<128x1xbf16>, vector<1x1xf32> -> vector<1x1xf32>
    %275 = arith.addf %270, %274 : vector<1x1xf32>
    %276 = vector.extract_strided_slice %266 {offsets = [2, 0], sizes = [1, 128], strides = [1, 1]} : vector<4x128xbf16> to vector<1x128xbf16>
    %c2_172 = arith.constant 2 : index
    %c0_173 = arith.constant 0 : index
    %c0_174 = arith.constant 0 : index
    %277 = vector.load %arg15[%c2_172, %c0_173, %c0_174] : memref<4x128x1xbf16, #tpu.memory_space<vmem>>, vector<1x128x1xbf16>
    %278 = vector.shape_cast %277 : vector<1x128x1xbf16> to vector<128x1xbf16>
    %cst_175 = arith.constant dense<0.000000e+00> : vector<1x1xf32>
    %279 = tpu.matmul %276, %278, %cst_175 {dimension_numbers = #tpu.dot_dimension_numbers<[1], [0], [0], [1], [0, 0, 1, 1], [], []>} : vector<1x128xbf16>, vector<128x1xbf16>, vector<1x1xf32> -> vector<1x1xf32>
    %280 = arith.addf %275, %279 : vector<1x1xf32>
    %281 = vector.extract_strided_slice %266 {offsets = [3, 0], sizes = [1, 128], strides = [1, 1]} : vector<4x128xbf16> to vector<1x128xbf16>
    %c3_176 = arith.constant 3 : index
    %c0_177 = arith.constant 0 : index
    %c0_178 = arith.constant 0 : index
    %282 = vector.load %arg15[%c3_176, %c0_177, %c0_178] : memref<4x128x1xbf16, #tpu.memory_space<vmem>>, vector<1x128x1xbf16>
    %283 = vector.shape_cast %282 : vector<1x128x1xbf16> to vector<128x1xbf16>
    %cst_179 = arith.constant dense<0.000000e+00> : vector<1x1xf32>
    %284 = tpu.matmul %281, %283, %cst_179 {dimension_numbers = #tpu.dot_dimension_numbers<[1], [0], [0], [1], [0, 0, 1, 1], [], []>} : vector<1x128xbf16>, vector<128x1xbf16>, vector<1x1xf32> -> vector<1x1xf32>
    %285 = arith.addf %280, %284 : vector<1x1xf32>
    %c0_180 = arith.constant 0 : index
    %c0_181 = arith.constant 0 : index
    %286 = vector.load %arg16[%c0_180, %c0_181] : memref<1x1xf32, #tpu.memory_space<vmem>>, vector<1x1xf32>
    %287 = arith.addf %285, %286 : vector<1x1xf32>
    %cst_182 = arith.constant 5.000000e-01 : f32
    %288 = vector.broadcast %cst_182 : f32 to vector<1x1xf32>
    %289 = arith.mulf %288, %287 : vector<1x1xf32>
    %290 = math.tanh %289 : vector<1x1xf32>
    %cst_183 = arith.constant 1.000000e+00 : f32
    %291 = vector.broadcast %cst_183 : f32 to vector<1x1xf32>
    %292 = arith.addf %290, %291 : vector<1x1xf32>
    %cst_184 = arith.constant 5.000000e-01 : f32
    %293 = vector.broadcast %cst_184 : f32 to vector<1x1xf32>
    %294 = arith.mulf %293, %292 : vector<1x1xf32>
    %c1_185 = arith.constant 1 : index
    %c0_186 = arith.constant 0 : index
    %295 = vector.load %arg17[%c1_185, %c0_186] : memref<2x1xf32, #tpu.memory_space<vmem>>, vector<1x1xf32>
    tpu.vector_store %arg17[%c1_185, %c0_186], %294 {strides = array<i32>} : memref<2x1xf32, #tpu.memory_space<vmem>>, vector<1x1xf32>,
    return
  }
}

</mosaic_0001>

<llo_original>
// kernel: discriminator_forward.1
$region0: #{discriminator_forward.1}
  #allocation0 [shape = 'u32[]', space=smem, size = 0x4, offset = 0x4, fixed_abs, tag = 'smem constant byte address 0x4 - core index']
  #allocation1 [shape = 'u32[144,128]{1,0:T(1,128)}', space=vmem, size = 0x12000, scoped, tag = 'internal scratch']
  #allocation2 [shape = 'f32[1,1]{1,0:T(1,128)S(1)}', space=vmem, size = 0x200, scoped, tag = 'scoped memory for discriminator_forward.1']
  %s0 = inlined_call_operand.vmem [shape: bf16[2,18,384], index: 0, kind: input, shape index: {}]
  %s1 = inlined_call_operand.vmem [shape: bf16[384,144], index: 1, kind: input, shape index: {}]
  %s2 = inlined_call_operand.vmem [shape: f32[1,144], index: 2, kind: input, shape index: {}]
  %s3 = inlined_call_operand.vmem [shape: bf16[36,18], index: 3, kind: input, shape index: {}]
  %s4 = inlined_call_operand.vmem [shape: bf16[4,144,144], index: 4, kind: input, shape index: {}]
  %s5 = inlined_call_operand.vmem [shape: f32[1,144], index: 5, kind: input, shape index: {}]
  %s6 = inlined_call_operand.vmem [shape: f32[144,144], index: 6, kind: input, shape index: {}]
  %s7 = inlined_call_operand.vmem [shape: f32[1,144], index: 7, kind: input, shape index: {}]
  %s8 = inlined_call_operand.vmem [shape: f32[1,144], index: 8, kind: input, shape index: {}]
  %s9 = inlined_call_operand.vmem [shape: bf16[16,9], index: 9, kind: input, shape index: {}]
  %s10 = inlined_call_operand.vmem [shape: bf16[4,144,128], index: 10, kind: input, shape index: {}]
  %s11 = inlined_call_operand.vmem [shape: f32[1,128], index: 11, kind: input, shape index: {}]
  %s12 = inlined_call_operand.vmem [shape: f32[128,128], index: 12, kind: input, shape index: {}]
  %s13 = inlined_call_operand.vmem [shape: f32[1,128], index: 13, kind: input, shape index: {}]
  %s14 = inlined_call_operand.vmem [shape: f32[1,128], index: 14, kind: input, shape index: {}]
  %s15 = inlined_call_operand.vmem [shape: bf16[4,128,1], index: 15, kind: input, shape index: {}]
  %s16 = inlined_call_operand.<no memory space> [shape: f32[1,1], index: 16, kind: input, shape index: {}]
  %s17 = inlined_call_operand.vmem [shape: f32[2,1], index: 17, kind: output, shape index: {}]
  %s18 = sld [smem:[#allocation0]]
  $region78: #{discriminator_forward.1} parent=0
    _
  %s20 = ssub.s32 1, %s18
  %s21 = scalar_select 0, %s20, %s18
  %v22 = vstv %s16
  %23 = vst [vmem:[#allocation2] sm:$0x1] %v22
  // Predicated region
  $region2: #{discriminator_forward.1} parent=0 // pred_check
    _
  $region3: #{discriminator_forward.1} parent=0 // pred_check_branch
    %25 = sbr.rel (0) target = $region5
  $region4: #{discriminator_forward.1} parent=0 // pred_region
    _
  $region5: #{discriminator_forward.1} parent=0 // pred_fallthru
    _
  // Predicated region
  $region6: #{discriminator_forward.1} parent=0 // pred_check
    _
  $region7: #{discriminator_forward.1} parent=0 // pred_check_branch
    %27 = sbr.rel (0) target = $region9
  $region8: #{discriminator_forward.1} parent=0 // pred_region
    _
  $region9: #{discriminator_forward.1} parent=0 // pred_fallthru
    _
  // Predicated region
  $region10: #{discriminator_forward.1} parent=0 // pred_check
    _
  $region11: #{discriminator_forward.1} parent=0 // pred_check_branch
    %29 = sbr.rel (0) target = $region13
  $region12: #{discriminator_forward.1} parent=0 // pred_region
    _
  $region13: #{discriminator_forward.1} parent=0 // pred_fallthru
    _
  // Predicated region
  $region14: #{discriminator_forward.1} parent=0 // pred_check
    _
  $region15: #{discriminator_forward.1} parent=0 // pred_check_branch
    %31 = sbr.rel (0) target = $region17
  $region16: #{discriminator_forward.1} parent=0 // pred_region
    _
  $region17: #{discriminator_forward.1} parent=0 // pred_fallthru
    _
  // Predicated region
  $region18: #{discriminator_forward.1} parent=0 // pred_check
    _
  $region19: #{discriminator_forward.1} parent=0 // pred_check_branch
    %33 = sbr.rel (0) target = $region21
  $region20: #{discriminator_forward.1} parent=0 // pred_region
    _
  $region21: #{discriminator_forward.1} parent=0 // pred_fallthru
    _
  // Predicated region
  $region22: #{discriminator_forward.1} parent=0 // pred_check
    _
  $region23: #{discriminator_forward.1} parent=0 // pred_check_branch
    %35 = sbr.rel (0) target = $region25
  $region24: #{discriminator_forward.1} parent=0 // pred_region
    _
  $region25: #{discriminator_forward.1} parent=0 // pred_fallthru
    _
  // Predicated region
  $region26: #{discriminator_forward.1} parent=0 // pred_check
    _
  $region27: #{discriminator_forward.1} parent=0 // pred_check_branch
    %37 = sbr.rel (0) target = $region29
  $region28: #{discriminator_forward.1} parent=0 // pred_region
    _
  $region29: #{discriminator_forward.1} parent=0 // pred_fallthru
    _
  // Predicated region
  $region30: #{discriminator_forward.1} parent=0 // pred_check
    _
  $region31: #{discriminator_forward.1} parent=0 // pred_check_branch
    %39 = sbr.rel (0) target = $region33
  $region32: #{discriminator_forward.1} parent=0 // pred_region
    _
  $region33: #{discriminator_forward.1} parent=0 // pred_fallthru
    _
  // Predicated region
  $region34: #{discriminator_forward.1} parent=0 // pred_check
    _
  $region35: #{discriminator_forward.1} parent=0 // pred_check_branch
    %41 = sbr.rel (0) target = $region37
  $region36: #{discriminator_forward.1} parent=0 // pred_region
    _
  $region37: #{discriminator_forward.1} parent=0 // pred_fallthru
    _
  // Predicated region
  $region38: #{discriminator_forward.1} parent=0 // pred_check
    _
  $region39: #{discriminator_forward.1} parent=0 // pred_check_branch
    %43 = sbr.rel (0) target = $region41
  $region40: #{discriminator_forward.1} parent=0 // pred_region
    _
  $region41: #{discriminator_forward.1} parent=0 // pred_fallthru
    _
  // Predicated region
  $region42: #{discriminator_forward.1} parent=0 // pred_check
    _
  $region43: #{discriminator_forward.1} parent=0 // pred_check_branch
    %45 = sbr.rel (0) target = $region45
  $region44: #{discriminator_forward.1} parent=0 // pred_region
    _
  $region45: #{discriminator_forward.1} parent=0 // pred_fallthru
    _
  // Predicated region
  $region46: #{discriminator_forward.1} parent=0 // pred_check
    _
  $region47: #{discriminator_forward.1} parent=0 // pred_check_branch
    %47 = sbr.rel (0) target = $region49
  $region48: #{discriminator_forward.1} parent=0 // pred_region
    _
  $region49: #{discriminator_forward.1} parent=0 // pred_fallthru
    _
  // Predicated region
  $region50: #{discriminator_forward.1} parent=0 // pred_check
    _
  $region51: #{discriminator_forward.1} parent=0 // pred_check_branch
    %49 = sbr.rel (0) target = $region53
  $region52: #{discriminator_forward.1} parent=0 // pred_region
    _
  $region53: #{discriminator_forward.1} parent=0 // pred_fallthru
    _
  // Predicated region
  $region54: #{discriminator_forward.1} parent=0 // pred_check
    _
  $region55: #{discriminator_forward.1} parent=0 // pred_check_branch
    %51 = sbr.rel (0) target = $region57
  $region56: #{discriminator_forward.1} parent=0 // pred_region
    _
  $region57: #{discriminator_forward.1} parent=0 // pred_fallthru
    _
  // Predicated region
  $region58: #{discriminator_forward.1} parent=0 // pred_check
    _
  $region59: #{discriminator_forward.1} parent=0 // pred_check_branch
    %53 = sbr.rel (0) target = $region61
  $region60: #{discriminator_forward.1} parent=0 // pred_region
    _
  $region61: #{discriminator_forward.1} parent=0 // pred_fallthru
    _
  // Predicated region
  $region62: #{discriminator_forward.1} parent=0 // pred_check
    _
  $region63: #{discriminator_forward.1} parent=0 // pred_check_branch
    %55 = sbr.rel (0) target = $region65
  $region64: #{discriminator_forward.1} parent=0 // pred_region
    _
  $region65: #{discriminator_forward.1} parent=0 // pred_fallthru
    _
  // Predicated region
  $region66: #{discriminator_forward.1} parent=0 // pred_check
    _
  $region67: #{discriminator_forward.1} parent=0 // pred_check_branch
    %57 = sbr.rel (0) target = $region69
  $region68: #{discriminator_forward.1} parent=0 // pred_region
    _
  $region69: #{discriminator_forward.1} parent=0 // pred_fallthru
    _
  %v59 = vld [vmem:[%s0] sm:$0xff]
  %v60 = vld [vmem:[%s0 + $0x8] sm:$0xf]
  %v61 = vld [vmem:[%s0 + $0xc] sm:$0xff]
  %v62 = vld [vmem:[%s0 + $0x14] sm:$0xf]
  %v63 = vld [vmem:[%s0 + $0x18] sm:$0x11]
  %v64 = vld [vmem:[%s0 + $0x20] sm:$0x1]
  %v65 = vld [vmem:[%s1] sm:$0xff]
  %v66 = vld [vmem:[%s1 + $0x8] sm:$0xff]
  %v67 = vld [vmem:[%s1 + $0x10] sm:$0xff]
  %v68 = vld [vmem:[%s1 + $0x18] sm:$0xff]
  %v69 = vld [vmem:[%s1 + $0x20] sm:$0xff]
  %v70 = vld [vmem:[%s1 + $0x28] sm:$0xff]
  %v71 = vld [vmem:[%s1 + $0x30] sm:$0xff]
  %v72 = vld [vmem:[%s1 + $0x38] sm:$0xff]
  %v73 = vld [vmem:[%s1 + $0x40] sm:$0xff]
  %v74 = vld [vmem:[%s1 + $0x48] sm:$0xff]
  %v75 = vld [vmem:[%s1 + $0x50] sm:$0xff]
  %v76 = vld [vmem:[%s1 + $0x58] sm:$0xff]
  %v77 = vld [vmem:[%s1 + $0x60] sm:$0xff]
  %v78 = vld [vmem:[%s1 + $0x68] sm:$0xff]
  %v79 = vld [vmem:[%s1 + $0x70] sm:$0xff]
  %v80 = vld [vmem:[%s1 + $0x78] sm:$0xff]
  %v81 = vld [vmem:[%s1 + $0x80] sm:$0xff]
  %v82 = vld [vmem:[%s1 + $0x88] sm:$0xff]
  %v83 = vld [vmem:[%s1 + $0x90] sm:$0xff]
  %v84 = vld [vmem:[%s1 + $0x98] sm:$0xff]
  %v85 = vld [vmem:[%s1 + $0xa0] sm:$0xff]
  %v86 = vld [vmem:[%s1 + $0xa8] sm:$0xff]
  %v87 = vld [vmem:[%s1 + $0xb0] sm:$0xff]
  %v88 = vld [vmem:[%s1 + $0xb8] sm:$0xff]
  %v89 = vld [vmem:[%s1 + $0xc0] sm:$0xff]
  %v90 = vld [vmem:[%s1 + $0xc8] sm:$0xff]
  %v91 = vld [vmem:[%s1 + $0xd0] sm:$0xff]
  %v92 = vld [vmem:[%s1 + $0xd8] sm:$0xff]
  %v93 = vld [vmem:[%s1 + $0xe0] sm:$0xff]
  %v94 = vld [vmem:[%s1 + $0xe8] sm:$0xff]
  %v95 = vld [vmem:[%s1 + $0xf0] sm:$0xff]
  %v96 = vld [vmem:[%s1 + $0xf8] sm:$0xff]
  %v97 = vld [vmem:[%s1 + $0x100] sm:$0xff]
  %v98 = vld [vmem:[%s1 + $0x108] sm:$0xff]
  %v99 = vld [vmem:[%s1 + $0x110] sm:$0xff]
  %v100 = vld [vmem:[%s1 + $0x118] sm:$0xff]
  %v101 = vld [vmem:[%s1 + $0x120] sm:$0xff]
  %v102 = vld [vmem:[%s1 + $0x128] sm:$0xff]
  %v103 = vld [vmem:[%s1 + $0x130] sm:$0xff]
  %v104 = vld [vmem:[%s1 + $0x138] sm:$0xff]
  %v105 = vld [vmem:[%s1 + $0x140] sm:$0xff]
  %v106 = vld [vmem:[%s1 + $0x148] sm:$0xff]
  %v107 = vld [vmem:[%s1 + $0x150] sm:$0xff]
  %v108 = vld [vmem:[%s1 + $0x158] sm:$0xff]
  %v109 = vld [vmem:[%s1 + $0x160] sm:$0xff]
  %v110 = vld [vmem:[%s1 + $0x168] sm:$0xff]
  %v111 = vld [vmem:[%s1 + $0x170] sm:$0xff]
  %v112 = vld [vmem:[%s1 + $0x178] sm:$0xff]
  %v113 = vld [vmem:[%s2] sm:$0x3]
  %v115 = vlaneseq
  %v116 = vshrl.u32 %v115, 7
  %v117 = vsub.s32 0, %v116
  %v118 = vrot.slane %v113, %v117
  %v119 = vlaneseq
  %v120 = vshrl.u32 %v119, 7
  %v121 = vsub.s32 1, %v120
  %v122 = vrot.slane %v113, %v121
  %v131 = vunpack.c.l.b16 %v59
  %v132 = vunpack.c.h.b16 %v59
  %v133 = vunpack.c.l.b16 %v60
  %v134 = vunpack.c.l.b16 %v61
  %v135 = vunpack.c.h.b16 %v61
  %v136 = vunpack.c.l.b16 %v62
  %v137 = vunpack.c.l.b16 %v63
  %v138 = vunpack.c.h.b16 %v63
  %v139 = vunpack.c.l.b16 %v64
  %v140 = vpack.c.b16 %v134, %v131
  %v141 = vpack.c.b16 %v135, %v132
  %v142 = vpack.c.b16 %v136, %v133
  %v143 = vpack.c.b16 %v137, %v137
  %v144 = vpack.c.b16 %v138, %v138
  %v145 = vpack.c.b16 %v139, %v139
  %v200 = vunpack.c.l.b16 %v65
  %v201 = vunpack.c.h.b16 %v65
  %v202 = vunpack.c.l.b16 %v66
  %v203 = vunpack.c.h.b16 %v66
  %v204 = vunpack.c.l.b16 %v67
  %v205 = vunpack.c.h.b16 %v67
  %v206 = vunpack.c.l.b16 %v68
  %v207 = vunpack.c.h.b16 %v68
  %v208 = vunpack.c.l.b16 %v69
  %v209 = vunpack.c.h.b16 %v69
  %v210 = vunpack.c.l.b16 %v70
  %v211 = vunpack.c.h.b16 %v70
  %v212 = vunpack.c.l.b16 %v71
  %v213 = vunpack.c.h.b16 %v71
  %v214 = vunpack.c.l.b16 %v72
  %v215 = vunpack.c.h.b16 %v72
  %v216 = vunpack.c.l.b16 %v73
  %v217 = vunpack.c.h.b16 %v73
  %v218 = vunpack.c.l.b16 %v74
  %v219 = vunpack.c.h.b16 %v74
  %v220 = vunpack.c.l.b16 %v75
  %v221 = vunpack.c.h.b16 %v75
  %v222 = vunpack.c.l.b16 %v76
  %v223 = vunpack.c.h.b16 %v76
  %v224 = vunpack.c.l.b16 %v77
  %v225 = vunpack.c.h.b16 %v77
  %v226 = vunpack.c.l.b16 %v78
  %v227 = vunpack.c.h.b16 %v78
  %v228 = vunpack.c.l.b16 %v79
  %v229 = vunpack.c.h.b16 %v79
  %v230 = vunpack.c.l.b16 %v80
  %v231 = vunpack.c.h.b16 %v80
  %v232 = vunpack.c.l.b16 %v81
  %v233 = vunpack.c.h.b16 %v81
  %v234 = vunpack.c.l.b16 %v82
  %v235 = vunpack.c.h.b16 %v82
  %v236 = vunpack.c.l.b16 %v83
  %v237 = vunpack.c.h.b16 %v83
  %v238 = vunpack.c.l.b16 %v84
  %v239 = vunpack.c.h.b16 %v84
  %v240 = vunpack.c.l.b16 %v85
  %v241 = vunpack.c.h.b16 %v85
  %v242 = vunpack.c.l.b16 %v86
  %v243 = vunpack.c.h.b16 %v86
  %v244 = vunpack.c.l.b16 %v87
  %v245 = vunpack.c.h.b16 %v87
  %v246 = vunpack.c.l.b16 %v88
  %v247 = vunpack.c.h.b16 %v88
  %v248 = vunpack.c.l.b16 %v89
  %v249 = vunpack.c.h.b16 %v89
  %v250 = vunpack.c.l.b16 %v90
  %v251 = vunpack.c.h.b16 %v90
  %v252 = vunpack.c.l.b16 %v91
  %v253 = vunpack.c.h.b16 %v91
  %v254 = vunpack.c.l.b16 %v92
  %v255 = vunpack.c.h.b16 %v92
  %v256 = vunpack.c.l.b16 %v93
  %v257 = vunpack.c.h.b16 %v93
  %v258 = vunpack.c.l.b16 %v94
  %v259 = vunpack.c.h.b16 %v94
  %v260 = vunpack.c.l.b16 %v95
  %v261 = vunpack.c.h.b16 %v95
  %v262 = vunpack.c.l.b16 %v96
  %v263 = vunpack.c.h.b16 %v96
  %v264 = vunpack.c.l.b16 %v97
  %v265 = vunpack.c.h.b16 %v97
  %v266 = vunpack.c.l.b16 %v98
  %v267 = vunpack.c.h.b16 %v98
  %v268 = vunpack.c.l.b16 %v99
  %v269 = vunpack.c.h.b16 %v99
  %v270 = vunpack.c.l.b16 %v100
  %v271 = vunpack.c.h.b16 %v100
  %v272 = vunpack.c.l.b16 %v101
  %v273 = vunpack.c.h.b16 %v101
  %v274 = vunpack.c.l.b16 %v102
  %v275 = vunpack.c.h.b16 %v102
  %v276 = vunpack.c.l.b16 %v103
  %v277 = vunpack.c.h.b16 %v103
  %v278 = vunpack.c.l.b16 %v104
  %v279 = vunpack.c.h.b16 %v104
  %v280 = vunpack.c.l.b16 %v105
  %v281 = vunpack.c.h.b16 %v105
  %v282 = vunpack.c.l.b16 %v106
  %v283 = vunpack.c.h.b16 %v106
  %v284 = vunpack.c.l.b16 %v107
  %v285 = vunpack.c.h.b16 %v107
  %v286 = vunpack.c.l.b16 %v108
  %v287 = vunpack.c.h.b16 %v108
  %v288 = vunpack.c.l.b16 %v109
  %v289 = vunpack.c.h.b16 %v109
  %v290 = vunpack.c.l.b16 %v110
  %v291 = vunpack.c.h.b16 %v110
  %v292 = vunpack.c.l.b16 %v111
  %v293 = vunpack.c.h.b16 %v111
  %v294 = vunpack.c.l.b16 %v112
  %v295 = vunpack.c.h.b16 %v112
  %v296 = vpack.c.b16 %v202, %v200
  %v297 = vpack.c.b16 %v203, %v201
  %v298 = vpack.c.b16 %v206, %v204
  %v299 = vpack.c.b16 %v207, %v205
  %v300 = vpack.c.b16 %v210, %v208
  %v301 = vpack.c.b16 %v211, %v209
  %v302 = vpack.c.b16 %v214, %v212
  %v303 = vpack.c.b16 %v215, %v213
  %v304 = vpack.c.b16 %v218, %v216
  %v305 = vpack.c.b16 %v219, %v217
  %v306 = vpack.c.b16 %v222, %v220
  %v307 = vpack.c.b16 %v223, %v221
  %v308 = vpack.c.b16 %v226, %v224
  %v309 = vpack.c.b16 %v227, %v225
  %v310 = vpack.c.b16 %v230, %v228
  %v311 = vpack.c.b16 %v231, %v229
  %v312 = vpack.c.b16 %v234, %v232
  %v313 = vpack.c.b16 %v235, %v233
  %v314 = vpack.c.b16 %v238, %v236
  %v315 = vpack.c.b16 %v239, %v237
  %v316 = vpack.c.b16 %v242, %v240
  %v317 = vpack.c.b16 %v243, %v241
  %v318 = vpack.c.b16 %v246, %v244
  %v319 = vpack.c.b16 %v247, %v245
  %v320 = vpack.c.b16 %v250, %v248
  %v321 = vpack.c.b16 %v251, %v249
  %v322 = vpack.c.b16 %v254, %v252
  %v323 = vpack.c.b16 %v255, %v253
  %v324 = vpack.c.b16 %v258, %v256
  %v325 = vpack.c.b16 %v259, %v257
  %v326 = vpack.c.b16 %v262, %v260
  %v327 = vpack.c.b16 %v263, %v261
  %v328 = vpack.c.b16 %v266, %v264
  %v329 = vpack.c.b16 %v267, %v265
  %v330 = vpack.c.b16 %v270, %v268
  %v331 = vpack.c.b16 %v271, %v269
  %v332 = vpack.c.b16 %v274, %v272
  %v333 = vpack.c.b16 %v275, %v273
  %v334 = vpack.c.b16 %v278, %v276
  %v335 = vpack.c.b16 %v279, %v277
  %v336 = vpack.c.b16 %v282, %v280
  %v337 = vpack.c.b16 %v283, %v281
  %v338 = vpack.c.b16 %v286, %v284
  %v339 = vpack.c.b16 %v287, %v285
  %v340 = vpack.c.b16 %v290, %v288
  %v341 = vpack.c.b16 %v291, %v289
  %v342 = vpack.c.b16 %v294, %v292
  %v343 = vpack.c.b16 %v295, %v293
  %392 = vmatprep.subr.bf16.mxu0 %v297
  %393 = vmatpush1.bf16.msra.mxu0 %v296
  %394 = vmatprep.subr.bf16.mxu0 %v299
  %395 = vmatpush1.bf16.msra.mxu0 %v298
  %396 = vmatprep.subr.bf16.mxu0 %v301
  %397 = vmatpush1.bf16.msra.mxu0 %v300
  %398 = vmatprep.subr.bf16.mxu0 %v303
  %399 = vmatpush1.bf16.msra.mxu0 %v302
  %400 = vmatprep.subr.bf16.mxu0 %v305
  %401 = vmatpush1.bf16.msra.mxu0 %v304
  %402 = vmatprep.subr.bf16.mxu0 %v307
  %403 = vmatpush1.bf16.msra.mxu0 %v306
  %404 = vmatprep.subr.bf16.mxu0 %v309
  %405 = vmatpush1.bf16.msra.mxu0 %v308
  %406 = vmatprep.subr.bf16.mxu0 %v311
  %407 = vmatpush1.bf16.msra.mxu0 %v310
  %408 = vmatprep.subr.bf16.mxu0 %v313
  %409 = vmatpush1.bf16.msra.mxu0 %v312
  %410 = vmatprep.subr.bf16.mxu0 %v315
  %411 = vmatpush1.bf16.msra.mxu0 %v314
  %412 = vmatprep.subr.bf16.mxu0 %v317
  %413 = vmatpush1.bf16.msra.mxu0 %v316
  %414 = vmatprep.subr.bf16.mxu0 %v319
  %415 = vmatpush1.bf16.msra.mxu0 %v318
  %416 = vmatprep.subr.bf16.mxu0 %v321
  %417 = vmatpush1.bf16.msra.mxu0 %v320
  %418 = vmatprep.subr.bf16.mxu0 %v323
  %419 = vmatpush1.bf16.msra.mxu0 %v322
  %420 = vmatprep.subr.bf16.mxu0 %v325
  %421 = vmatpush1.bf16.msra.mxu0 %v324
  %422 = vmatprep.subr.bf16.mxu0 %v327
  %423 = vmatpush1.bf16.msra.mxu0 %v326
  %424 = vmatprep.mubr.bf16.mxu0 %v141
  %425 = vmatmul.mubr.bf16.gmra.mrb[0].mxu0 %v140
  %v426 = vpop.f32.mrb[0].mxu0
  %v427 = vadd.f32 %v118, %v426
  %v428 = vpop.f32.mrb[0].mxu0
  %v429 = vadd.f32 %v122, %v428
  %v430 = vpop.f32.mrb[0].mxu0
  %v431 = vadd.f32 %v118, %v430
  %v432 = vpop.f32.mrb[0].mxu0
  %v433 = vadd.f32 %v122, %v432
  %434 = vmatprep.mubr.bf16.mxu0 %v144
  %435 = vmatmul.mubr.bf16.gmra.mrb[0].mxu0 %v143
  %v436 = vpop.f32.mrb[0].mxu0
  %v437 = vadd.f32 %v118, %v436
  %v438 = vpop.f32.mrb[0].mxu0
  %v439 = vadd.f32 %v122, %v438
  %v440 = vpop.f32.mrb[0].mxu0
  %v441 = vpop.f32.mrb[0].mxu0
  %442 = vdwg.mxu0
  %443 = vmatprep.subr.bf16.mxu0 %v329
  %444 = vmatpush1.bf16.msra.mxu0 %v328
  %445 = vmatprep.subr.bf16.mxu0 %v331
  %446 = vmatpush1.bf16.msra.mxu0 %v330
  %447 = vmatprep.subr.bf16.mxu0 %v333
  %448 = vmatpush1.bf16.msra.mxu0 %v332
  %449 = vmatprep.subr.bf16.mxu0 %v335
  %450 = vmatpush1.bf16.msra.mxu0 %v334
  %451 = vmatprep.subr.bf16.mxu0 %v337
  %452 = vmatpush1.bf16.msra.mxu0 %v336
  %453 = vmatprep.subr.bf16.mxu0 %v339
  %454 = vmatpush1.bf16.msra.mxu0 %v338
  %455 = vmatprep.subr.bf16.mxu0 %v341
  %456 = vmatpush1.bf16.msra.mxu0 %v340
  %457 = vmatprep.subr.bf16.mxu0 %v343
  %458 = vmatpush1.bf16.msra.mxu0 %v342
  %459 = vmatprep.subr.bf16.mxu0 0
  %460 = vmatpush1.bf16.msra.mxu0 0
  %461 = vmatprep.subr.bf16.mxu0 0
  %462 = vmatpush1.bf16.msra.mxu0 0
  %463 = vmatprep.subr.bf16.mxu0 0
  %464 = vmatpush1.bf16.msra.mxu0 0
  %465 = vmatprep.subr.bf16.mxu0 0
  %466 = vmatpush1.bf16.msra.mxu0 0
  %467 = vmatprep.subr.bf16.mxu0 0
  %468 = vmatpush1.bf16.msra.mxu0 0
  %469 = vmatprep.subr.bf16.mxu0 0
  %470 = vmatpush1.bf16.msra.mxu0 0
  %471 = vmatprep.subr.bf16.mxu0 0
  %472 = vmatpush1.bf16.msra.mxu0 0
  %473 = vmatprep.subr.bf16.mxu0 0
  %474 = vmatpush1.bf16.msra.mxu0 0
  %475 = vmatprep.mubr.bf16.mxu0 0
  %476 = vmatmul.mubr.bf16.gmra.mrb[0].mxu0 %v142
  %v477 = vpop.f32.mrb[0].mxu0
  %v478 = vadd.f32 %v427, %v477
  %v479 = vpop.f32.mrb[0].mxu0
  %v480 = vadd.f32 %v429, %v479
  %v481 = vpop.f32.mrb[0].mxu0
  %v482 = vadd.f32 %v431, %v481
  %v483 = vpop.f32.mrb[0].mxu0
  %v484 = vadd.f32 %v433, %v483
  %485 = vmatprep.mubr.bf16.mxu0 0
  %486 = vmatmul.mubr.bf16.gmra.mrb[0].mxu0 %v145
  %v487 = vpop.f32.mrb[0].mxu0
  %v488 = vadd.f32 %v437, %v487
  %v489 = vpop.f32.mrb[0].mxu0
  %v490 = vadd.f32 %v439, %v489
  %v491 = vpop.f32.mrb[0].mxu0
  %v492 = vpop.f32.mrb[0].mxu0
  %493 = vdwg.mxu0
  %vm494 = vcmp.ge.f32.partialorder %v478, 0.0
  %vm495 = vcmp.ge.f32.partialorder %v480, 0.0
  %vm496 = vcmp.ge.f32.partialorder %v482, 0.0
  %vm497 = vcmp.ge.f32.partialorder %v484, 0.0
  %vm498 = vcmp.ge.f32.partialorder %v488, 0.0
  %vm499 = vcmp.ge.f32.partialorder %v490, 0.0
  %v500 = vmul.f32 %v478, 0.02
  %v501 = vmul.f32 %v480, 0.02
  %v502 = vmul.f32 %v482, 0.02
  %v503 = vmul.f32 %v484, 0.02
  %v504 = vmul.f32 %v488, 0.02
  %v505 = vmul.f32 %v490, 0.02
  %v506 = vsel %vm494, %v478, %v500
  %v507 = vsel %vm495, %v480, %v501
  %v508 = vsel %vm496, %v482, %v502
  %v509 = vsel %vm497, %v484, %v503
  %v510 = vsel %vm498, %v488, %v504
  %v511 = vsel %vm499, %v490, %v505
  %v512 = vld [vmem:[%s3] sm:$0xf]
  %v513 = vld [vmem:[%s3 + $0x4] sm:$0xf]
  %v514 = vld [vmem:[%s3 + $0x8] sm:$0xf]
  %v515 = vld [vmem:[%s3 + $0xc] sm:$0xf]
  %v516 = vld [vmem:[%s3 + $0x10] sm:$0x3]
  %v517 = vpack.c.bf16 %v508, %v506
  %v518 = vpack.c.bf16 %v509, %v507
  %v519 = vpack.c.bf16 %v510, %v510
  %v520 = vpack.c.bf16 %v511, %v511
  %v526 = vunpack.c.l.b16 %v512
  %v527 = vunpack.c.l.b16 %v513
  %v528 = vunpack.c.l.b16 %v514
  %v529 = vunpack.c.l.b16 %v515
  %v530 = vunpack.c.l.b16 %v516
  %v531 = vpack.c.b16 %v527, %v526
  %v532 = vpack.c.b16 %v529, %v528
  %v533 = vpack.c.b16 %v530, %v530
  %vm534 = vcmask 146432
  %v536 = vsel %vm534, %v531, 0
  %v539 = vsel %vm534, %v532, 0
  %v542 = vsel %vm534, %v533, 0
  %vm544 = vcmask 1040384
  %v546 = vsel %vm544, %v519, 0
  %v549 = vsel %vm544, %v520, 0
  %551 = vmatprep.subr.bf16.mxu0 %v518
  %552 = vmatpush1.bf16.msra.mxu0 %v517
  %553 = vmatprep.subr.bf16.mxu0 %v549
  %554 = vmatpush1.bf16.msra.mxu0 %v546
  %555 = vmatprep.subr.bf16.mxu0 0
  %556 = vmatpush1.bf16.msra.mxu0 0
  %557 = vmatprep.subr.bf16.mxu0 0
  %558 = vmatpush1.bf16.msra.mxu0 0
  %559 = vmatprep.subr.bf16.mxu0 0
  %560 = vmatpush1.bf16.msra.mxu0 0
  %561 = vmatprep.subr.bf16.mxu0 0
  %562 = vmatpush1.bf16.msra.mxu0 0
  %563 = vmatprep.subr.bf16.mxu0 0
  %564 = vmatpush1.bf16.msra.mxu0 0
  %565 = vmatprep.subr.bf16.mxu0 0
  %566 = vmatpush1.bf16.msra.mxu0 0
  %567 = vmatprep.subr.bf16.mxu0 0
  %568 = vmatpush1.bf16.msra.mxu0 0
  %569 = vmatprep.subr.bf16.mxu0 0
  %570 = vmatpush1.bf16.msra.mxu0 0
  %571 = vmatprep.subr.bf16.mxu0 0
  %572 = vmatpush1.bf16.msra.mxu0 0
  %573 = vmatprep.subr.bf16.mxu0 0
  %574 = vmatpush1.bf16.msra.mxu0 0
  %575 = vmatprep.subr.bf16.mxu0 0
  %576 = vmatpush1.bf16.msra.mxu0 0
  %577 = vmatprep.subr.bf16.mxu0 0
  %578 = vmatpush1.bf16.msra.mxu0 0
  %579 = vmatprep.subr.bf16.mxu0 0
  %580 = vmatpush1.bf16.msra.mxu0 0
  %581 = vmatprep.subr.bf16.mxu0 0
  %582 = vmatpush1.bf16.msra.mxu0 0
  %583 = vmatprep.mubr.bf16.mxu0 0
  %584 = vmatmul.mubr.bf16.gmra.mrb[0].mxu0 %v536
  %v585 = vpop.f32.mrb[0].mxu0
  %v586 = vadd.f32 0.0, %v585
  %v587 = vpop.f32.mrb[0].mxu0
  %v588 = vadd.f32 0.0, %v587
  %v589 = vpop.f32.mrb[0].mxu0
  %v590 = vadd.f32 0.0, %v589
  %v591 = vpop.f32.mrb[0].mxu0
  %v592 = vadd.f32 0.0, %v591
  %593 = vmatprep.mubr.bf16.mxu0 0
  %594 = vmatmul.mubr.bf16.gmra.mrb[0].mxu0 %v539
  %v595 = vpop.f32.mrb[0].mxu0
  %v596 = vadd.f32 0.0, %v595
  %v597 = vpop.f32.mrb[0].mxu0
  %v598 = vadd.f32 0.0, %v597
  %v599 = vpop.f32.mrb[0].mxu0
  %v600 = vadd.f32 0.0, %v599
  %v601 = vpop.f32.mrb[0].mxu0
  %v602 = vadd.f32 0.0, %v601
  %603 = vmatprep.mubr.bf16.mxu0 0
  %604 = vmatmul.mubr.bf16.gmra.mrb[0].mxu0 %v542
  %v605 = vpop.f32.mrb[0].mxu0
  %v606 = vadd.f32 0.0, %v605
  %v607 = vpop.f32.mrb[0].mxu0
  %v608 = vadd.f32 0.0, %v607
  %v609 = vpop.f32.mrb[0].mxu0
  %v610 = vpop.f32.mrb[0].mxu0
  %611 = vdwg.mxu0
  %v612 = vpack.c.bf16 %v590, %v586
  %v613 = vpack.c.bf16 %v592, %v588
  %v614 = vld [vmem:[%s4] sm:$0xff]
  %v615 = vld [vmem:[%s4 + $0x8] sm:$0xff]
  %v616 = vld [vmem:[%s4 + $0x10] sm:$0xff]
  %v617 = vld [vmem:[%s4 + $0x18] sm:$0xff]
  %v618 = vld [vmem:[%s4 + $0x20] sm:$0xff]
  %v619 = vld [vmem:[%s4 + $0x28] sm:$0xff]
  %v620 = vld [vmem:[%s4 + $0x30] sm:$0xff]
  %v621 = vld [vmem:[%s4 + $0x38] sm:$0xff]
  %v622 = vld [vmem:[%s4 + $0x40] sm:$0xff]
  %v623 = vld [vmem:[%s4 + $0x48] sm:$0xff]
  %v624 = vld [vmem:[%s4 + $0x50] sm:$0xff]
  %v625 = vld [vmem:[%s4 + $0x58] sm:$0xff]
  %v626 = vld [vmem:[%s4 + $0x60] sm:$0xff]
  %v627 = vld [vmem:[%s4 + $0x68] sm:$0xff]
  %v628 = vld [vmem:[%s4 + $0x70] sm:$0xff]
  %v629 = vld [vmem:[%s4 + $0x78] sm:$0xff]
  %v630 = vld [vmem:[%s4 + $0x80] sm:$0xff]
  %v631 = vld [vmem:[%s4 + $0x88] sm:$0xff]
  %v632 = vpack.c.bf16 %v596, %v590
  %v633 = vpack.c.bf16 %v598, %v592
  %s634 = scalar_lea.vmem %s4, 144
  %v635 = vld [vmem:[%s634] sm:$0xff]
  %v636 = vld [vmem:[%s634 + $0x8] sm:$0xff]
  %v637 = vld [vmem:[%s634 + $0x10] sm:$0xff]
  %v638 = vld [vmem:[%s634 + $0x18] sm:$0xff]
  %v639 = vld [vmem:[%s634 + $0x20] sm:$0xff]
  %v640 = vld [vmem:[%s634 + $0x28] sm:$0xff]
  %v641 = vld [vmem:[%s634 + $0x30] sm:$0xff]
  %v642 = vld [vmem:[%s634 + $0x38] sm:$0xff]
  %v643 = vld [vmem:[%s634 + $0x40] sm:$0xff]
  %v644 = vld [vmem:[%s634 + $0x48] sm:$0xff]
  %v645 = vld [vmem:[%s634 + $0x50] sm:$0xff]
  %v646 = vld [vmem:[%s634 + $0x58] sm:$0xff]
  %v647 = vld [vmem:[%s634 + $0x60] sm:$0xff]
  %v648 = vld [vmem:[%s634 + $0x68] sm:$0xff]
  %v649 = vld [vmem:[%s634 + $0x70] sm:$0xff]
  %v650 = vld [vmem:[%s634 + $0x78] sm:$0xff]
  %v651 = vld [vmem:[%s634 + $0x80] sm:$0xff]
  %v652 = vld [vmem:[%s634 + $0x88] sm:$0xff]
  %v654 = vshrl.u32 %v632, 16
  %v656 = vshll.u32 %v632, 16
  %v658 = vrot.slane %v656, 1
  %v659 = vor.u32 %v654, %v658
  %v661 = vshrl.u32 %v633, 16
  %v663 = vshll.u32 %v633, 16
  %v665 = vrot.slane %v663, 1
  %v666 = vor.u32 %v661, %v665
  %v686 = vunpack.c.l.b16 %v635
  %v687 = vunpack.c.h.b16 %v635
  %v688 = vunpack.c.l.b16 %v636
  %v689 = vunpack.c.h.b16 %v636
  %v690 = vunpack.c.l.b16 %v637
  %v691 = vunpack.c.h.b16 %v637
  %v692 = vunpack.c.l.b16 %v638
  %v693 = vunpack.c.h.b16 %v638
  %v694 = vunpack.c.l.b16 %v639
  %v695 = vunpack.c.h.b16 %v639
  %v696 = vunpack.c.l.b16 %v640
  %v697 = vunpack.c.h.b16 %v640
  %v698 = vunpack.c.l.b16 %v641
  %v699 = vunpack.c.h.b16 %v641
  %v700 = vunpack.c.l.b16 %v642
  %v701 = vunpack.c.h.b16 %v642
  %v702 = vunpack.c.l.b16 %v643
  %v703 = vunpack.c.h.b16 %v643
  %v704 = vunpack.c.l.b16 %v644
  %v705 = vunpack.c.h.b16 %v644
  %v706 = vunpack.c.l.b16 %v645
  %v707 = vunpack.c.h.b16 %v645
  %v708 = vunpack.c.l.b16 %v646
  %v709 = vunpack.c.h.b16 %v646
  %v710 = vunpack.c.l.b16 %v647
  %v711 = vunpack.c.h.b16 %v647
  %v712 = vunpack.c.l.b16 %v648
  %v713 = vunpack.c.h.b16 %v648
  %v714 = vunpack.c.l.b16 %v649
  %v715 = vunpack.c.h.b16 %v649
  %v716 = vunpack.c.l.b16 %v650
  %v717 = vunpack.c.h.b16 %v650
  %v718 = vunpack.c.l.b16 %v651
  %v719 = vunpack.c.h.b16 %v651
  %v720 = vunpack.c.l.b16 %v652
  %v721 = vunpack.c.h.b16 %v652
  %v722 = vpack.c.b16 %v688, %v686
  %v723 = vpack.c.b16 %v689, %v687
  %v724 = vpack.c.b16 %v692, %v690
  %v725 = vpack.c.b16 %v693, %v691
  %v726 = vpack.c.b16 %v696, %v694
  %v727 = vpack.c.b16 %v697, %v695
  %v728 = vpack.c.b16 %v700, %v698
  %v729 = vpack.c.b16 %v701, %v699
  %v730 = vpack.c.b16 %v704, %v702
  %v731 = vpack.c.b16 %v705, %v703
  %v732 = vpack.c.b16 %v708, %v706
  %v733 = vpack.c.b16 %v709, %v707
  %v734 = vpack.c.b16 %v712, %v710
  %v735 = vpack.c.b16 %v713, %v711
  %v736 = vpack.c.b16 %v716, %v714
  %v737 = vpack.c.b16 %v717, %v715
  %v738 = vpack.c.b16 %v720, %v718
  %v739 = vpack.c.b16 %v721, %v719
  %vm758 = vcmask 130048
  %v760 = vsel %vm758, %v666, 0
  %762 = vmatprep.subr.bf16.mxu0 %v723
  %763 = vmatpush1.bf16.msra.mxu0 %v722
  %764 = vmatprep.subr.bf16.mxu0 %v725
  %765 = vmatpush1.bf16.msra.mxu0 %v724
  %766 = vmatprep.subr.bf16.mxu0 %v727
  %767 = vmatpush1.bf16.msra.mxu0 %v726
  %768 = vmatprep.subr.bf16.mxu0 %v729
  %769 = vmatpush1.bf16.msra.mxu0 %v728
  %770 = vmatprep.subr.bf16.mxu0 %v731
  %771 = vmatpush1.bf16.msra.mxu0 %v730
  %772 = vmatprep.subr.bf16.mxu0 %v733
  %773 = vmatpush1.bf16.msra.mxu0 %v732
  %774 = vmatprep.subr.bf16.mxu0 %v735
  %775 = vmatpush1.bf16.msra.mxu0 %v734
  %776 = vmatprep.subr.bf16.mxu0 %v737
  %777 = vmatpush1.bf16.msra.mxu0 %v736
  %778 = vmatprep.subr.bf16.mxu0 %v739
  %779 = vmatpush1.bf16.msra.mxu0 %v738
  %780 = vmatprep.subr.bf16.mxu0 0
  %781 = vmatpush1.bf16.msra.mxu0 0
  %782 = vmatprep.subr.bf16.mxu0 0
  %783 = vmatpush1.bf16.msra.mxu0 0
  %784 = vmatprep.subr.bf16.mxu0 0
  %785 = vmatpush1.bf16.msra.mxu0 0
  %786 = vmatprep.subr.bf16.mxu0 0
  %787 = vmatpush1.bf16.msra.mxu0 0
  %788 = vmatprep.subr.bf16.mxu0 0
  %789 = vmatpush1.bf16.msra.mxu0 0
  %790 = vmatprep.subr.bf16.mxu0 0
  %791 = vmatpush1.bf16.msra.mxu0 0
  %792 = vmatprep.subr.bf16.mxu0 0
  %793 = vmatpush1.bf16.msra.mxu0 0
  %794 = vmatprep.mubr.bf16.mxu0 %v760
  %795 = vmatmul.mubr.bf16.gmra.mrb[0].mxu0 %v659
  %v796 = vpop.f32.mrb[0].mxu0
  %v797 = vadd.f32 0.0, %v796
  %v798 = vpop.f32.mrb[0].mxu0
  %v799 = vadd.f32 0.0, %v798
  %v800 = vpop.f32.mrb[0].mxu0
  %v801 = vadd.f32 0.0, %v800
  %v802 = vpop.f32.mrb[0].mxu0
  %v803 = vadd.f32 0.0, %v802
  %804 = vdwg.mxu0
  %v823 = vunpack.c.l.b16 %v614
  %v824 = vunpack.c.h.b16 %v614
  %v825 = vunpack.c.l.b16 %v615
  %v826 = vunpack.c.h.b16 %v615
  %v827 = vunpack.c.l.b16 %v616
  %v828 = vunpack.c.h.b16 %v616
  %v829 = vunpack.c.l.b16 %v617
  %v830 = vunpack.c.h.b16 %v617
  %v831 = vunpack.c.l.b16 %v618
  %v832 = vunpack.c.h.b16 %v618
  %v833 = vunpack.c.l.b16 %v619
  %v834 = vunpack.c.h.b16 %v619
  %v835 = vunpack.c.l.b16 %v620
  %v836 = vunpack.c.h.b16 %v620
  %v837 = vunpack.c.l.b16 %v621
  %v838 = vunpack.c.h.b16 %v621
  %v839 = vunpack.c.l.b16 %v622
  %v840 = vunpack.c.h.b16 %v622
  %v841 = vunpack.c.l.b16 %v623
  %v842 = vunpack.c.h.b16 %v623
  %v843 = vunpack.c.l.b16 %v624
  %v844 = vunpack.c.h.b16 %v624
  %v845 = vunpack.c.l.b16 %v625
  %v846 = vunpack.c.h.b16 %v625
  %v847 = vunpack.c.l.b16 %v626
  %v848 = vunpack.c.h.b16 %v626
  %v849 = vunpack.c.l.b16 %v627
  %v850 = vunpack.c.h.b16 %v627
  %v851 = vunpack.c.l.b16 %v628
  %v852 = vunpack.c.h.b16 %v628
  %v853 = vunpack.c.l.b16 %v629
  %v854 = vunpack.c.h.b16 %v629
  %v855 = vunpack.c.l.b16 %v630
  %v856 = vunpack.c.h.b16 %v630
  %v857 = vunpack.c.l.b16 %v631
  %v858 = vunpack.c.h.b16 %v631
  %v859 = vpack.c.b16 %v825, %v823
  %v860 = vpack.c.b16 %v826, %v824
  %v861 = vpack.c.b16 %v829, %v827
  %v862 = vpack.c.b16 %v830, %v828
  %v863 = vpack.c.b16 %v833, %v831
  %v864 = vpack.c.b16 %v834, %v832
  %v865 = vpack.c.b16 %v837, %v835
  %v866 = vpack.c.b16 %v838, %v836
  %v867 = vpack.c.b16 %v841, %v839
  %v868 = vpack.c.b16 %v842, %v840
  %v869 = vpack.c.b16 %v845, %v843
  %v870 = vpack.c.b16 %v846, %v844
  %v871 = vpack.c.b16 %v849, %v847
  %v872 = vpack.c.b16 %v850, %v848
  %v873 = vpack.c.b16 %v853, %v851
  %v874 = vpack.c.b16 %v854, %v852
  %v875 = vpack.c.b16 %v857, %v855
  %v876 = vpack.c.b16 %v858, %v856
  %v896 = vsel %vm758, %v613, 0
  %898 = vmatprep.subr.bf16.mxu0 %v860
  %899 = vmatpush1.bf16.msra.mxu0 %v859
  %900 = vmatprep.subr.bf16.mxu0 %v862
  %901 = vmatpush1.bf16.msra.mxu0 %v861
  %902 = vmatprep.subr.bf16.mxu0 %v864
  %903 = vmatpush1.bf16.msra.mxu0 %v863
  %904 = vmatprep.subr.bf16.mxu0 %v866
  %905 = vmatpush1.bf16.msra.mxu0 %v865
  %906 = vmatprep.subr.bf16.mxu0 %v868
  %907 = vmatpush1.bf16.msra.mxu0 %v867
  %908 = vmatprep.subr.bf16.mxu0 %v870
  %909 = vmatpush1.bf16.msra.mxu0 %v869
  %910 = vmatprep.subr.bf16.mxu0 %v872
  %911 = vmatpush1.bf16.msra.mxu0 %v871
  %912 = vmatprep.subr.bf16.mxu0 %v874
  %913 = vmatpush1.bf16.msra.mxu0 %v873
  %914 = vmatprep.subr.bf16.mxu0 %v876
  %915 = vmatpush1.bf16.msra.mxu0 %v875
  %916 = vmatprep.subr.bf16.mxu0 0
  %917 = vmatpush1.bf16.msra.mxu0 0
  %918 = vmatprep.subr.bf16.mxu0 0
  %919 = vmatpush1.bf16.msra.mxu0 0
  %920 = vmatprep.subr.bf16.mxu0 0
  %921 = vmatpush1.bf16.msra.mxu0 0
  %922 = vmatprep.subr.bf16.mxu0 0
  %923 = vmatpush1.bf16.msra.mxu0 0
  %924 = vmatprep.subr.bf16.mxu0 0
  %925 = vmatpush1.bf16.msra.mxu0 0
  %926 = vmatprep.subr.bf16.mxu0 0
  %927 = vmatpush1.bf16.msra.mxu0 0
  %928 = vmatprep.subr.bf16.mxu0 0
  %929 = vmatpush1.bf16.msra.mxu0 0
  %930 = vmatprep.mubr.bf16.mxu0 %v896
  %931 = vmatmul.mubr.bf16.gmra.mrb[0].mxu0 %v612
  %v932 = vpop.f32.mrb[0].mxu0
  %v933 = vadd.f32 %v797, %v932
  %v934 = vpop.f32.mrb[0].mxu0
  %v935 = vadd.f32 %v799, %v934
  %v936 = vpop.f32.mrb[0].mxu0
  %v937 = vadd.f32 %v801, %v936
  %v938 = vpop.f32.mrb[0].mxu0
  %v939 = vadd.f32 %v803, %v938
  %940 = vdwg.mxu0
  %v941 = vpack.c.bf16 %v600, %v596
  %v942 = vpack.c.bf16 %v602, %v598
  %s943 = scalar_lea.vmem %s4, 288
  %v944 = vld [vmem:[%s943] sm:$0xff]
  %v945 = vld [vmem:[%s943 + $0x8] sm:$0xff]
  %v946 = vld [vmem:[%s943 + $0x10] sm:$0xff]
  %v947 = vld [vmem:[%s943 + $0x18] sm:$0xff]
  %v948 = vld [vmem:[%s943 + $0x20] sm:$0xff]
  %v949 = vld [vmem:[%s943 + $0x28] sm:$0xff]
  %v950 = vld [vmem:[%s943 + $0x30] sm:$0xff]
  %v951 = vld [vmem:[%s943 + $0x38] sm:$0xff]
  %v952 = vld [vmem:[%s943 + $0x40] sm:$0xff]
  %v953 = vld [vmem:[%s943 + $0x48] sm:$0xff]
  %v954 = vld [vmem:[%s943 + $0x50] sm:$0xff]
  %v955 = vld [vmem:[%s943 + $0x58] sm:$0xff]
  %v956 = vld [vmem:[%s943 + $0x60] sm:$0xff]
  %v957 = vld [vmem:[%s943 + $0x68] sm:$0xff]
  %v958 = vld [vmem:[%s943 + $0x70] sm:$0xff]
  %v959 = vld [vmem:[%s943 + $0x78] sm:$0xff]
  %v960 = vld [vmem:[%s943 + $0x80] sm:$0xff]
  %v961 = vld [vmem:[%s943 + $0x88] sm:$0xff]
  %v964 = vrot.slane %v941, 1
  %v965 = vrot.slane %v942, 1
  %v985 = vunpack.c.l.b16 %v944
  %v986 = vunpack.c.h.b16 %v944
  %v987 = vunpack.c.l.b16 %v945
  %v988 = vunpack.c.h.b16 %v945
  %v989 = vunpack.c.l.b16 %v946
  %v990 = vunpack.c.h.b16 %v946
  %v991 = vunpack.c.l.b16 %v947
  %v992 = vunpack.c.h.b16 %v947
  %v993 = vunpack.c.l.b16 %v948
  %v994 = vunpack.c.h.b16 %v948
  %v995 = vunpack.c.l.b16 %v949
  %v996 = vunpack.c.h.b16 %v949
  %v997 = vunpack.c.l.b16 %v950
  %v998 = vunpack.c.h.b16 %v950
  %v999 = vunpack.c.l.b16 %v951
  %v1000 = vunpack.c.h.b16 %v951
  %v1001 = vunpack.c.l.b16 %v952
  %v1002 = vunpack.c.h.b16 %v952
  %v1003 = vunpack.c.l.b16 %v953
  %v1004 = vunpack.c.h.b16 %v953
  %v1005 = vunpack.c.l.b16 %v954
  %v1006 = vunpack.c.h.b16 %v954
  %v1007 = vunpack.c.l.b16 %v955
  %v1008 = vunpack.c.h.b16 %v955
  %v1009 = vunpack.c.l.b16 %v956
  %v1010 = vunpack.c.h.b16 %v956
  %v1011 = vunpack.c.l.b16 %v957
  %v1012 = vunpack.c.h.b16 %v957
  %v1013 = vunpack.c.l.b16 %v958
  %v1014 = vunpack.c.h.b16 %v958
  %v1015 = vunpack.c.l.b16 %v959
  %v1016 = vunpack.c.h.b16 %v959
  %v1017 = vunpack.c.l.b16 %v960
  %v1018 = vunpack.c.h.b16 %v960
  %v1019 = vunpack.c.l.b16 %v961
  %v1020 = vunpack.c.h.b16 %v961
  %v1021 = vpack.c.b16 %v987, %v985
  %v1022 = vpack.c.b16 %v988, %v986
  %v1023 = vpack.c.b16 %v991, %v989
  %v1024 = vpack.c.b16 %v992, %v990
  %v1025 = vpack.c.b16 %v995, %v993
  %v1026 = vpack.c.b16 %v996, %v994
  %v1027 = vpack.c.b16 %v999, %v997
  %v1028 = vpack.c.b16 %v1000, %v998
  %v1029 = vpack.c.b16 %v1003, %v1001
  %v1030 = vpack.c.b16 %v1004, %v1002
  %v1031 = vpack.c.b16 %v1007, %v1005
  %v1032 = vpack.c.b16 %v1008, %v1006
  %v1033 = vpack.c.b16 %v1011, %v1009
  %v1034 = vpack.c.b16 %v1012, %v1010
  %v1035 = vpack.c.b16 %v1015, %v1013
  %v1036 = vpack.c.b16 %v1016, %v1014
  %v1037 = vpack.c.b16 %v1019, %v1017
  %v1038 = vpack.c.b16 %v1020, %v1018
  %v1058 = vsel %vm758, %v965, 0
  %1060 = vmatprep.subr.bf16.mxu0 %v1022
  %1061 = vmatpush1.bf16.msra.mxu0 %v1021
  %1062 = vmatprep.subr.bf16.mxu0 %v1024
  %1063 = vmatpush1.bf16.msra.mxu0 %v1023
  %1064 = vmatprep.subr.bf16.mxu0 %v1026
  %1065 = vmatpush1.bf16.msra.mxu0 %v1025
  %1066 = vmatprep.subr.bf16.mxu0 %v1028
  %1067 = vmatpush1.bf16.msra.mxu0 %v1027
  %1068 = vmatprep.subr.bf16.mxu0 %v1030
  %1069 = vmatpush1.bf16.msra.mxu0 %v1029
  %1070 = vmatprep.subr.bf16.mxu0 %v1032
  %1071 = vmatpush1.bf16.msra.mxu0 %v1031
  %1072 = vmatprep.subr.bf16.mxu0 %v1034
  %1073 = vmatpush1.bf16.msra.mxu0 %v1033
  %1074 = vmatprep.subr.bf16.mxu0 %v1036
  %1075 = vmatpush1.bf16.msra.mxu0 %v1035
  %1076 = vmatprep.subr.bf16.mxu0 %v1038
  %1077 = vmatpush1.bf16.msra.mxu0 %v1037
  %1078 = vmatprep.subr.bf16.mxu0 0
  %1079 = vmatpush1.bf16.msra.mxu0 0
  %1080 = vmatprep.subr.bf16.mxu0 0
  %1081 = vmatpush1.bf16.msra.mxu0 0
  %1082 = vmatprep.subr.bf16.mxu0 0
  %1083 = vmatpush1.bf16.msra.mxu0 0
  %1084 = vmatprep.subr.bf16.mxu0 0
  %1085 = vmatpush1.bf16.msra.mxu0 0
  %1086 = vmatprep.subr.bf16.mxu0 0
  %1087 = vmatpush1.bf16.msra.mxu0 0
  %1088 = vmatprep.subr.bf16.mxu0 0
  %1089 = vmatpush1.bf16.msra.mxu0 0
  %1090 = vmatprep.subr.bf16.mxu0 0
  %1091 = vmatpush1.bf16.msra.mxu0 0
  %1092 = vmatprep.mubr.bf16.mxu0 %v1058
  %1093 = vmatmul.mubr.bf16.gmra.mrb[0].mxu0 %v964
  %v1094 = vpop.f32.mrb[0].mxu0
  %v1095 = vadd.f32 0.0, %v1094
  %v1096 = vpop.f32.mrb[0].mxu0
  %v1097 = vadd.f32 0.0, %v1096
  %v1098 = vpop.f32.mrb[0].mxu0
  %v1099 = vadd.f32 0.0, %v1098
  %v1100 = vpop.f32.mrb[0].mxu0
  %v1101 = vadd.f32 0.0, %v1100
  %1102 = vdwg.mxu0
  %v1103 = vadd.f32 %v933, %v1095
  %v1104 = vadd.f32 %v935, %v1097
  %v1105 = vadd.f32 %v937, %v1099
  %v1106 = vadd.f32 %v939, %v1101
  %v1107 = vpack.c.bf16 %v606, %v600
  %v1108 = vpack.c.bf16 %v608, %v602
  %s1109 = scalar_lea.vmem %s4, 432
  %v1110 = vld [vmem:[%s1109] sm:$0xff]
  %v1111 = vld [vmem:[%s1109 + $0x8] sm:$0xff]
  %v1112 = vld [vmem:[%s1109 + $0x10] sm:$0xff]
  %v1113 = vld [vmem:[%s1109 + $0x18] sm:$0xff]
  %v1114 = vld [vmem:[%s1109 + $0x20] sm:$0xff]
  %v1115 = vld [vmem:[%s1109 + $0x28] sm:$0xff]
  %v1116 = vld [vmem:[%s1109 + $0x30] sm:$0xff]
  %v1117 = vld [vmem:[%s1109 + $0x38] sm:$0xff]
  %v1118 = vld [vmem:[%s1109 + $0x40] sm:$0xff]
  %v1119 = vld [vmem:[%s1109 + $0x48] sm:$0xff]
  %v1120 = vld [vmem:[%s1109 + $0x50] sm:$0xff]
  %v1121 = vld [vmem:[%s1109 + $0x58] sm:$0xff]
  %v1122 = vld [vmem:[%s1109 + $0x60] sm:$0xff]
  %v1123 = vld [vmem:[%s1109 + $0x68] sm:$0xff]
  %v1124 = vld [vmem:[%s1109 + $0x70] sm:$0xff]
  %v1125 = vld [vmem:[%s1109 + $0x78] sm:$0xff]
  %v1126 = vld [vmem:[%s1109 + $0x80] sm:$0xff]
  %v1127 = vld [vmem:[%s1109 + $0x88] sm:$0xff]
  %v1129 = vshrl.u32 %v1107, 16
  %v1131 = vrot.slane %v1129, 1
  %v1132 = vshll.u32 %v1107, 16
  %v1134 = vrot.slane %v1132, 2
  %v1135 = vor.u32 %v1131, %v1134
  %v1137 = vshrl.u32 %v1108, 16
  %v1139 = vrot.slane %v1137, 1
  %v1140 = vshll.u32 %v1108, 16
  %v1142 = vrot.slane %v1140, 2
  %v1143 = vor.u32 %v1139, %v1142
  %v1163 = vunpack.c.l.b16 %v1110
  %v1164 = vunpack.c.h.b16 %v1110
  %v1165 = vunpack.c.l.b16 %v1111
  %v1166 = vunpack.c.h.b16 %v1111
  %v1167 = vunpack.c.l.b16 %v1112
  %v1168 = vunpack.c.h.b16 %v1112
  %v1169 = vunpack.c.l.b16 %v1113
  %v1170 = vunpack.c.h.b16 %v1113
  %v1171 = vunpack.c.l.b16 %v1114
  %v1172 = vunpack.c.h.b16 %v1114
  %v1173 = vunpack.c.l.b16 %v1115
  %v1174 = vunpack.c.h.b16 %v1115
  %v1175 = vunpack.c.l.b16 %v1116
  %v1176 = vunpack.c.h.b16 %v1116
  %v1177 = vunpack.c.l.b16 %v1117
  %v1178 = vunpack.c.h.b16 %v1117
  %v1179 = vunpack.c.l.b16 %v1118
  %v1180 = vunpack.c.h.b16 %v1118
  %v1181 = vunpack.c.l.b16 %v1119
  %v1182 = vunpack.c.h.b16 %v1119
  %v1183 = vunpack.c.l.b16 %v1120
  %v1184 = vunpack.c.h.b16 %v1120
  %v1185 = vunpack.c.l.b16 %v1121
  %v1186 = vunpack.c.h.b16 %v1121
  %v1187 = vunpack.c.l.b16 %v1122
  %v1188 = vunpack.c.h.b16 %v1122
  %v1189 = vunpack.c.l.b16 %v1123
  %v1190 = vunpack.c.h.b16 %v1123
  %v1191 = vunpack.c.l.b16 %v1124
  %v1192 = vunpack.c.h.b16 %v1124
  %v1193 = vunpack.c.l.b16 %v1125
  %v1194 = vunpack.c.h.b16 %v1125
  %v1195 = vunpack.c.l.b16 %v1126
  %v1196 = vunpack.c.h.b16 %v1126
  %v1197 = vunpack.c.l.b16 %v1127
  %v1198 = vunpack.c.h.b16 %v1127
  %v1199 = vpack.c.b16 %v1165, %v1163
  %v1200 = vpack.c.b16 %v1166, %v1164
  %v1201 = vpack.c.b16 %v1169, %v1167
  %v1202 = vpack.c.b16 %v1170, %v1168
  %v1203 = vpack.c.b16 %v1173, %v1171
  %v1204 = vpack.c.b16 %v1174, %v1172
  %v1205 = vpack.c.b16 %v1177, %v1175
  %v1206 = vpack.c.b16 %v1178, %v1176
  %v1207 = vpack.c.b16 %v1181, %v1179
  %v1208 = vpack.c.b16 %v1182, %v1180
  %v1209 = vpack.c.b16 %v1185, %v1183
  %v1210 = vpack.c.b16 %v1186, %v1184
  %v1211 = vpack.c.b16 %v1189, %v1187
  %v1212 = vpack.c.b16 %v1190, %v1188
  %v1213 = vpack.c.b16 %v1193, %v1191
  %v1214 = vpack.c.b16 %v1194, %v1192
  %v1215 = vpack.c.b16 %v1197, %v1195
  %v1216 = vpack.c.b16 %v1198, %v1196
  %v1236 = vsel %vm758, %v1143, 0
  %1238 = vmatprep.subr.bf16.mxu0 %v1200
  %1239 = vmatpush1.bf16.msra.mxu0 %v1199
  %1240 = vmatprep.subr.bf16.mxu0 %v1202
  %1241 = vmatpush1.bf16.msra.mxu0 %v1201
  %1242 = vmatprep.subr.bf16.mxu0 %v1204
  %1243 = vmatpush1.bf16.msra.mxu0 %v1203
  %1244 = vmatprep.subr.bf16.mxu0 %v1206
  %1245 = vmatpush1.bf16.msra.mxu0 %v1205
  %1246 = vmatprep.subr.bf16.mxu0 %v1208
  %1247 = vmatpush1.bf16.msra.mxu0 %v1207
  %1248 = vmatprep.subr.bf16.mxu0 %v1210
  %1249 = vmatpush1.bf16.msra.mxu0 %v1209
  %1250 = vmatprep.subr.bf16.mxu0 %v1212
  %1251 = vmatpush1.bf16.msra.mxu0 %v1211
  %1252 = vmatprep.subr.bf16.mxu0 %v1214
  %1253 = vmatpush1.bf16.msra.mxu0 %v1213
  %1254 = vmatprep.subr.bf16.mxu0 %v1216
  %1255 = vmatpush1.bf16.msra.mxu0 %v1215
  %1256 = vmatprep.subr.bf16.mxu0 0
  %1257 = vmatpush1.bf16.msra.mxu0 0
  %1258 = vmatprep.subr.bf16.mxu0 0
  %1259 = vmatpush1.bf16.msra.mxu0 0
  %1260 = vmatprep.subr.bf16.mxu0 0
  %1261 = vmatpush1.bf16.msra.mxu0 0
  %1262 = vmatprep.subr.bf16.mxu0 0
  %1263 = vmatpush1.bf16.msra.mxu0 0
  %1264 = vmatprep.subr.bf16.mxu0 0
  %1265 = vmatpush1.bf16.msra.mxu0 0
  %1266 = vmatprep.subr.bf16.mxu0 0
  %1267 = vmatpush1.bf16.msra.mxu0 0
  %1268 = vmatprep.subr.bf16.mxu0 0
  %1269 = vmatpush1.bf16.msra.mxu0 0
  %1270 = vmatprep.mubr.bf16.mxu0 %v1236
  %1271 = vmatmul.mubr.bf16.gmra.mrb[0].mxu0 %v1135
  %v1272 = vpop.f32.mrb[0].mxu0
  %v1273 = vadd.f32 0.0, %v1272
  %v1274 = vpop.f32.mrb[0].mxu0
  %v1275 = vadd.f32 0.0, %v1274
  %v1276 = vpop.f32.mrb[0].mxu0
  %v1277 = vadd.f32 0.0, %v1276
  %v1278 = vpop.f32.mrb[0].mxu0
  %v1279 = vadd.f32 0.0, %v1278
  %1280 = vdwg.mxu0
  %v1281 = vadd.f32 %v1103, %v1273
  %v1282 = vadd.f32 %v1104, %v1275
  %v1283 = vadd.f32 %v1105, %v1277
  %v1284 = vadd.f32 %v1106, %v1279
  %v1285 = vld [vmem:[%s5] sm:$0x3]
  %v1287 = vlaneseq
  %v1288 = vshrl.u32 %v1287, 7
  %v1289 = vsub.s32 0, %v1288
  %v1290 = vrot.slane %v1285, %v1289
  %v1291 = vlaneseq
  %v1292 = vshrl.u32 %v1291, 7
  %v1293 = vsub.s32 1, %v1292
  %v1294 = vrot.slane %v1285, %v1293
  %v1297 = vadd.f32 %v1281, %v1290
  %v1298 = vadd.f32 %v1282, %v1294
  %v1299 = vadd.f32 %v1283, %v1290
  %v1300 = vadd.f32 %v1284, %v1294
  %v1301 = vsel %vm544, %v1299, 0.0
  %v1302 = vadd.f32 %v1297, %v1301
  %v1303 = vrot.slane %v1302, 4
  %v1304 = vadd.f32 %v1302, %v1303
  %v1305 = vrot.slane %v1304, 2
  %v1306 = vadd.f32 %v1304, %v1305
  %v1307 = vrot.slane %v1306, 1
  %v1308 = vadd.f32 %v1306, %v1307
  %v1309 = vsel %vm758, %v1298, 0.0
  %vm1310 = vcmask 122880
  %v1311 = vsel %vm1310, %v1300, 0.0
  %v1312 = vadd.f32 %v1309, %v1311
  %v1313 = vrot.slane %v1312, 4
  %v1314 = vadd.f32 %v1312, %v1313
  %v1315 = vrot.slane %v1314, 2
  %v1316 = vadd.f32 %v1314, %v1315
  %v1317 = vrot.slane %v1316, 1
  %v1318 = vadd.f32 %v1316, %v1317
  %v1319 = vmul.f32 %v1297, %v1297
  %v1320 = vmul.f32 %v1298, %v1298
  %v1321 = vmul.f32 %v1299, %v1299
  %v1322 = vmul.f32 %v1300, %v1300
  %v1323 = vsel %vm544, %v1321, 0.0
  %v1324 = vadd.f32 %v1319, %v1323
  %v1325 = vrot.slane %v1324, 4
  %v1326 = vadd.f32 %v1324, %v1325
  %v1327 = vrot.slane %v1326, 2
  %v1328 = vadd.f32 %v1326, %v1327
  %v1329 = vrot.slane %v1328, 1
  %v1330 = vadd.f32 %v1328, %v1329
  %v1331 = vsel %vm758, %v1320, 0.0
  %v1332 = vsel %vm1310, %v1322, 0.0
  %v1333 = vadd.f32 %v1331, %v1332
  %v1334 = vrot.slane %v1333, 4
  %v1335 = vadd.f32 %v1333, %v1334
  %v1336 = vrot.slane %v1335, 2
  %v1337 = vadd.f32 %v1335, %v1336
  %v1338 = vrot.slane %v1337, 1
  %v1339 = vadd.f32 %v1337, %v1338
  %s1340 = scalar_lea.vmem %s0, 36
  %v1341 = vld [vmem:[%s1340] sm:$0xff]
  %v1342 = vld [vmem:[%s1340 + $0x8] sm:$0xf]
  %v1343 = vld [vmem:[%s1340 + $0xc] sm:$0xff]
  %v1344 = vld [vmem:[%s1340 + $0x14] sm:$0xf]
  %v1345 = vld [vmem:[%s1340 + $0x18] sm:$0x11]
  %v1346 = vld [vmem:[%s1340 + $0x20] sm:$0x1]
  %v1353 = vunpack.c.l.b16 %v1341
  %v1354 = vunpack.c.h.b16 %v1341
  %v1355 = vunpack.c.l.b16 %v1342
  %v1356 = vunpack.c.l.b16 %v1343
  %v1357 = vunpack.c.h.b16 %v1343
  %v1358 = vunpack.c.l.b16 %v1344
  %v1359 = vunpack.c.l.b16 %v1345
  %v1360 = vunpack.c.h.b16 %v1345
  %v1361 = vunpack.c.l.b16 %v1346
  %v1362 = vpack.c.b16 %v1356, %v1353
  %v1363 = vpack.c.b16 %v1357, %v1354
  %v1364 = vpack.c.b16 %v1358, %v1355
  %v1365 = vpack.c.b16 %v1359, %v1359
  %v1366 = vpack.c.b16 %v1360, %v1360
  %v1367 = vpack.c.b16 %v1361, %v1361
  %1374 = vmatprep.subr.bf16.mxu0 %v297
  %1375 = vmatpush1.bf16.msra.mxu0 %v296
  %1376 = vmatprep.subr.bf16.mxu0 %v299
  %1377 = vmatpush1.bf16.msra.mxu0 %v298
  %1378 = vmatprep.subr.bf16.mxu0 %v301
  %1379 = vmatpush1.bf16.msra.mxu0 %v300
  %1380 = vmatprep.subr.bf16.mxu0 %v303
  %1381 = vmatpush1.bf16.msra.mxu0 %v302
  %1382 = vmatprep.subr.bf16.mxu0 %v305
  %1383 = vmatpush1.bf16.msra.mxu0 %v304
  %1384 = vmatprep.subr.bf16.mxu0 %v307
  %1385 = vmatpush1.bf16.msra.mxu0 %v306
  %1386 = vmatprep.subr.bf16.mxu0 %v309
  %1387 = vmatpush1.bf16.msra.mxu0 %v308
  %1388 = vmatprep.subr.bf16.mxu0 %v311
  %1389 = vmatpush1.bf16.msra.mxu0 %v310
  %1390 = vmatprep.subr.bf16.mxu0 %v313
  %1391 = vmatpush1.bf16.msra.mxu0 %v312
  %1392 = vmatprep.subr.bf16.mxu0 %v315
  %1393 = vmatpush1.bf16.msra.mxu0 %v314
  %1394 = vmatprep.subr.bf16.mxu0 %v317
  %1395 = vmatpush1.bf16.msra.mxu0 %v316
  %1396 = vmatprep.subr.bf16.mxu0 %v319
  %1397 = vmatpush1.bf16.msra.mxu0 %v318
  %1398 = vmatprep.subr.bf16.mxu0 %v321
  %1399 = vmatpush1.bf16.msra.mxu0 %v320
  %1400 = vmatprep.subr.bf16.mxu0 %v323
  %1401 = vmatpush1.bf16.msra.mxu0 %v322
  %1402 = vmatprep.subr.bf16.mxu0 %v325
  %1403 = vmatpush1.bf16.msra.mxu0 %v324
  %1404 = vmatprep.subr.bf16.mxu0 %v327
  %1405 = vmatpush1.bf16.msra.mxu0 %v326
  %1406 = vmatprep.mubr.bf16.mxu0 %v1363
  %1407 = vmatmul.mubr.bf16.gmra.mrb[0].mxu0 %v1362
  %v1408 = vpop.f32.mrb[0].mxu0
  %v1409 = vadd.f32 %v118, %v1408
  %v1410 = vpop.f32.mrb[0].mxu0
  %v1411 = vadd.f32 %v122, %v1410
  %v1412 = vpop.f32.mrb[0].mxu0
  %v1413 = vadd.f32 %v118, %v1412
  %v1414 = vpop.f32.mrb[0].mxu0
  %v1415 = vadd.f32 %v122, %v1414
  %1416 = vmatprep.mubr.bf16.mxu0 %v1366
  %1417 = vmatmul.mubr.bf16.gmra.mrb[0].mxu0 %v1365
  %v1418 = vpop.f32.mrb[0].mxu0
  %v1419 = vadd.f32 %v118, %v1418
  %v1420 = vpop.f32.mrb[0].mxu0
  %v1421 = vadd.f32 %v122, %v1420
  %v1422 = vpop.f32.mrb[0].mxu0
  %v1423 = vpop.f32.mrb[0].mxu0
  %1424 = vdwg.mxu0
  %1425 = vmatprep.subr.bf16.mxu0 %v329
  %1426 = vmatpush1.bf16.msra.mxu0 %v328
  %1427 = vmatprep.subr.bf16.mxu0 %v331
  %1428 = vmatpush1.bf16.msra.mxu0 %v330
  %1429 = vmatprep.subr.bf16.mxu0 %v333
  %1430 = vmatpush1.bf16.msra.mxu0 %v332
  %1431 = vmatprep.subr.bf16.mxu0 %v335
  %1432 = vmatpush1.bf16.msra.mxu0 %v334
  %1433 = vmatprep.subr.bf16.mxu0 %v337
  %1434 = vmatpush1.bf16.msra.mxu0 %v336
  %1435 = vmatprep.subr.bf16.mxu0 %v339
  %1436 = vmatpush1.bf16.msra.mxu0 %v338
  %1437 = vmatprep.subr.bf16.mxu0 %v341
  %1438 = vmatpush1.bf16.msra.mxu0 %v340
  %1439 = vmatprep.subr.bf16.mxu0 %v343
  %1440 = vmatpush1.bf16.msra.mxu0 %v342
  %1441 = vmatprep.subr.bf16.mxu0 0
  %1442 = vmatpush1.bf16.msra.mxu0 0
  %1443 = vmatprep.subr.bf16.mxu0 0
  %1444 = vmatpush1.bf16.msra.mxu0 0
  %1445 = vmatprep.subr.bf16.mxu0 0
  %1446 = vmatpush1.bf16.msra.mxu0 0
  %1447 = vmatprep.subr.bf16.mxu0 0
  %1448 = vmatpush1.bf16.msra.mxu0 0
  %1449 = vmatprep.subr.bf16.mxu0 0
  %1450 = vmatpush1.bf16.msra.mxu0 0
  %1451 = vmatprep.subr.bf16.mxu0 0
  %1452 = vmatpush1.bf16.msra.mxu0 0
  %1453 = vmatprep.subr.bf16.mxu0 0
  %1454 = vmatpush1.bf16.msra.mxu0 0
  %1455 = vmatprep.subr.bf16.mxu0 0
  %1456 = vmatpush1.bf16.msra.mxu0 0
  %1457 = vmatprep.mubr.bf16.mxu0 0
  %1458 = vmatmul.mubr.bf16.gmra.mrb[0].mxu0 %v1364
  %v1459 = vpop.f32.mrb[0].mxu0
  %v1460 = vadd.f32 %v1409, %v1459
  %v1461 = vpop.f32.mrb[0].mxu0
  %v1462 = vadd.f32 %v1411, %v1461
  %v1463 = vpop.f32.mrb[0].mxu0
  %v1464 = vadd.f32 %v1413, %v1463
  %v1465 = vpop.f32.mrb[0].mxu0
  %v1466 = vadd.f32 %v1415, %v1465
  %1467 = vmatprep.mubr.bf16.mxu0 0
  %1468 = vmatmul.mubr.bf16.gmra.mrb[0].mxu0 %v1367
  %v1469 = vpop.f32.mrb[0].mxu0
  %v1470 = vadd.f32 %v1419, %v1469
  %v1471 = vpop.f32.mrb[0].mxu0
  %v1472 = vadd.f32 %v1421, %v1471
  %v1473 = vpop.f32.mrb[0].mxu0
  %v1474 = vpop.f32.mrb[0].mxu0
  %1475 = vdwg.mxu0
  %vm1476 = vcmp.ge.f32.partialorder %v1460, 0.0
  %vm1477 = vcmp.ge.f32.partialorder %v1462, 0.0
  %vm1478 = vcmp.ge.f32.partialorder %v1464, 0.0
  %vm1479 = vcmp.ge.f32.partialorder %v1466, 0.0
  %vm1480 = vcmp.ge.f32.partialorder %v1470, 0.0
  %vm1481 = vcmp.ge.f32.partialorder %v1472, 0.0
  %v1482 = vmul.f32 %v1460, 0.02
  %v1483 = vmul.f32 %v1462, 0.02
  %v1484 = vmul.f32 %v1464, 0.02
  %v1485 = vmul.f32 %v1466, 0.02
  %v1486 = vmul.f32 %v1470, 0.02
  %v1487 = vmul.f32 %v1472, 0.02
  %v1488 = vsel %vm1476, %v1460, %v1482
  %v1489 = vsel %vm1477, %v1462, %v1483
  %v1490 = vsel %vm1478, %v1464, %v1484
  %v1491 = vsel %vm1479, %v1466, %v1485
  %v1492 = vsel %vm1480, %v1470, %v1486
  %v1493 = vsel %vm1481, %v1472, %v1487
  %v1494 = vpack.c.bf16 %v1490, %v1488
  %v1495 = vpack.c.bf16 %v1491, %v1489
  %v1496 = vpack.c.bf16 %v1492, %v1492
  %v1497 = vpack.c.bf16 %v1493, %v1493
  %v1499 = vsel %vm544, %v1496, 0
  %v1502 = vsel %vm544, %v1497, 0
  %1504 = vmatprep.subr.bf16.mxu0 %v1495
  %1505 = vmatpush1.bf16.msra.mxu0 %v1494
  %1506 = vmatprep.subr.bf16.mxu0 %v1502
  %1507 = vmatpush1.bf16.msra.mxu0 %v1499
  %1508 = vmatprep.subr.bf16.mxu0 0
  %1509 = vmatpush1.bf16.msra.mxu0 0
  %1510 = vmatprep.subr.bf16.mxu0 0
  %1511 = vmatpush1.bf16.msra.mxu0 0
  %1512 = vmatprep.subr.bf16.mxu0 0
  %1513 = vmatpush1.bf16.msra.mxu0 0
  %1514 = vmatprep.subr.bf16.mxu0 0
  %1515 = vmatpush1.bf16.msra.mxu0 0
  %1516 = vmatprep.subr.bf16.mxu0 0
  %1517 = vmatpush1.bf16.msra.mxu0 0
  %1518 = vmatprep.subr.bf16.mxu0 0
  %1519 = vmatpush1.bf16.msra.mxu0 0
  %1520 = vmatprep.subr.bf16.mxu0 0
  %1521 = vmatpush1.bf16.msra.mxu0 0
  %1522 = vmatprep.subr.bf16.mxu0 0
  %1523 = vmatpush1.bf16.msra.mxu0 0
  %1524 = vmatprep.subr.bf16.mxu0 0
  %1525 = vmatpush1.bf16.msra.mxu0 0
  %1526 = vmatprep.subr.bf16.mxu0 0
  %1527 = vmatpush1.bf16.msra.mxu0 0
  %1528 = vmatprep.subr.bf16.mxu0 0
  %1529 = vmatpush1.bf16.msra.mxu0 0
  %1530 = vmatprep.subr.bf16.mxu0 0
  %1531 = vmatpush1.bf16.msra.mxu0 0
  %1532 = vmatprep.subr.bf16.mxu0 0
  %1533 = vmatpush1.bf16.msra.mxu0 0
  %1534 = vmatprep.subr.bf16.mxu0 0
  %1535 = vmatpush1.bf16.msra.mxu0 0
  %1536 = vmatprep.mubr.bf16.mxu0 0
  %1537 = vmatmul.mubr.bf16.gmra.mrb[0].mxu0 %v536
  %v1538 = vpop.f32.mrb[0].mxu0
  %v1539 = vadd.f32 0.0, %v1538
  %v1540 = vpop.f32.mrb[0].mxu0
  %v1541 = vadd.f32 0.0, %v1540
  %v1542 = vpop.f32.mrb[0].mxu0
  %v1543 = vadd.f32 0.0, %v1542
  %v1544 = vpop.f32.mrb[0].mxu0
  %v1545 = vadd.f32 0.0, %v1544
  %1546 = vmatprep.mubr.bf16.mxu0 0
  %1547 = vmatmul.mubr.bf16.gmra.mrb[0].mxu0 %v539
  %v1548 = vpop.f32.mrb[0].mxu0
  %v1549 = vadd.f32 0.0, %v1548
  %v1550 = vpop.f32.mrb[0].mxu0
  %v1551 = vadd.f32 0.0, %v1550
  %v1552 = vpop.f32.mrb[0].mxu0
  %v1553 = vadd.f32 0.0, %v1552
  %v1554 = vpop.f32.mrb[0].mxu0
  %v1555 = vadd.f32 0.0, %v1554
  %1556 = vmatprep.mubr.bf16.mxu0 0
  %1557 = vmatmul.mubr.bf16.gmra.mrb[0].mxu0 %v542
  %v1558 = vpop.f32.mrb[0].mxu0
  %v1559 = vadd.f32 0.0, %v1558
  %v1560 = vpop.f32.mrb[0].mxu0
  %v1561 = vadd.f32 0.0, %v1560
  %v1562 = vpop.f32.mrb[0].mxu0
  %v1563 = vpop.f32.mrb[0].mxu0
  %1564 = vdwg.mxu0
  %v1565 = vpack.c.bf16 %v1543, %v1539
  %v1566 = vpack.c.bf16 %v1545, %v1541
  %v1567 = vpack.c.bf16 %v1549, %v1543
  %v1568 = vpack.c.bf16 %v1551, %v1545
  %v1570 = vshrl.u32 %v1567, 16
  %v1572 = vshll.u32 %v1567, 16
  %v1574 = vrot.slane %v1572, 1
  %v1575 = vor.u32 %v1570, %v1574
  %v1577 = vshrl.u32 %v1568, 16
  %v1579 = vshll.u32 %v1568, 16
  %v1581 = vrot.slane %v1579, 1
  %v1582 = vor.u32 %v1577, %v1581
  %v1585 = vsel %vm758, %v1582, 0
  %1587 = vmatprep.subr.bf16.mxu0 %v723
  %1588 = vmatpush1.bf16.msra.mxu0 %v722
  %1589 = vmatprep.subr.bf16.mxu0 %v725
  %1590 = vmatpush1.bf16.msra.mxu0 %v724
  %1591 = vmatprep.subr.bf16.mxu0 %v727
  %1592 = vmatpush1.bf16.msra.mxu0 %v726
  %1593 = vmatprep.subr.bf16.mxu0 %v729
  %1594 = vmatpush1.bf16.msra.mxu0 %v728
  %1595 = vmatprep.subr.bf16.mxu0 %v731
  %1596 = vmatpush1.bf16.msra.mxu0 %v730
  %1597 = vmatprep.subr.bf16.mxu0 %v733
  %1598 = vmatpush1.bf16.msra.mxu0 %v732
  %1599 = vmatprep.subr.bf16.mxu0 %v735
  %1600 = vmatpush1.bf16.msra.mxu0 %v734
  %1601 = vmatprep.subr.bf16.mxu0 %v737
  %1602 = vmatpush1.bf16.msra.mxu0 %v736
  %1603 = vmatprep.subr.bf16.mxu0 %v739
  %1604 = vmatpush1.bf16.msra.mxu0 %v738
  %1605 = vmatprep.subr.bf16.mxu0 0
  %1606 = vmatpush1.bf16.msra.mxu0 0
  %1607 = vmatprep.subr.bf16.mxu0 0
  %1608 = vmatpush1.bf16.msra.mxu0 0
  %1609 = vmatprep.subr.bf16.mxu0 0
  %1610 = vmatpush1.bf16.msra.mxu0 0
  %1611 = vmatprep.subr.bf16.mxu0 0
  %1612 = vmatpush1.bf16.msra.mxu0 0
  %1613 = vmatprep.subr.bf16.mxu0 0
  %1614 = vmatpush1.bf16.msra.mxu0 0
  %1615 = vmatprep.subr.bf16.mxu0 0
  %1616 = vmatpush1.bf16.msra.mxu0 0
  %1617 = vmatprep.subr.bf16.mxu0 0
  %1618 = vmatpush1.bf16.msra.mxu0 0
  %1619 = vmatprep.mubr.bf16.mxu0 %v1585
  %1620 = vmatmul.mubr.bf16.gmra.mrb[0].mxu0 %v1575
  %v1621 = vpop.f32.mrb[0].mxu0
  %v1622 = vadd.f32 0.0, %v1621
  %v1623 = vpop.f32.mrb[0].mxu0
  %v1624 = vadd.f32 0.0, %v1623
  %v1625 = vpop.f32.mrb[0].mxu0
  %v1626 = vadd.f32 0.0, %v1625
  %v1627 = vpop.f32.mrb[0].mxu0
  %v1628 = vadd.f32 0.0, %v1627
  %1629 = vdwg.mxu0
  %v1631 = vsel %vm758, %v1566, 0
  %1633 = vmatprep.subr.bf16.mxu0 %v860
  %1634 = vmatpush1.bf16.msra.mxu0 %v859
  %1635 = vmatprep.subr.bf16.mxu0 %v862
  %1636 = vmatpush1.bf16.msra.mxu0 %v861
  %1637 = vmatprep.subr.bf16.mxu0 %v864
  %1638 = vmatpush1.bf16.msra.mxu0 %v863
  %1639 = vmatprep.subr.bf16.mxu0 %v866
  %1640 = vmatpush1.bf16.msra.mxu0 %v865
  %1641 = vmatprep.subr.bf16.mxu0 %v868
  %1642 = vmatpush1.bf16.msra.mxu0 %v867
  %1643 = vmatprep.subr.bf16.mxu0 %v870
  %1644 = vmatpush1.bf16.msra.mxu0 %v869
  %1645 = vmatprep.subr.bf16.mxu0 %v872
  %1646 = vmatpush1.bf16.msra.mxu0 %v871
  %1647 = vmatprep.subr.bf16.mxu0 %v874
  %1648 = vmatpush1.bf16.msra.mxu0 %v873
  %1649 = vmatprep.subr.bf16.mxu0 %v876
  %1650 = vmatpush1.bf16.msra.mxu0 %v875
  %1651 = vmatprep.subr.bf16.mxu0 0
  %1652 = vmatpush1.bf16.msra.mxu0 0
  %1653 = vmatprep.subr.bf16.mxu0 0
  %1654 = vmatpush1.bf16.msra.mxu0 0
  %1655 = vmatprep.subr.bf16.mxu0 0
  %1656 = vmatpush1.bf16.msra.mxu0 0
  %1657 = vmatprep.subr.bf16.mxu0 0
  %1658 = vmatpush1.bf16.msra.mxu0 0
  %1659 = vmatprep.subr.bf16.mxu0 0
  %1660 = vmatpush1.bf16.msra.mxu0 0
  %1661 = vmatprep.subr.bf16.mxu0 0
  %1662 = vmatpush1.bf16.msra.mxu0 0
  %1663 = vmatprep.subr.bf16.mxu0 0
  %1664 = vmatpush1.bf16.msra.mxu0 0
  %1665 = vmatprep.mubr.bf16.mxu0 %v1631
  %1666 = vmatmul.mubr.bf16.gmra.mrb[0].mxu0 %v1565
  %v1667 = vpop.f32.mrb[0].mxu0
  %v1668 = vadd.f32 %v1622, %v1667
  %v1669 = vpop.f32.mrb[0].mxu0
  %v1670 = vadd.f32 %v1624, %v1669
  %v1671 = vpop.f32.mrb[0].mxu0
  %v1672 = vadd.f32 %v1626, %v1671
  %v1673 = vpop.f32.mrb[0].mxu0
  %v1674 = vadd.f32 %v1628, %v1673
  %1675 = vdwg.mxu0
  %v1676 = vpack.c.bf16 %v1553, %v1549
  %v1677 = vpack.c.bf16 %v1555, %v1551
  %v1680 = vrot.slane %v1676, 1
  %v1681 = vrot.slane %v1677, 1
  %v1684 = vsel %vm758, %v1681, 0
  %1686 = vmatprep.subr.bf16.mxu0 %v1022
  %1687 = vmatpush1.bf16.msra.mxu0 %v1021
  %1688 = vmatprep.subr.bf16.mxu0 %v1024
  %1689 = vmatpush1.bf16.msra.mxu0 %v1023
  %1690 = vmatprep.subr.bf16.mxu0 %v1026
  %1691 = vmatpush1.bf16.msra.mxu0 %v1025
  %1692 = vmatprep.subr.bf16.mxu0 %v1028
  %1693 = vmatpush1.bf16.msra.mxu0 %v1027
  %1694 = vmatprep.subr.bf16.mxu0 %v1030
  %1695 = vmatpush1.bf16.msra.mxu0 %v1029
  %1696 = vmatprep.subr.bf16.mxu0 %v1032
  %1697 = vmatpush1.bf16.msra.mxu0 %v1031
  %1698 = vmatprep.subr.bf16.mxu0 %v1034
  %1699 = vmatpush1.bf16.msra.mxu0 %v1033
  %1700 = vmatprep.subr.bf16.mxu0 %v1036
  %1701 = vmatpush1.bf16.msra.mxu0 %v1035
  %1702 = vmatprep.subr.bf16.mxu0 %v1038
  %1703 = vmatpush1.bf16.msra.mxu0 %v1037
  %1704 = vmatprep.subr.bf16.mxu0 0
  %1705 = vmatpush1.bf16.msra.mxu0 0
  %1706 = vmatprep.subr.bf16.mxu0 0
  %1707 = vmatpush1.bf16.msra.mxu0 0
  %1708 = vmatprep.subr.bf16.mxu0 0
  %1709 = vmatpush1.bf16.msra.mxu0 0
  %1710 = vmatprep.subr.bf16.mxu0 0
  %1711 = vmatpush1.bf16.msra.mxu0 0
  %1712 = vmatprep.subr.bf16.mxu0 0
  %1713 = vmatpush1.bf16.msra.mxu0 0
  %1714 = vmatprep.subr.bf16.mxu0 0
  %1715 = vmatpush1.bf16.msra.mxu0 0
  %1716 = vmatprep.subr.bf16.mxu0 0
  %1717 = vmatpush1.bf16.msra.mxu0 0
  %1718 = vmatprep.mubr.bf16.mxu0 %v1684
  %1719 = vmatmul.mubr.bf16.gmra.mrb[0].mxu0 %v1680
  %v1720 = vpop.f32.mrb[0].mxu0
  %v1721 = vadd.f32 0.0, %v1720
  %v1722 = vpop.f32.mrb[0].mxu0
  %v1723 = vadd.f32 0.0, %v1722
  %v1724 = vpop.f32.mrb[0].mxu0
  %v1725 = vadd.f32 0.0, %v1724
  %v1726 = vpop.f32.mrb[0].mxu0
  %v1727 = vadd.f32 0.0, %v1726
  %1728 = vdwg.mxu0
  %v1729 = vadd.f32 %v1668, %v1721
  %v1730 = vadd.f32 %v1670, %v1723
  %v1731 = vadd.f32 %v1672, %v1725
  %v1732 = vadd.f32 %v1674, %v1727
  %v1733 = vpack.c.bf16 %v1559, %v1553
  %v1734 = vpack.c.bf16 %v1561, %v1555
  %v1736 = vshrl.u32 %v1733, 16
  %v1738 = vrot.slane %v1736, 1
  %v1739 = vshll.u32 %v1733, 16
  %v1741 = vrot.slane %v1739, 2
  %v1742 = vor.u32 %v1738, %v1741
  %v1744 = vshrl.u32 %v1734, 16
  %v1746 = vrot.slane %v1744, 1
  %v1747 = vshll.u32 %v1734, 16
  %v1749 = vrot.slane %v1747, 2
  %v1750 = vor.u32 %v1746, %v1749
  %v1753 = vsel %vm758, %v1750, 0
  %1755 = vmatprep.subr.bf16.mxu0 %v1200
  %1756 = vmatpush1.bf16.msra.mxu0 %v1199
  %1757 = vmatprep.subr.bf16.mxu0 %v1202
  %1758 = vmatpush1.bf16.msra.mxu0 %v1201
  %1759 = vmatprep.subr.bf16.mxu0 %v1204
  %1760 = vmatpush1.bf16.msra.mxu0 %v1203
  %1761 = vmatprep.subr.bf16.mxu0 %v1206
  %1762 = vmatpush1.bf16.msra.mxu0 %v1205
  %1763 = vmatprep.subr.bf16.mxu0 %v1208
  %1764 = vmatpush1.bf16.msra.mxu0 %v1207
  %1765 = vmatprep.subr.bf16.mxu0 %v1210
  %1766 = vmatpush1.bf16.msra.mxu0 %v1209
  %1767 = vmatprep.subr.bf16.mxu0 %v1212
  %1768 = vmatpush1.bf16.msra.mxu0 %v1211
  %1769 = vmatprep.subr.bf16.mxu0 %v1214
  %1770 = vmatpush1.bf16.msra.mxu0 %v1213
  %1771 = vmatprep.subr.bf16.mxu0 %v1216
  %1772 = vmatpush1.bf16.msra.mxu0 %v1215
  %1773 = vmatprep.subr.bf16.mxu0 0
  %1774 = vmatpush1.bf16.msra.mxu0 0
  %1775 = vmatprep.subr.bf16.mxu0 0
  %1776 = vmatpush1.bf16.msra.mxu0 0
  %1777 = vmatprep.subr.bf16.mxu0 0
  %1778 = vmatpush1.bf16.msra.mxu0 0
  %1779 = vmatprep.subr.bf16.mxu0 0
  %1780 = vmatpush1.bf16.msra.mxu0 0
  %1781 = vmatprep.subr.bf16.mxu0 0
  %1782 = vmatpush1.bf16.msra.mxu0 0
  %1783 = vmatprep.subr.bf16.mxu0 0
  %1784 = vmatpush1.bf16.msra.mxu0 0
  %1785 = vmatprep.subr.bf16.mxu0 0
  %1786 = vmatpush1.bf16.msra.mxu0 0
  %1787 = vmatprep.mubr.bf16.mxu0 %v1753
  %1788 = vmatmul.mubr.bf16.gmra.mrb[0].mxu0 %v1742
  %v1789 = vpop.f32.mrb[0].mxu0
  %v1790 = vadd.f32 0.0, %v1789
  %v1791 = vpop.f32.mrb[0].mxu0
  %v1792 = vadd.f32 0.0, %v1791
  %v1793 = vpop.f32.mrb[0].mxu0
  %v1794 = vadd.f32 0.0, %v1793
  %v1795 = vpop.f32.mrb[0].mxu0
  %v1796 = vadd.f32 0.0, %v1795
  %1797 = vdwg.mxu0
  %v1798 = vadd.f32 %v1729, %v1790
  %v1799 = vadd.f32 %v1730, %v1792
  %v1800 = vadd.f32 %v1731, %v1794
  %v1801 = vadd.f32 %v1732, %v1796
  %v1802 = vadd.f32 %v1798, %v1290
  %v1803 = vadd.f32 %v1799, %v1294
  %v1804 = vadd.f32 %v1800, %v1290
  %v1805 = vadd.f32 %v1801, %v1294
  %v1806 = vsel %vm544, %v1804, 0.0
  %v1807 = vadd.f32 %v1802, %v1806
  %v1808 = vrot.slane %v1807, 4
  %v1809 = vadd.f32 %v1807, %v1808
  %v1810 = vrot.slane %v1809, 2
  %v1811 = vadd.f32 %v1809, %v1810
  %v1812 = vrot.slane %v1811, 1
  %v1813 = vadd.f32 %v1811, %v1812
  %v1814 = vsel %vm758, %v1803, 0.0
  %v1815 = vsel %vm1310, %v1805, 0.0
  %v1816 = vadd.f32 %v1814, %v1815
  %v1817 = vrot.slane %v1816, 4
  %v1818 = vadd.f32 %v1816, %v1817
  %v1819 = vrot.slane %v1818, 2
  %v1820 = vadd.f32 %v1818, %v1819
  %v1821 = vrot.slane %v1820, 1
  %v1822 = vadd.f32 %v1820, %v1821
  %v1823 = vmul.f32 %v1802, %v1802
  %v1824 = vmul.f32 %v1803, %v1803
  %v1825 = vmul.f32 %v1804, %v1804
  %v1826 = vmul.f32 %v1805, %v1805
  %v1827 = vsel %vm544, %v1825, 0.0
  %v1828 = vadd.f32 %v1823, %v1827
  %v1829 = vrot.slane %v1828, 4
  %v1830 = vadd.f32 %v1828, %v1829
  %v1831 = vrot.slane %v1830, 2
  %v1832 = vadd.f32 %v1830, %v1831
  %v1833 = vrot.slane %v1832, 1
  %v1834 = vadd.f32 %v1832, %v1833
  %v1835 = vsel %vm758, %v1824, 0.0
  %v1836 = vsel %vm1310, %v1826, 0.0
  %v1837 = vadd.f32 %v1835, %v1836
  %v1838 = vrot.slane %v1837, 4
  %v1839 = vadd.f32 %v1837, %v1838
  %v1840 = vrot.slane %v1839, 2
  %v1841 = vadd.f32 %v1839, %v1840
  %v1842 = vrot.slane %v1841, 1
  %v1843 = vadd.f32 %v1841, %v1842
  %v1844 = vadd.f32 %v1308, %v1813
  %v1845 = vadd.f32 %v1318, %v1822
  %v1846 = vadd.f32 %v1330, %v1834
  %v1847 = vadd.f32 %v1339, %v1843
  %v1848 = vld [vmem:[%s6] sm:$0xff]
  %v1849 = vld [vmem:[%s6 + $0x8] sm:$0xff]
  %v1850 = vld [vmem:[%s6 + $0x10] sm:$0xff]
  %v1851 = vld [vmem:[%s6 + $0x18] sm:$0xff]
  %v1852 = vld [vmem:[%s6 + $0x20] sm:$0xff]
  %v1853 = vld [vmem:[%s6 + $0x28] sm:$0xff]
  %v1854 = vld [vmem:[%s6 + $0x30] sm:$0xff]
  %v1855 = vld [vmem:[%s6 + $0x38] sm:$0xff]
  %v1856 = vld [vmem:[%s6 + $0x40] sm:$0xff]
  %v1857 = vld [vmem:[%s6 + $0x48] sm:$0xff]
  %v1858 = vld [vmem:[%s6 + $0x50] sm:$0xff]
  %v1859 = vld [vmem:[%s6 + $0x58] sm:$0xff]
  %v1860 = vld [vmem:[%s6 + $0x60] sm:$0xff]
  %v1861 = vld [vmem:[%s6 + $0x68] sm:$0xff]
  %v1862 = vld [vmem:[%s6 + $0x70] sm:$0xff]
  %v1863 = vld [vmem:[%s6 + $0x78] sm:$0xff]
  %v1864 = vld [vmem:[%s6 + $0x80] sm:$0xff]
  %v1865 = vld [vmem:[%s6 + $0x88] sm:$0xff]
  %v1866 = vld [vmem:[%s6 + $0x90] sm:$0xff]
  %v1867 = vld [vmem:[%s6 + $0x98] sm:$0xff]
  %v1868 = vld [vmem:[%s6 + $0xa0] sm:$0xff]
  %v1869 = vld [vmem:[%s6 + $0xa8] sm:$0xff]
  %v1870 = vld [vmem:[%s6 + $0xb0] sm:$0xff]
  %v1871 = vld [vmem:[%s6 + $0xb8] sm:$0xff]
  %v1872 = vld [vmem:[%s6 + $0xc0] sm:$0xff]
  %v1873 = vld [vmem:[%s6 + $0xc8] sm:$0xff]
  %v1874 = vld [vmem:[%s6 + $0xd0] sm:$0xff]
  %v1875 = vld [vmem:[%s6 + $0xd8] sm:$0xff]
  %v1876 = vld [vmem:[%s6 + $0xe0] sm:$0xff]
  %v1877 = vld [vmem:[%s6 + $0xe8] sm:$0xff]
  %v1878 = vld [vmem:[%s6 + $0xf0] sm:$0xff]
  %v1879 = vld [vmem:[%s6 + $0xf8] sm:$0xff]
  %v1880 = vld [vmem:[%s6 + $0x100] sm:$0xff]
  %v1881 = vld [vmem:[%s6 + $0x108] sm:$0xff]
  %v1882 = vld [vmem:[%s6 + $0x110] sm:$0xff]
  %v1883 = vld [vmem:[%s6 + $0x118] sm:$0xff]
  %v1885 = vsel %vm758, %v1845, 0
  %1887 = vmatprep.subr.mxu0 %v1849
  %1888 = vmatpush1.msra.mxu0 %v1848
  %1889 = vmatprep.subr.mxu0 %v1851
  %1890 = vmatpush1.msra.mxu0 %v1850
  %1891 = vmatprep.subr.mxu0 %v1853
  %1892 = vmatpush1.msra.mxu0 %v1852
  %1893 = vmatprep.subr.mxu0 %v1855
  %1894 = vmatpush1.msra.mxu0 %v1854
  %1895 = vmatprep.subr.mxu0 %v1857
  %1896 = vmatpush1.msra.mxu0 %v1856
  %1897 = vmatprep.subr.mxu0 %v1859
  %1898 = vmatpush1.msra.mxu0 %v1858
  %1899 = vmatprep.subr.mxu0 %v1861
  %1900 = vmatpush1.msra.mxu0 %v1860
  %1901 = vmatprep.subr.mxu0 %v1863
  %1902 = vmatpush1.msra.mxu0 %v1862
  %1903 = vmatprep.subr.mxu0 %v1865
  %1904 = vmatpush1.msra.mxu0 %v1864
  %1905 = vmatprep.subr.mxu0 %v1867
  %1906 = vmatpush1.msra.mxu0 %v1866
  %1907 = vmatprep.subr.mxu0 %v1869
  %1908 = vmatpush1.msra.mxu0 %v1868
  %1909 = vmatprep.subr.mxu0 %v1871
  %1910 = vmatpush1.msra.mxu0 %v1870
  %1911 = vmatprep.subr.mxu0 %v1873
  %1912 = vmatpush1.msra.mxu0 %v1872
  %1913 = vmatprep.subr.mxu0 %v1875
  %1914 = vmatpush1.msra.mxu0 %v1874
  %1915 = vmatprep.subr.mxu0 %v1877
  %1916 = vmatpush1.msra.mxu0 %v1876
  %1917 = vmatprep.subr.mxu0 %v1879
  %1918 = vmatpush1.msra.mxu0 %v1878
  %1919 = vmatprep.subr.mxu0 %v1881
  %1920 = vmatpush1.msra.mxu0 %v1880
  %1921 = vmatprep.subr.mxu0 %v1883
  %1922 = vmatpush1.msra.mxu0 %v1882
  %1923 = vmatprep.subr.mxu0 0.0
  %1924 = vmatpush1.msra.mxu0 0.0
  %1925 = vmatprep.subr.mxu0 0.0
  %1926 = vmatpush1.msra.mxu0 0.0
  %1927 = vmatprep.subr.mxu0 0.0
  %1928 = vmatpush1.msra.mxu0 0.0
  %1929 = vmatprep.subr.mxu0 0.0
  %1930 = vmatpush1.msra.mxu0 0.0
  %1931 = vmatprep.subr.mxu0 0.0
  %1932 = vmatpush1.msra.mxu0 0.0
  %1933 = vmatprep.subr.mxu0 0.0
  %1934 = vmatpush1.msra.mxu0 0.0
  %1935 = vmatprep.subr.mxu0 0.0
  %1936 = vmatpush1.msra.mxu0 0.0
  %1937 = vmatprep.subr.mxu0 0.0
  %1938 = vmatpush1.msra.mxu0 0.0
  %1939 = vmatprep.subr.mxu0 0.0
  %1940 = vmatpush1.msra.mxu0 0.0
  %1941 = vmatprep.subr.mxu0 0.0
  %1942 = vmatpush1.msra.mxu0 0.0
  %1943 = vmatprep.subr.mxu0 0.0
  %1944 = vmatpush1.msra.mxu0 0.0
  %1945 = vmatprep.subr.mxu0 0.0
  %1946 = vmatpush1.msra.mxu0 0.0
  %1947 = vmatprep.subr.mxu0 0.0
  %1948 = vmatpush1.msra.mxu0 0.0
  %1949 = vmatprep.subr.mxu0 0.0
  %1950 = vmatpush1.msra.mxu0 0.0
  %1951 = vmatprep.mubr.f32.mxu0 %v1885
  %1952 = vmatmul.mubr.f32.gmra.mrb[0].mxu0 %v1844
  %v1953 = vpop.f32.mrb[0].mxu0
  %v1954 = vadd.f32 0.0, %v1953
  %v1955 = vpop.f32.mrb[0].mxu0
  %v1956 = vadd.f32 0.0, %v1955
  %1957 = vdwg.mxu0
  %v1958 = vmul.f32 %v1954, 0.0061728396
  %v1959 = vmul.f32 %v1956, 0.0061728396
  %v1961 = vsel %vm758, %v1847, 0
  %1963 = vmatprep.subr.mxu0 %v1849
  %1964 = vmatpush1.msra.mxu0 %v1848
  %1965 = vmatprep.subr.mxu0 %v1851
  %1966 = vmatpush1.msra.mxu0 %v1850
  %1967 = vmatprep.subr.mxu0 %v1853
  %1968 = vmatpush1.msra.mxu0 %v1852
  %1969 = vmatprep.subr.mxu0 %v1855
  %1970 = vmatpush1.msra.mxu0 %v1854
  %1971 = vmatprep.subr.mxu0 %v1857
  %1972 = vmatpush1.msra.mxu0 %v1856
  %1973 = vmatprep.subr.mxu0 %v1859
  %1974 = vmatpush1.msra.mxu0 %v1858
  %1975 = vmatprep.subr.mxu0 %v1861
  %1976 = vmatpush1.msra.mxu0 %v1860
  %1977 = vmatprep.subr.mxu0 %v1863
  %1978 = vmatpush1.msra.mxu0 %v1862
  %1979 = vmatprep.subr.mxu0 %v1865
  %1980 = vmatpush1.msra.mxu0 %v1864
  %1981 = vmatprep.subr.mxu0 %v1867
  %1982 = vmatpush1.msra.mxu0 %v1866
  %1983 = vmatprep.subr.mxu0 %v1869
  %1984 = vmatpush1.msra.mxu0 %v1868
  %1985 = vmatprep.subr.mxu0 %v1871
  %1986 = vmatpush1.msra.mxu0 %v1870
  %1987 = vmatprep.subr.mxu0 %v1873
  %1988 = vmatpush1.msra.mxu0 %v1872
  %1989 = vmatprep.subr.mxu0 %v1875
  %1990 = vmatpush1.msra.mxu0 %v1874
  %1991 = vmatprep.subr.mxu0 %v1877
  %1992 = vmatpush1.msra.mxu0 %v1876
  %1993 = vmatprep.subr.mxu0 %v1879
  %1994 = vmatpush1.msra.mxu0 %v1878
  %1995 = vmatprep.subr.mxu0 %v1881
  %1996 = vmatpush1.msra.mxu0 %v1880
  %1997 = vmatprep.subr.mxu0 %v1883
  %1998 = vmatpush1.msra.mxu0 %v1882
  %1999 = vmatprep.subr.mxu0 0.0
  %2000 = vmatpush1.msra.mxu0 0.0
  %2001 = vmatprep.subr.mxu0 0.0
  %2002 = vmatpush1.msra.mxu0 0.0
  %2003 = vmatprep.subr.mxu0 0.0
  %2004 = vmatpush1.msra.mxu0 0.0
  %2005 = vmatprep.subr.mxu0 0.0
  %2006 = vmatpush1.msra.mxu0 0.0
  %2007 = vmatprep.subr.mxu0 0.0
  %2008 = vmatpush1.msra.mxu0 0.0
  %2009 = vmatprep.subr.mxu0 0.0
  %2010 = vmatpush1.msra.mxu0 0.0
  %2011 = vmatprep.subr.mxu0 0.0
  %2012 = vmatpush1.msra.mxu0 0.0
  %2013 = vmatprep.subr.mxu0 0.0
  %2014 = vmatpush1.msra.mxu0 0.0
  %2015 = vmatprep.subr.mxu0 0.0
  %2016 = vmatpush1.msra.mxu0 0.0
  %2017 = vmatprep.subr.mxu0 0.0
  %2018 = vmatpush1.msra.mxu0 0.0
  %2019 = vmatprep.subr.mxu0 0.0
  %2020 = vmatpush1.msra.mxu0 0.0
  %2021 = vmatprep.subr.mxu0 0.0
  %2022 = vmatpush1.msra.mxu0 0.0
  %2023 = vmatprep.subr.mxu0 0.0
  %2024 = vmatpush1.msra.mxu0 0.0
  %2025 = vmatprep.subr.mxu0 0.0
  %2026 = vmatpush1.msra.mxu0 0.0
  %2027 = vmatprep.mubr.f32.mxu0 %v1961
  %2028 = vmatmul.mubr.f32.gmra.mrb[0].mxu0 %v1846
  %v2029 = vpop.f32.mrb[0].mxu0
  %v2030 = vadd.f32 0.0, %v2029
  %v2031 = vpop.f32.mrb[0].mxu0
  %v2032 = vadd.f32 0.0, %v2031
  %2033 = vdwg.mxu0
  %v2034 = vmul.f32 %v2030, 0.0061728396
  %v2035 = vmul.f32 %v2032, 0.0061728396
  %v2036 = vmul.f32 %v1958, %v1958
  %v2037 = vmul.f32 %v1959, %v1959
  %v2038 = vsub.f32 %v2034, %v2036
  %v2039 = vsub.f32 %v2035, %v2037
  %v2040 = vld [vmem:[%s7] sm:$0x3]
  %v2041 = vadd.f32 %v2038, 1e-05
  %v2042 = vadd.f32 %v2039, 1e-05
  %v2043 = vrsqrt.pop %v2041
  %v2044 = vrsqrt.pop %v2042
  %v2047 = vcombine.low %v2043, %v2044
  %v2049 = vunpack.c.l.s4 1966171168
  %v2050 = vunpack.c.0.s8 %v2049
  %v2051 = vlaneseq
  %v2052 = vshrl.u32 %v2051, 7
  %v2053 = vsub.s32 %v2050, %v2052
  %v2054 = vrot.slane %v2047, %v2053
  %v2056 = vunpack.c.l.s4 1966171168
  %v2057 = vunpack.c.0.s8 %v2056
  %v2058 = vlaneseq
  %v2059 = vshrl.u32 %v2058, 7
  %v2060 = vsub.s32 %v2057, %v2059
  %v2061 = vrot.slane %v2054, %v2060
  %v2063 = vmul.f32 %v2040, %v2061
  %v2064 = vld [vmem:[%s8] sm:$0x3]
  %v2066 = vlaneseq
  %v2067 = vshrl.u32 %v2066, 7
  %v2068 = vsub.s32 0, %v2067
  %v2069 = vrot.slane %v2063, %v2068
  %v2070 = vlaneseq
  %v2071 = vshrl.u32 %v2070, 7
  %v2072 = vsub.s32 1, %v2071
  %v2073 = vrot.slane %v2063, %v2072
  %v2076 = vmul.f32 %v1958, %v2069
  %v2077 = vmul.f32 %v1959, %v2073
  %v2080 = vcombine.low %v2076, %v2077
  %v2082 = vunpack.c.l.s4 1966171168
  %v2083 = vunpack.c.0.s8 %v2082
  %v2084 = vlaneseq
  %v2085 = vshrl.u32 %v2084, 7
  %v2086 = vsub.s32 %v2083, %v2085
  %v2087 = vrot.slane %v2080, %v2086
  %v2089 = vunpack.c.l.s4 1966171168
  %v2090 = vunpack.c.0.s8 %v2089
  %v2091 = vlaneseq
  %v2092 = vshrl.u32 %v2091, 7
  %v2093 = vsub.s32 %v2090, %v2092
  %v2094 = vrot.slane %v2087, %v2093
  %v2096 = vsub.f32 %v2064, %v2094
  %v2097 = vmul.f32 %v1297, %v2069
  %v2098 = vmul.f32 %v1298, %v2073
  %v2099 = vmul.f32 %v1299, %v2069
  %v2100 = vmul.f32 %v1300, %v2073
  %v2102 = vlaneseq
  %v2103 = vshrl.u32 %v2102, 7
  %v2104 = vsub.s32 0, %v2103
  %v2105 = vrot.slane %v2096, %v2104
  %v2106 = vlaneseq
  %v2107 = vshrl.u32 %v2106, 7
  %v2108 = vsub.s32 1, %v2107
  %v2109 = vrot.slane %v2096, %v2108
  %v2112 = vadd.f32 %v2097, %v2105
  %v2113 = vadd.f32 %v2098, %v2109
  %v2114 = vadd.f32 %v2099, %v2105
  %v2115 = vadd.f32 %v2100, %v2109
  %vm2116 = vcmp.ge.f32.partialorder %v2112, 0.0
  %vm2117 = vcmp.ge.f32.partialorder %v2113, 0.0
  %vm2118 = vcmp.ge.f32.partialorder %v2114, 0.0
  %vm2119 = vcmp.ge.f32.partialorder %v2115, 0.0
  %v2120 = vmul.f32 %v2112, 0.02
  %v2121 = vmul.f32 %v2113, 0.02
  %v2122 = vmul.f32 %v2114, 0.02
  %v2123 = vmul.f32 %v2115, 0.02
  %v2124 = vsel %vm2116, %v2112, %v2120
  %v2125 = vsel %vm2117, %v2113, %v2121
  %v2126 = vsel %vm2118, %v2114, %v2122
  %v2127 = vsel %vm2119, %v2115, %v2123
  %v2128 = vld [vmem:[%s9] sm:$0xf]
  %v2129 = vld [vmem:[%s9 + $0x4] sm:$0xf]
  %v2130 = vpack.c.bf16 %v2126, %v2124
  %v2131 = vpack.c.bf16 %v2127, %v2125
  %v2134 = vunpack.c.l.b16 %v2128
  %v2135 = vunpack.c.l.b16 %v2129
  %v2136 = vpack.c.b16 %v2135, %v2134
  %vm2137 = vcmask 72704
  %v2139 = vsel %vm2137, %v2136, 0
  %vm2141 = vcmask 1043456
  %vm2142 = vcmask 1044480
  %v2143 = vsel %vm2141, 4294967295, 65535
  %v2144 = vsel %vm2142, %v2143, 0
  %v2146 = vand.u32 %v2130, %v2144
  %v2149 = vand.u32 %v2131, %v2144
  %2151 = vmatprep.subr.bf16.mxu0 %v2149
  %2152 = vmatpush1.bf16.msra.mxu0 %v2146
  %2153 = vmatprep.subr.bf16.mxu0 0
  %2154 = vmatpush1.bf16.msra.mxu0 0
  %2155 = vmatprep.subr.bf16.mxu0 0
  %2156 = vmatpush1.bf16.msra.mxu0 0
  %2157 = vmatprep.subr.bf16.mxu0 0
  %2158 = vmatpush1.bf16.msra.mxu0 0
  %2159 = vmatprep.subr.bf16.mxu0 0
  %2160 = vmatpush1.bf16.msra.mxu0 0
  %2161 = vmatprep.subr.bf16.mxu0 0
  %2162 = vmatpush1.bf16.msra.mxu0 0
  %2163 = vmatprep.subr.bf16.mxu0 0
  %2164 = vmatpush1.bf16.msra.mxu0 0
  %2165 = vmatprep.subr.bf16.mxu0 0
  %2166 = vmatpush1.bf16.msra.mxu0 0
  %2167 = vmatprep.subr.bf16.mxu0 0
  %2168 = vmatpush1.bf16.msra.mxu0 0
  %2169 = vmatprep.subr.bf16.mxu0 0
  %2170 = vmatpush1.bf16.msra.mxu0 0
  %2171 = vmatprep.subr.bf16.mxu0 0
  %2172 = vmatpush1.bf16.msra.mxu0 0
  %2173 = vmatprep.subr.bf16.mxu0 0
  %2174 = vmatpush1.bf16.msra.mxu0 0
  %2175 = vmatprep.subr.bf16.mxu0 0
  %2176 = vmatpush1.bf16.msra.mxu0 0
  %2177 = vmatprep.subr.bf16.mxu0 0
  %2178 = vmatpush1.bf16.msra.mxu0 0
  %2179 = vmatprep.subr.bf16.mxu0 0
  %2180 = vmatpush1.bf16.msra.mxu0 0
  %2181 = vmatprep.subr.bf16.mxu0 0
  %2182 = vmatpush1.bf16.msra.mxu0 0
  %2183 = vmatprep.mubr.bf16.mxu0 0
  %2184 = vmatmul.mubr.bf16.gmra.mrb[0].mxu0 %v2139
  %v2185 = vpop.f32.mrb[0].mxu0
  %v2186 = vadd.f32 0.0, %v2185
  %v2187 = vpop.f32.mrb[0].mxu0
  %v2188 = vadd.f32 0.0, %v2187
  %v2189 = vpop.f32.mrb[0].mxu0
  %v2190 = vadd.f32 0.0, %v2189
  %v2191 = vpop.f32.mrb[0].mxu0
  %v2192 = vadd.f32 0.0, %v2191
  %2193 = vdwg.mxu0
  %v2194 = vpack.c.bf16 %v2186, %v2186
  %v2195 = vpack.c.bf16 %v2188, %v2188
  %v2196 = vld [vmem:[%s10] sm:$0xf]
  %v2197 = vld [vmem:[%s10 + $0x4] sm:$0xf]
  %v2198 = vld [vmem:[%s10 + $0x8] sm:$0xf]
  %v2199 = vld [vmem:[%s10 + $0xc] sm:$0xf]
  %v2200 = vld [vmem:[%s10 + $0x10] sm:$0xf]
  %v2201 = vld [vmem:[%s10 + $0x14] sm:$0xf]
  %v2202 = vld [vmem:[%s10 + $0x18] sm:$0xf]
  %v2203 = vld [vmem:[%s10 + $0x1c] sm:$0xf]
  %v2204 = vld [vmem:[%s10 + $0x20] sm:$0xf]
  %v2205 = vld [vmem:[%s10 + $0x24] sm:$0xf]
  %v2206 = vld [vmem:[%s10 + $0x28] sm:$0xf]
  %v2207 = vld [vmem:[%s10 + $0x2c] sm:$0xf]
  %v2208 = vld [vmem:[%s10 + $0x30] sm:$0xf]
  %v2209 = vld [vmem:[%s10 + $0x34] sm:$0xf]
  %v2210 = vld [vmem:[%s10 + $0x38] sm:$0xf]
  %v2211 = vld [vmem:[%s10 + $0x3c] sm:$0xf]
  %v2212 = vld [vmem:[%s10 + $0x40] sm:$0xf]
  %v2213 = vld [vmem:[%s10 + $0x44] sm:$0xf]
  %s2214 = scalar_lea.vmem %s10, 72
  %v2215 = vld [vmem:[%s2214] sm:$0xf]
  %v2216 = vld [vmem:[%s2214 + $0x4] sm:$0xf]
  %v2217 = vld [vmem:[%s2214 + $0x8] sm:$0xf]
  %v2218 = vld [vmem:[%s2214 + $0xc] sm:$0xf]
  %v2219 = vld [vmem:[%s2214 + $0x10] sm:$0xf]
  %v2220 = vld [vmem:[%s2214 + $0x14] sm:$0xf]
  %v2221 = vld [vmem:[%s2214 + $0x18] sm:$0xf]
  %v2222 = vld [vmem:[%s2214 + $0x1c] sm:$0xf]
  %v2223 = vld [vmem:[%s2214 + $0x20] sm:$0xf]
  %v2224 = vld [vmem:[%s2214 + $0x24] sm:$0xf]
  %v2225 = vld [vmem:[%s2214 + $0x28] sm:$0xf]
  %v2226 = vld [vmem:[%s2214 + $0x2c] sm:$0xf]
  %v2227 = vld [vmem:[%s2214 + $0x30] sm:$0xf]
  %v2228 = vld [vmem:[%s2214 + $0x34] sm:$0xf]
  %v2229 = vld [vmem:[%s2214 + $0x38] sm:$0xf]
  %v2230 = vld [vmem:[%s2214 + $0x3c] sm:$0xf]
  %v2231 = vld [vmem:[%s2214 + $0x40] sm:$0xf]
  %v2232 = vld [vmem:[%s2214 + $0x44] sm:$0xf]
  %v2235 = vrot.slane %v2194, 2
  %v2236 = vrot.slane %v2195, 2
  %v2256 = vunpack.c.l.b16 %v2215
  %v2257 = vunpack.c.l.b16 %v2216
  %v2258 = vunpack.c.l.b16 %v2217
  %v2259 = vunpack.c.l.b16 %v2218
  %v2260 = vunpack.c.l.b16 %v2219
  %v2261 = vunpack.c.l.b16 %v2220
  %v2262 = vunpack.c.l.b16 %v2221
  %v2263 = vunpack.c.l.b16 %v2222
  %v2264 = vunpack.c.l.b16 %v2223
  %v2265 = vunpack.c.l.b16 %v2224
  %v2266 = vunpack.c.l.b16 %v2225
  %v2267 = vunpack.c.l.b16 %v2226
  %v2268 = vunpack.c.l.b16 %v2227
  %v2269 = vunpack.c.l.b16 %v2228
  %v2270 = vunpack.c.l.b16 %v2229
  %v2271 = vunpack.c.l.b16 %v2230
  %v2272 = vunpack.c.l.b16 %v2231
  %v2273 = vunpack.c.l.b16 %v2232
  %v2274 = vpack.c.b16 %v2257, %v2256
  %v2275 = vpack.c.b16 %v2259, %v2258
  %v2276 = vpack.c.b16 %v2261, %v2260
  %v2277 = vpack.c.b16 %v2263, %v2262
  %v2278 = vpack.c.b16 %v2265, %v2264
  %v2279 = vpack.c.b16 %v2267, %v2266
  %v2280 = vpack.c.b16 %v2269, %v2268
  %v2281 = vpack.c.b16 %v2271, %v2270
  %v2282 = vpack.c.b16 %v2273, %v2272
  %v2293 = vsel %vm758, %v2236, 0
  %2295 = vmatprep.subr.bf16.mxu0 0
  %2296 = vmatpush1.bf16.msra.mxu0 %v2274
  %2297 = vmatprep.subr.bf16.mxu0 0
  %2298 = vmatpush1.bf16.msra.mxu0 %v2275
  %2299 = vmatprep.subr.bf16.mxu0 0
  %2300 = vmatpush1.bf16.msra.mxu0 %v2276
  %2301 = vmatprep.subr.bf16.mxu0 0
  %2302 = vmatpush1.bf16.msra.mxu0 %v2277
  %2303 = vmatprep.subr.bf16.mxu0 0
  %2304 = vmatpush1.bf16.msra.mxu0 %v2278
  %2305 = vmatprep.subr.bf16.mxu0 0
  %2306 = vmatpush1.bf16.msra.mxu0 %v2279
  %2307 = vmatprep.subr.bf16.mxu0 0
  %2308 = vmatpush1.bf16.msra.mxu0 %v2280
  %2309 = vmatprep.subr.bf16.mxu0 0
  %2310 = vmatpush1.bf16.msra.mxu0 %v2281
  %2311 = vmatprep.subr.bf16.mxu0 0
  %2312 = vmatpush1.bf16.msra.mxu0 %v2282
  %2313 = vmatprep.subr.bf16.mxu0 0
  %2314 = vmatpush1.bf16.msra.mxu0 0
  %2315 = vmatprep.subr.bf16.mxu0 0
  %2316 = vmatpush1.bf16.msra.mxu0 0
  %2317 = vmatprep.subr.bf16.mxu0 0
  %2318 = vmatpush1.bf16.msra.mxu0 0
  %2319 = vmatprep.subr.bf16.mxu0 0
  %2320 = vmatpush1.bf16.msra.mxu0 0
  %2321 = vmatprep.subr.bf16.mxu0 0
  %2322 = vmatpush1.bf16.msra.mxu0 0
  %2323 = vmatprep.subr.bf16.mxu0 0
  %2324 = vmatpush1.bf16.msra.mxu0 0
  %2325 = vmatprep.subr.bf16.mxu0 0
  %2326 = vmatpush1.bf16.msra.mxu0 0
  %2327 = vmatprep.mubr.bf16.mxu0 %v2293
  %2328 = vmatmul.mubr.bf16.gmra.mrb[0].mxu0 %v2235
  %v2329 = vpop.f32.mrb[0].mxu0
  %v2330 = vadd.f32 0.0, %v2329
  %v2331 = vpop.f32.mrb[0].mxu0
  %v2332 = vpop.f32.mrb[0].mxu0
  %v2333 = vpop.f32.mrb[0].mxu0
  %2334 = vdwg.mxu0
  %v2353 = vunpack.c.l.b16 %v2196
  %v2354 = vunpack.c.l.b16 %v2197
  %v2355 = vunpack.c.l.b16 %v2198
  %v2356 = vunpack.c.l.b16 %v2199
  %v2357 = vunpack.c.l.b16 %v2200
  %v2358 = vunpack.c.l.b16 %v2201
  %v2359 = vunpack.c.l.b16 %v2202
  %v2360 = vunpack.c.l.b16 %v2203
  %v2361 = vunpack.c.l.b16 %v2204
  %v2362 = vunpack.c.l.b16 %v2205
  %v2363 = vunpack.c.l.b16 %v2206
  %v2364 = vunpack.c.l.b16 %v2207
  %v2365 = vunpack.c.l.b16 %v2208
  %v2366 = vunpack.c.l.b16 %v2209
  %v2367 = vunpack.c.l.b16 %v2210
  %v2368 = vunpack.c.l.b16 %v2211
  %v2369 = vunpack.c.l.b16 %v2212
  %v2370 = vunpack.c.l.b16 %v2213
  %v2371 = vpack.c.b16 %v2354, %v2353
  %v2372 = vpack.c.b16 %v2356, %v2355
  %v2373 = vpack.c.b16 %v2358, %v2357
  %v2374 = vpack.c.b16 %v2360, %v2359
  %v2375 = vpack.c.b16 %v2362, %v2361
  %v2376 = vpack.c.b16 %v2364, %v2363
  %v2377 = vpack.c.b16 %v2366, %v2365
  %v2378 = vpack.c.b16 %v2368, %v2367
  %v2379 = vpack.c.b16 %v2370, %v2369
  %v2390 = vsel %vm758, %v2195, 0
  %2392 = vmatprep.subr.bf16.mxu0 0
  %2393 = vmatpush1.bf16.msra.mxu0 %v2371
  %2394 = vmatprep.subr.bf16.mxu0 0
  %2395 = vmatpush1.bf16.msra.mxu0 %v2372
  %2396 = vmatprep.subr.bf16.mxu0 0
  %2397 = vmatpush1.bf16.msra.mxu0 %v2373
  %2398 = vmatprep.subr.bf16.mxu0 0
  %2399 = vmatpush1.bf16.msra.mxu0 %v2374
  %2400 = vmatprep.subr.bf16.mxu0 0
  %2401 = vmatpush1.bf16.msra.mxu0 %v2375
  %2402 = vmatprep.subr.bf16.mxu0 0
  %2403 = vmatpush1.bf16.msra.mxu0 %v2376
  %2404 = vmatprep.subr.bf16.mxu0 0
  %2405 = vmatpush1.bf16.msra.mxu0 %v2377
  %2406 = vmatprep.subr.bf16.mxu0 0
  %2407 = vmatpush1.bf16.msra.mxu0 %v2378
  %2408 = vmatprep.subr.bf16.mxu0 0
  %2409 = vmatpush1.bf16.msra.mxu0 %v2379
  %2410 = vmatprep.subr.bf16.mxu0 0
  %2411 = vmatpush1.bf16.msra.mxu0 0
  %2412 = vmatprep.subr.bf16.mxu0 0
  %2413 = vmatpush1.bf16.msra.mxu0 0
  %2414 = vmatprep.subr.bf16.mxu0 0
  %2415 = vmatpush1.bf16.msra.mxu0 0
  %2416 = vmatprep.subr.bf16.mxu0 0
  %2417 = vmatpush1.bf16.msra.mxu0 0
  %2418 = vmatprep.subr.bf16.mxu0 0
  %2419 = vmatpush1.bf16.msra.mxu0 0
  %2420 = vmatprep.subr.bf16.mxu0 0
  %2421 = vmatpush1.bf16.msra.mxu0 0
  %2422 = vmatprep.subr.bf16.mxu0 0
  %2423 = vmatpush1.bf16.msra.mxu0 0
  %2424 = vmatprep.mubr.bf16.mxu0 %v2390
  %2425 = vmatmul.mubr.bf16.gmra.mrb[0].mxu0 %v2194
  %v2426 = vpop.f32.mrb[0].mxu0
  %v2427 = vadd.f32 %v2330, %v2426
  %v2428 = vpop.f32.mrb[0].mxu0
  %v2429 = vpop.f32.mrb[0].mxu0
  %v2430 = vpop.f32.mrb[0].mxu0
  %2431 = vdwg.mxu0
  %v2432 = vpack.c.bf16 %v2190, %v2190
  %v2433 = vpack.c.bf16 %v2192, %v2192
  %s2434 = scalar_lea.vmem %s10, 144
  %v2435 = vld [vmem:[%s2434] sm:$0xf]
  %v2436 = vld [vmem:[%s2434 + $0x4] sm:$0xf]
  %v2437 = vld [vmem:[%s2434 + $0x8] sm:$0xf]
  %v2438 = vld [vmem:[%s2434 + $0xc] sm:$0xf]
  %v2439 = vld [vmem:[%s2434 + $0x10] sm:$0xf]
  %v2440 = vld [vmem:[%s2434 + $0x14] sm:$0xf]
  %v2441 = vld [vmem:[%s2434 + $0x18] sm:$0xf]
  %v2442 = vld [vmem:[%s2434 + $0x1c] sm:$0xf]
  %v2443 = vld [vmem:[%s2434 + $0x20] sm:$0xf]
  %v2444 = vld [vmem:[%s2434 + $0x24] sm:$0xf]
  %v2445 = vld [vmem:[%s2434 + $0x28] sm:$0xf]
  %v2446 = vld [vmem:[%s2434 + $0x2c] sm:$0xf]
  %v2447 = vld [vmem:[%s2434 + $0x30] sm:$0xf]
  %v2448 = vld [vmem:[%s2434 + $0x34] sm:$0xf]
  %v2449 = vld [vmem:[%s2434 + $0x38] sm:$0xf]
  %v2450 = vld [vmem:[%s2434 + $0x3c] sm:$0xf]
  %v2451 = vld [vmem:[%s2434 + $0x40] sm:$0xf]
  %v2452 = vld [vmem:[%s2434 + $0x44] sm:$0xf]
  %v2471 = vunpack.c.l.b16 %v2435
  %v2472 = vunpack.c.l.b16 %v2436
  %v2473 = vunpack.c.l.b16 %v2437
  %v2474 = vunpack.c.l.b16 %v2438
  %v2475 = vunpack.c.l.b16 %v2439
  %v2476 = vunpack.c.l.b16 %v2440
  %v2477 = vunpack.c.l.b16 %v2441
  %v2478 = vunpack.c.l.b16 %v2442
  %v2479 = vunpack.c.l.b16 %v2443
  %v2480 = vunpack.c.l.b16 %v2444
  %v2481 = vunpack.c.l.b16 %v2445
  %v2482 = vunpack.c.l.b16 %v2446
  %v2483 = vunpack.c.l.b16 %v2447
  %v2484 = vunpack.c.l.b16 %v2448
  %v2485 = vunpack.c.l.b16 %v2449
  %v2486 = vunpack.c.l.b16 %v2450
  %v2487 = vunpack.c.l.b16 %v2451
  %v2488 = vunpack.c.l.b16 %v2452
  %v2489 = vpack.c.b16 %v2472, %v2471
  %v2490 = vpack.c.b16 %v2474, %v2473
  %v2491 = vpack.c.b16 %v2476, %v2475
  %v2492 = vpack.c.b16 %v2478, %v2477
  %v2493 = vpack.c.b16 %v2480, %v2479
  %v2494 = vpack.c.b16 %v2482, %v2481
  %v2495 = vpack.c.b16 %v2484, %v2483
  %v2496 = vpack.c.b16 %v2486, %v2485
  %v2497 = vpack.c.b16 %v2488, %v2487
  %v2508 = vsel %vm758, %v2433, 0
  %2510 = vmatprep.subr.bf16.mxu0 0
  %2511 = vmatpush1.bf16.msra.mxu0 %v2489
  %2512 = vmatprep.subr.bf16.mxu0 0
  %2513 = vmatpush1.bf16.msra.mxu0 %v2490
  %2514 = vmatprep.subr.bf16.mxu0 0
  %2515 = vmatpush1.bf16.msra.mxu0 %v2491
  %2516 = vmatprep.subr.bf16.mxu0 0
  %2517 = vmatpush1.bf16.msra.mxu0 %v2492
  %2518 = vmatprep.subr.bf16.mxu0 0
  %2519 = vmatpush1.bf16.msra.mxu0 %v2493
  %2520 = vmatprep.subr.bf16.mxu0 0
  %2521 = vmatpush1.bf16.msra.mxu0 %v2494
  %2522 = vmatprep.subr.bf16.mxu0 0
  %2523 = vmatpush1.bf16.msra.mxu0 %v2495
  %2524 = vmatprep.subr.bf16.mxu0 0
  %2525 = vmatpush1.bf16.msra.mxu0 %v2496
  %2526 = vmatprep.subr.bf16.mxu0 0
  %2527 = vmatpush1.bf16.msra.mxu0 %v2497
  %2528 = vmatprep.subr.bf16.mxu0 0
  %2529 = vmatpush1.bf16.msra.mxu0 0
  %2530 = vmatprep.subr.bf16.mxu0 0
  %2531 = vmatpush1.bf16.msra.mxu0 0
  %2532 = vmatprep.subr.bf16.mxu0 0
  %2533 = vmatpush1.bf16.msra.mxu0 0
  %2534 = vmatprep.subr.bf16.mxu0 0
  %2535 = vmatpush1.bf16.msra.mxu0 0
  %2536 = vmatprep.subr.bf16.mxu0 0
  %2537 = vmatpush1.bf16.msra.mxu0 0
  %2538 = vmatprep.subr.bf16.mxu0 0
  %2539 = vmatpush1.bf16.msra.mxu0 0
  %2540 = vmatprep.subr.bf16.mxu0 0
  %2541 = vmatpush1.bf16.msra.mxu0 0
  %2542 = vmatprep.mubr.bf16.mxu0 %v2508
  %2543 = vmatmul.mubr.bf16.gmra.mrb[0].mxu0 %v2432
  %v2544 = vpop.f32.mrb[0].mxu0
  %v2545 = vadd.f32 0.0, %v2544
  %v2546 = vpop.f32.mrb[0].mxu0
  %v2547 = vpop.f32.mrb[0].mxu0
  %v2548 = vpop.f32.mrb[0].mxu0
  %2549 = vdwg.mxu0
  %v2550 = vadd.f32 %v2427, %v2545
  %s2551 = scalar_lea.vmem %s10, 216
  %v2552 = vld [vmem:[%s2551] sm:$0xf]
  %v2553 = vld [vmem:[%s2551 + $0x4] sm:$0xf]
  %v2554 = vld [vmem:[%s2551 + $0x8] sm:$0xf]
  %v2555 = vld [vmem:[%s2551 + $0xc] sm:$0xf]
  %v2556 = vld [vmem:[%s2551 + $0x10] sm:$0xf]
  %v2557 = vld [vmem:[%s2551 + $0x14] sm:$0xf]
  %v2558 = vld [vmem:[%s2551 + $0x18] sm:$0xf]
  %v2559 = vld [vmem:[%s2551 + $0x1c] sm:$0xf]
  %v2560 = vld [vmem:[%s2551 + $0x20] sm:$0xf]
  %v2561 = vld [vmem:[%s2551 + $0x24] sm:$0xf]
  %v2562 = vld [vmem:[%s2551 + $0x28] sm:$0xf]
  %v2563 = vld [vmem:[%s2551 + $0x2c] sm:$0xf]
  %v2564 = vld [vmem:[%s2551 + $0x30] sm:$0xf]
  %v2565 = vld [vmem:[%s2551 + $0x34] sm:$0xf]
  %v2566 = vld [vmem:[%s2551 + $0x38] sm:$0xf]
  %v2567 = vld [vmem:[%s2551 + $0x3c] sm:$0xf]
  %v2568 = vld [vmem:[%s2551 + $0x40] sm:$0xf]
  %v2569 = vld [vmem:[%s2551 + $0x44] sm:$0xf]
  %v2572 = vrot.slane %v2432, 2
  %v2573 = vrot.slane %v2433, 2
  %v2593 = vunpack.c.l.b16 %v2552
  %v2594 = vunpack.c.l.b16 %v2553
  %v2595 = vunpack.c.l.b16 %v2554
  %v2596 = vunpack.c.l.b16 %v2555
  %v2597 = vunpack.c.l.b16 %v2556
  %v2598 = vunpack.c.l.b16 %v2557
  %v2599 = vunpack.c.l.b16 %v2558
  %v2600 = vunpack.c.l.b16 %v2559
  %v2601 = vunpack.c.l.b16 %v2560
  %v2602 = vunpack.c.l.b16 %v2561
  %v2603 = vunpack.c.l.b16 %v2562
  %v2604 = vunpack.c.l.b16 %v2563
  %v2605 = vunpack.c.l.b16 %v2564
  %v2606 = vunpack.c.l.b16 %v2565
  %v2607 = vunpack.c.l.b16 %v2566
  %v2608 = vunpack.c.l.b16 %v2567
  %v2609 = vunpack.c.l.b16 %v2568
  %v2610 = vunpack.c.l.b16 %v2569
  %v2611 = vpack.c.b16 %v2594, %v2593
  %v2612 = vpack.c.b16 %v2596, %v2595
  %v2613 = vpack.c.b16 %v2598, %v2597
  %v2614 = vpack.c.b16 %v2600, %v2599
  %v2615 = vpack.c.b16 %v2602, %v2601
  %v2616 = vpack.c.b16 %v2604, %v2603
  %v2617 = vpack.c.b16 %v2606, %v2605
  %v2618 = vpack.c.b16 %v2608, %v2607
  %v2619 = vpack.c.b16 %v2610, %v2609
  %v2630 = vsel %vm758, %v2573, 0
  %2632 = vmatprep.subr.bf16.mxu0 0
  %2633 = vmatpush1.bf16.msra.mxu0 %v2611
  %2634 = vmatprep.subr.bf16.mxu0 0
  %2635 = vmatpush1.bf16.msra.mxu0 %v2612
  %2636 = vmatprep.subr.bf16.mxu0 0
  %2637 = vmatpush1.bf16.msra.mxu0 %v2613
  %2638 = vmatprep.subr.bf16.mxu0 0
  %2639 = vmatpush1.bf16.msra.mxu0 %v2614
  %2640 = vmatprep.subr.bf16.mxu0 0
  %2641 = vmatpush1.bf16.msra.mxu0 %v2615
  %2642 = vmatprep.subr.bf16.mxu0 0
  %2643 = vmatpush1.bf16.msra.mxu0 %v2616
  %2644 = vmatprep.subr.bf16.mxu0 0
  %2645 = vmatpush1.bf16.msra.mxu0 %v2617
  %2646 = vmatprep.subr.bf16.mxu0 0
  %2647 = vmatpush1.bf16.msra.mxu0 %v2618
  %2648 = vmatprep.subr.bf16.mxu0 0
  %2649 = vmatpush1.bf16.msra.mxu0 %v2619
  %2650 = vmatprep.subr.bf16.mxu0 0
  %2651 = vmatpush1.bf16.msra.mxu0 0
  %2652 = vmatprep.subr.bf16.mxu0 0
  %2653 = vmatpush1.bf16.msra.mxu0 0
  %2654 = vmatprep.subr.bf16.mxu0 0
  %2655 = vmatpush1.bf16.msra.mxu0 0
  %2656 = vmatprep.subr.bf16.mxu0 0
  %2657 = vmatpush1.bf16.msra.mxu0 0
  %2658 = vmatprep.subr.bf16.mxu0 0
  %2659 = vmatpush1.bf16.msra.mxu0 0
  %2660 = vmatprep.subr.bf16.mxu0 0
  %2661 = vmatpush1.bf16.msra.mxu0 0
  %2662 = vmatprep.subr.bf16.mxu0 0
  %2663 = vmatpush1.bf16.msra.mxu0 0
  %2664 = vmatprep.mubr.bf16.mxu0 %v2630
  %2665 = vmatmul.mubr.bf16.gmra.mrb[0].mxu0 %v2572
  %v2666 = vpop.f32.mrb[0].mxu0
  %v2667 = vadd.f32 0.0, %v2666
  %v2668 = vpop.f32.mrb[0].mxu0
  %v2669 = vpop.f32.mrb[0].mxu0
  %v2670 = vpop.f32.mrb[0].mxu0
  %2671 = vdwg.mxu0
  %v2672 = vadd.f32 %v2550, %v2667
  %v2673 = vld [vmem:[%s11] sm:$0x1]
  %v2675 = vlaneseq
  %v2676 = vshrl.u32 %v2675, 7
  %v2677 = vsub.s32 0, %v2676
  %v2678 = vrot.slane %v2673, %v2677
  %v2680 = vadd.f32 %v2672, %v2678
  %v2681 = vsel %vm2141, %v2680, 0.0
  %v2682 = vrot.slane %v2681, 4
  %v2683 = vadd.f32 %v2681, %v2682
  %v2684 = vrot.slane %v2683, 2
  %v2685 = vadd.f32 %v2683, %v2684
  %v2686 = vrot.slane %v2685, 1
  %v2687 = vadd.f32 %v2685, %v2686
  %v2688 = vmul.f32 %v2680, %v2680
  %v2689 = vsel %vm2141, %v2688, 0.0
  %v2690 = vrot.slane %v2689, 4
  %v2691 = vadd.f32 %v2689, %v2690
  %v2692 = vrot.slane %v2691, 2
  %v2693 = vadd.f32 %v2691, %v2692
  %v2694 = vrot.slane %v2693, 1
  %v2695 = vadd.f32 %v2693, %v2694
  %v2696 = vmul.f32 %v1802, %v2069
  %v2697 = vmul.f32 %v1803, %v2073
  %v2698 = vmul.f32 %v1804, %v2069
  %v2699 = vmul.f32 %v1805, %v2073
  %v2700 = vadd.f32 %v2696, %v2105
  %v2701 = vadd.f32 %v2697, %v2109
  %v2702 = vadd.f32 %v2698, %v2105
  %v2703 = vadd.f32 %v2699, %v2109
  %vm2704 = vcmp.ge.f32.partialorder %v2700, 0.0
  %vm2705 = vcmp.ge.f32.partialorder %v2701, 0.0
  %vm2706 = vcmp.ge.f32.partialorder %v2702, 0.0
  %vm2707 = vcmp.ge.f32.partialorder %v2703, 0.0
  %v2708 = vmul.f32 %v2700, 0.02
  %v2709 = vmul.f32 %v2701, 0.02
  %v2710 = vmul.f32 %v2702, 0.02
  %v2711 = vmul.f32 %v2703, 0.02
  %v2712 = vsel %vm2704, %v2700, %v2708
  %v2713 = vsel %vm2705, %v2701, %v2709
  %v2714 = vsel %vm2706, %v2702, %v2710
  %v2715 = vsel %vm2707, %v2703, %v2711
  %v2716 = vpack.c.bf16 %v2714, %v2712
  %v2717 = vpack.c.bf16 %v2715, %v2713
  %v2719 = vand.u32 %v2716, %v2144
  %v2722 = vand.u32 %v2717, %v2144
  %2724 = vmatprep.subr.bf16.mxu0 %v2722
  %2725 = vmatpush1.bf16.msra.mxu0 %v2719
  %2726 = vmatprep.subr.bf16.mxu0 0
  %2727 = vmatpush1.bf16.msra.mxu0 0
  %2728 = vmatprep.subr.bf16.mxu0 0
  %2729 = vmatpush1.bf16.msra.mxu0 0
  %2730 = vmatprep.subr.bf16.mxu0 0
  %2731 = vmatpush1.bf16.msra.mxu0 0
  %2732 = vmatprep.subr.bf16.mxu0 0
  %2733 = vmatpush1.bf16.msra.mxu0 0
  %2734 = vmatprep.subr.bf16.mxu0 0
  %2735 = vmatpush1.bf16.msra.mxu0 0
  %2736 = vmatprep.subr.bf16.mxu0 0
  %2737 = vmatpush1.bf16.msra.mxu0 0
  %2738 = vmatprep.subr.bf16.mxu0 0
  %2739 = vmatpush1.bf16.msra.mxu0 0
  %2740 = vmatprep.subr.bf16.mxu0 0
  %2741 = vmatpush1.bf16.msra.mxu0 0
  %2742 = vmatprep.subr.bf16.mxu0 0
  %2743 = vmatpush1.bf16.msra.mxu0 0
  %2744 = vmatprep.subr.bf16.mxu0 0
  %2745 = vmatpush1.bf16.msra.mxu0 0
  %2746 = vmatprep.subr.bf16.mxu0 0
  %2747 = vmatpush1.bf16.msra.mxu0 0
  %2748 = vmatprep.subr.bf16.mxu0 0
  %2749 = vmatpush1.bf16.msra.mxu0 0
  %2750 = vmatprep.subr.bf16.mxu0 0
  %2751 = vmatpush1.bf16.msra.mxu0 0
  %2752 = vmatprep.subr.bf16.mxu0 0
  %2753 = vmatpush1.bf16.msra.mxu0 0
  %2754 = vmatprep.subr.bf16.mxu0 0
  %2755 = vmatpush1.bf16.msra.mxu0 0
  %2756 = vmatprep.mubr.bf16.mxu0 0
  %2757 = vmatmul.mubr.bf16.gmra.mrb[0].mxu0 %v2139
  %v2758 = vpop.f32.mrb[0].mxu0
  %v2759 = vadd.f32 0.0, %v2758
  %v2760 = vpop.f32.mrb[0].mxu0
  %v2761 = vadd.f32 0.0, %v2760
  %v2762 = vpop.f32.mrb[0].mxu0
  %v2763 = vadd.f32 0.0, %v2762
  %v2764 = vpop.f32.mrb[0].mxu0
  %v2765 = vadd.f32 0.0, %v2764
  %2766 = vdwg.mxu0
  %v2767 = vpack.c.bf16 %v2759, %v2759
  %v2768 = vpack.c.bf16 %v2761, %v2761
  %v2771 = vrot.slane %v2767, 2
  %v2772 = vrot.slane %v2768, 2
  %v2775 = vsel %vm758, %v2772, 0
  %2777 = vmatprep.subr.bf16.mxu0 0
  %2778 = vmatpush1.bf16.msra.mxu0 %v2274
  %2779 = vmatprep.subr.bf16.mxu0 0
  %2780 = vmatpush1.bf16.msra.mxu0 %v2275
  %2781 = vmatprep.subr.bf16.mxu0 0
  %2782 = vmatpush1.bf16.msra.mxu0 %v2276
  %2783 = vmatprep.subr.bf16.mxu0 0
  %2784 = vmatpush1.bf16.msra.mxu0 %v2277
  %2785 = vmatprep.subr.bf16.mxu0 0
  %2786 = vmatpush1.bf16.msra.mxu0 %v2278
  %2787 = vmatprep.subr.bf16.mxu0 0
  %2788 = vmatpush1.bf16.msra.mxu0 %v2279
  %2789 = vmatprep.subr.bf16.mxu0 0
  %2790 = vmatpush1.bf16.msra.mxu0 %v2280
  %2791 = vmatprep.subr.bf16.mxu0 0
  %2792 = vmatpush1.bf16.msra.mxu0 %v2281
  %2793 = vmatprep.subr.bf16.mxu0 0
  %2794 = vmatpush1.bf16.msra.mxu0 %v2282
  %2795 = vmatprep.subr.bf16.mxu0 0
  %2796 = vmatpush1.bf16.msra.mxu0 0
  %2797 = vmatprep.subr.bf16.mxu0 0
  %2798 = vmatpush1.bf16.msra.mxu0 0
  %2799 = vmatprep.subr.bf16.mxu0 0
  %2800 = vmatpush1.bf16.msra.mxu0 0
  %2801 = vmatprep.subr.bf16.mxu0 0
  %2802 = vmatpush1.bf16.msra.mxu0 0
  %2803 = vmatprep.subr.bf16.mxu0 0
  %2804 = vmatpush1.bf16.msra.mxu0 0
  %2805 = vmatprep.subr.bf16.mxu0 0
  %2806 = vmatpush1.bf16.msra.mxu0 0
  %2807 = vmatprep.subr.bf16.mxu0 0
  %2808 = vmatpush1.bf16.msra.mxu0 0
  %2809 = vmatprep.mubr.bf16.mxu0 %v2775
  %2810 = vmatmul.mubr.bf16.gmra.mrb[0].mxu0 %v2771
  %v2811 = vpop.f32.mrb[0].mxu0
  %v2812 = vadd.f32 0.0, %v2811
  %v2813 = vpop.f32.mrb[0].mxu0
  %v2814 = vpop.f32.mrb[0].mxu0
  %v2815 = vpop.f32.mrb[0].mxu0
  %2816 = vdwg.mxu0
  %v2818 = vsel %vm758, %v2768, 0
  %2820 = vmatprep.subr.bf16.mxu0 0
  %2821 = vmatpush1.bf16.msra.mxu0 %v2371
  %2822 = vmatprep.subr.bf16.mxu0 0
  %2823 = vmatpush1.bf16.msra.mxu0 %v2372
  %2824 = vmatprep.subr.bf16.mxu0 0
  %2825 = vmatpush1.bf16.msra.mxu0 %v2373
  %2826 = vmatprep.subr.bf16.mxu0 0
  %2827 = vmatpush1.bf16.msra.mxu0 %v2374
  %2828 = vmatprep.subr.bf16.mxu0 0
  %2829 = vmatpush1.bf16.msra.mxu0 %v2375
  %2830 = vmatprep.subr.bf16.mxu0 0
  %2831 = vmatpush1.bf16.msra.mxu0 %v2376
  %2832 = vmatprep.subr.bf16.mxu0 0
  %2833 = vmatpush1.bf16.msra.mxu0 %v2377
  %2834 = vmatprep.subr.bf16.mxu0 0
  %2835 = vmatpush1.bf16.msra.mxu0 %v2378
  %2836 = vmatprep.subr.bf16.mxu0 0
  %2837 = vmatpush1.bf16.msra.mxu0 %v2379
  %2838 = vmatprep.subr.bf16.mxu0 0
  %2839 = vmatpush1.bf16.msra.mxu0 0
  %2840 = vmatprep.subr.bf16.mxu0 0
  %2841 = vmatpush1.bf16.msra.mxu0 0
  %2842 = vmatprep.subr.bf16.mxu0 0
  %2843 = vmatpush1.bf16.msra.mxu0 0
  %2844 = vmatprep.subr.bf16.mxu0 0
  %2845 = vmatpush1.bf16.msra.mxu0 0
  %2846 = vmatprep.subr.bf16.mxu0 0
  %2847 = vmatpush1.bf16.msra.mxu0 0
  %2848 = vmatprep.subr.bf16.mxu0 0
  %2849 = vmatpush1.bf16.msra.mxu0 0
  %2850 = vmatprep.subr.bf16.mxu0 0
  %2851 = vmatpush1.bf16.msra.mxu0 0
  %2852 = vmatprep.mubr.bf16.mxu0 %v2818
  %2853 = vmatmul.mubr.bf16.gmra.mrb[0].mxu0 %v2767
  %v2854 = vpop.f32.mrb[0].mxu0
  %v2855 = vadd.f32 %v2812, %v2854
  %v2856 = vpop.f32.mrb[0].mxu0
  %v2857 = vpop.f32.mrb[0].mxu0
  %v2858 = vpop.f32.mrb[0].mxu0
  %2859 = vdwg.mxu0
  %v2860 = vpack.c.bf16 %v2763, %v2763
  %v2861 = vpack.c.bf16 %v2765, %v2765
  %v2863 = vsel %vm758, %v2861, 0
  %2865 = vmatprep.subr.bf16.mxu0 0
  %2866 = vmatpush1.bf16.msra.mxu0 %v2489
  %2867 = vmatprep.subr.bf16.mxu0 0
  %2868 = vmatpush1.bf16.msra.mxu0 %v2490
  %2869 = vmatprep.subr.bf16.mxu0 0
  %2870 = vmatpush1.bf16.msra.mxu0 %v2491
  %2871 = vmatprep.subr.bf16.mxu0 0
  %2872 = vmatpush1.bf16.msra.mxu0 %v2492
  %2873 = vmatprep.subr.bf16.mxu0 0
  %2874 = vmatpush1.bf16.msra.mxu0 %v2493
  %2875 = vmatprep.subr.bf16.mxu0 0
  %2876 = vmatpush1.bf16.msra.mxu0 %v2494
  %2877 = vmatprep.subr.bf16.mxu0 0
  %2878 = vmatpush1.bf16.msra.mxu0 %v2495
  %2879 = vmatprep.subr.bf16.mxu0 0
  %2880 = vmatpush1.bf16.msra.mxu0 %v2496
  %2881 = vmatprep.subr.bf16.mxu0 0
  %2882 = vmatpush1.bf16.msra.mxu0 %v2497
  %2883 = vmatprep.subr.bf16.mxu0 0
  %2884 = vmatpush1.bf16.msra.mxu0 0
  %2885 = vmatprep.subr.bf16.mxu0 0
  %2886 = vmatpush1.bf16.msra.mxu0 0
  %2887 = vmatprep.subr.bf16.mxu0 0
  %2888 = vmatpush1.bf16.msra.mxu0 0
  %2889 = vmatprep.subr.bf16.mxu0 0
  %2890 = vmatpush1.bf16.msra.mxu0 0
  %2891 = vmatprep.subr.bf16.mxu0 0
  %2892 = vmatpush1.bf16.msra.mxu0 0
  %2893 = vmatprep.subr.bf16.mxu0 0
  %2894 = vmatpush1.bf16.msra.mxu0 0
  %2895 = vmatprep.subr.bf16.mxu0 0
  %2896 = vmatpush1.bf16.msra.mxu0 0
  %2897 = vmatprep.mubr.bf16.mxu0 %v2863
  %2898 = vmatmul.mubr.bf16.gmra.mrb[0].mxu0 %v2860
  %v2899 = vpop.f32.mrb[0].mxu0
  %v2900 = vadd.f32 0.0, %v2899
  %v2901 = vpop.f32.mrb[0].mxu0
  %v2902 = vpop.f32.mrb[0].mxu0
  %v2903 = vpop.f32.mrb[0].mxu0
  %2904 = vdwg.mxu0
  %v2905 = vadd.f32 %v2855, %v2900
  %v2908 = vrot.slane %v2860, 2
  %v2909 = vrot.slane %v2861, 2
  %v2912 = vsel %vm758, %v2909, 0
  %2914 = vmatprep.subr.bf16.mxu0 0
  %2915 = vmatpush1.bf16.msra.mxu0 %v2611
  %2916 = vmatprep.subr.bf16.mxu0 0
  %2917 = vmatpush1.bf16.msra.mxu0 %v2612
  %2918 = vmatprep.subr.bf16.mxu0 0
  %2919 = vmatpush1.bf16.msra.mxu0 %v2613
  %2920 = vmatprep.subr.bf16.mxu0 0
  %2921 = vmatpush1.bf16.msra.mxu0 %v2614
  %2922 = vmatprep.subr.bf16.mxu0 0
  %2923 = vmatpush1.bf16.msra.mxu0 %v2615
  %2924 = vmatprep.subr.bf16.mxu0 0
  %2925 = vmatpush1.bf16.msra.mxu0 %v2616
  %2926 = vmatprep.subr.bf16.mxu0 0
  %2927 = vmatpush1.bf16.msra.mxu0 %v2617
  %2928 = vmatprep.subr.bf16.mxu0 0
  %2929 = vmatpush1.bf16.msra.mxu0 %v2618
  %2930 = vmatprep.subr.bf16.mxu0 0
  %2931 = vmatpush1.bf16.msra.mxu0 %v2619
  %2932 = vmatprep.subr.bf16.mxu0 0
  %2933 = vmatpush1.bf16.msra.mxu0 0
  %2934 = vmatprep.subr.bf16.mxu0 0
  %2935 = vmatpush1.bf16.msra.mxu0 0
  %2936 = vmatprep.subr.bf16.mxu0 0
  %2937 = vmatpush1.bf16.msra.mxu0 0
  %2938 = vmatprep.subr.bf16.mxu0 0
  %2939 = vmatpush1.bf16.msra.mxu0 0
  %2940 = vmatprep.subr.bf16.mxu0 0
  %2941 = vmatpush1.bf16.msra.mxu0 0
  %2942 = vmatprep.subr.bf16.mxu0 0
  %2943 = vmatpush1.bf16.msra.mxu0 0
  %2944 = vmatprep.subr.bf16.mxu0 0
  %2945 = vmatpush1.bf16.msra.mxu0 0
  %2946 = vmatprep.mubr.bf16.mxu0 %v2912
  %2947 = vmatmul.mubr.bf16.gmra.mrb[0].mxu0 %v2908
  %v2948 = vpop.f32.mrb[0].mxu0
  %v2949 = vadd.f32 0.0, %v2948
  %v2950 = vpop.f32.mrb[0].mxu0
  %v2951 = vpop.f32.mrb[0].mxu0
  %v2952 = vpop.f32.mrb[0].mxu0
  %2953 = vdwg.mxu0
  %v2954 = vadd.f32 %v2905, %v2949
  %v2955 = vadd.f32 %v2954, %v2678
  %v2956 = vsel %vm2141, %v2955, 0.0
  %v2957 = vrot.slane %v2956, 4
  %v2958 = vadd.f32 %v2956, %v2957
  %v2959 = vrot.slane %v2958, 2
  %v2960 = vadd.f32 %v2958, %v2959
  %v2961 = vrot.slane %v2960, 1
  %v2962 = vadd.f32 %v2960, %v2961
  %v2963 = vmul.f32 %v2955, %v2955
  %v2964 = vsel %vm2141, %v2963, 0.0
  %v2965 = vrot.slane %v2964, 4
  %v2966 = vadd.f32 %v2964, %v2965
  %v2967 = vrot.slane %v2966, 2
  %v2968 = vadd.f32 %v2966, %v2967
  %v2969 = vrot.slane %v2968, 1
  %v2970 = vadd.f32 %v2968, %v2969
  %v2971 = vadd.f32 %v2687, %v2962
  %v2972 = vadd.f32 %v2695, %v2970
  %v2973 = vld [vmem:[%s12] sm:$0xff]
  %v2974 = vld [vmem:[%s12 + $0x8] sm:$0xff]
  %v2975 = vld [vmem:[%s12 + $0x10] sm:$0xff]
  %v2976 = vld [vmem:[%s12 + $0x18] sm:$0xff]
  %v2977 = vld [vmem:[%s12 + $0x20] sm:$0xff]
  %v2978 = vld [vmem:[%s12 + $0x28] sm:$0xff]
  %v2979 = vld [vmem:[%s12 + $0x30] sm:$0xff]
  %v2980 = vld [vmem:[%s12 + $0x38] sm:$0xff]
  %v2981 = vld [vmem:[%s12 + $0x40] sm:$0xff]
  %v2982 = vld [vmem:[%s12 + $0x48] sm:$0xff]
  %v2983 = vld [vmem:[%s12 + $0x50] sm:$0xff]
  %v2984 = vld [vmem:[%s12 + $0x58] sm:$0xff]
  %v2985 = vld [vmem:[%s12 + $0x60] sm:$0xff]
  %v2986 = vld [vmem:[%s12 + $0x68] sm:$0xff]
  %v2987 = vld [vmem:[%s12 + $0x70] sm:$0xff]
  %v2988 = vld [vmem:[%s12 + $0x78] sm:$0xff]
  %2989 = vmatprep.subr.mxu0 0.0
  %2990 = vmatpush1.msra.mxu0 %v2973
  %2991 = vmatprep.subr.mxu0 0.0
  %2992 = vmatpush1.msra.mxu0 %v2974
  %2993 = vmatprep.subr.mxu0 0.0
  %2994 = vmatpush1.msra.mxu0 %v2975
  %2995 = vmatprep.subr.mxu0 0.0
  %2996 = vmatpush1.msra.mxu0 %v2976
  %2997 = vmatprep.subr.mxu0 0.0
  %2998 = vmatpush1.msra.mxu0 %v2977
  %2999 = vmatprep.subr.mxu0 0.0
  %3000 = vmatpush1.msra.mxu0 %v2978
  %3001 = vmatprep.subr.mxu0 0.0
  %3002 = vmatpush1.msra.mxu0 %v2979
  %3003 = vmatprep.subr.mxu0 0.0
  %3004 = vmatpush1.msra.mxu0 %v2980
  %3005 = vmatprep.subr.mxu0 0.0
  %3006 = vmatpush1.msra.mxu0 %v2981
  %3007 = vmatprep.subr.mxu0 0.0
  %3008 = vmatpush1.msra.mxu0 %v2982
  %3009 = vmatprep.subr.mxu0 0.0
  %3010 = vmatpush1.msra.mxu0 %v2983
  %3011 = vmatprep.subr.mxu0 0.0
  %3012 = vmatpush1.msra.mxu0 %v2984
  %3013 = vmatprep.subr.mxu0 0.0
  %3014 = vmatpush1.msra.mxu0 %v2985
  %3015 = vmatprep.subr.mxu0 0.0
  %3016 = vmatpush1.msra.mxu0 %v2986
  %3017 = vmatprep.subr.mxu0 0.0
  %3018 = vmatpush1.msra.mxu0 %v2987
  %3019 = vmatprep.subr.mxu0 0.0
  %3020 = vmatpush1.msra.mxu0 %v2988
  %3021 = vmatprep.subr.mxu0 0.0
  %3022 = vmatpush1.msra.mxu0 0.0
  %3023 = vmatprep.subr.mxu0 0.0
  %3024 = vmatpush1.msra.mxu0 0.0
  %3025 = vmatprep.subr.mxu0 0.0
  %3026 = vmatpush1.msra.mxu0 0.0
  %3027 = vmatprep.subr.mxu0 0.0
  %3028 = vmatpush1.msra.mxu0 0.0
  %3029 = vmatprep.subr.mxu0 0.0
  %3030 = vmatpush1.msra.mxu0 0.0
  %3031 = vmatprep.subr.mxu0 0.0
  %3032 = vmatpush1.msra.mxu0 0.0
  %3033 = vmatprep.subr.mxu0 0.0
  %3034 = vmatpush1.msra.mxu0 0.0
  %3035 = vmatprep.subr.mxu0 0.0
  %3036 = vmatpush1.msra.mxu0 0.0
  %3037 = vmatprep.subr.mxu0 0.0
  %3038 = vmatpush1.msra.mxu0 0.0
  %3039 = vmatprep.subr.mxu0 0.0
  %3040 = vmatpush1.msra.mxu0 0.0
  %3041 = vmatprep.subr.mxu0 0.0
  %3042 = vmatpush1.msra.mxu0 0.0
  %3043 = vmatprep.subr.mxu0 0.0
  %3044 = vmatpush1.msra.mxu0 0.0
  %3045 = vmatprep.subr.mxu0 0.0
  %3046 = vmatpush1.msra.mxu0 0.0
  %3047 = vmatprep.subr.mxu0 0.0
  %3048 = vmatpush1.msra.mxu0 0.0
  %3049 = vmatprep.subr.mxu0 0.0
  %3050 = vmatpush1.msra.mxu0 0.0
  %3051 = vmatprep.subr.mxu0 0.0
  %3052 = vmatpush1.msra.mxu0 0.0
  %3053 = vmatprep.mubr.f32.mxu0 0.0
  %3054 = vmatmul.mubr.f32.gmra.mrb[0].mxu0 %v2971
  %v3055 = vpop.f32.mrb[0].mxu0
  %v3056 = vadd.f32 0.0, %v3055
  %v3057 = vpop.f32.mrb[0].mxu0
  %3058 = vdwg.mxu0
  %v3059 = vmul.f32 %v3056, 0.03125
  %3060 = vmatprep.subr.mxu0 0.0
  %3061 = vmatpush1.msra.mxu0 %v2973
  %3062 = vmatprep.subr.mxu0 0.0
  %3063 = vmatpush1.msra.mxu0 %v2974
  %3064 = vmatprep.subr.mxu0 0.0
  %3065 = vmatpush1.msra.mxu0 %v2975
  %3066 = vmatprep.subr.mxu0 0.0
  %3067 = vmatpush1.msra.mxu0 %v2976
  %3068 = vmatprep.subr.mxu0 0.0
  %3069 = vmatpush1.msra.mxu0 %v2977
  %3070 = vmatprep.subr.mxu0 0.0
  %3071 = vmatpush1.msra.mxu0 %v2978
  %3072 = vmatprep.subr.mxu0 0.0
  %3073 = vmatpush1.msra.mxu0 %v2979
  %3074 = vmatprep.subr.mxu0 0.0
  %3075 = vmatpush1.msra.mxu0 %v2980
  %3076 = vmatprep.subr.mxu0 0.0
  %3077 = vmatpush1.msra.mxu0 %v2981
  %3078 = vmatprep.subr.mxu0 0.0
  %3079 = vmatpush1.msra.mxu0 %v2982
  %3080 = vmatprep.subr.mxu0 0.0
  %3081 = vmatpush1.msra.mxu0 %v2983
  %3082 = vmatprep.subr.mxu0 0.0
  %3083 = vmatpush1.msra.mxu0 %v2984
  %3084 = vmatprep.subr.mxu0 0.0
  %3085 = vmatpush1.msra.mxu0 %v2985
  %3086 = vmatprep.subr.mxu0 0.0
  %3087 = vmatpush1.msra.mxu0 %v2986
  %3088 = vmatprep.subr.mxu0 0.0
  %3089 = vmatpush1.msra.mxu0 %v2987
  %3090 = vmatprep.subr.mxu0 0.0
  %3091 = vmatpush1.msra.mxu0 %v2988
  %3092 = vmatprep.subr.mxu0 0.0
  %3093 = vmatpush1.msra.mxu0 0.0
  %3094 = vmatprep.subr.mxu0 0.0
  %3095 = vmatpush1.msra.mxu0 0.0
  %3096 = vmatprep.subr.mxu0 0.0
  %3097 = vmatpush1.msra.mxu0 0.0
  %3098 = vmatprep.subr.mxu0 0.0
  %3099 = vmatpush1.msra.mxu0 0.0
  %3100 = vmatprep.subr.mxu0 0.0
  %3101 = vmatpush1.msra.mxu0 0.0
  %3102 = vmatprep.subr.mxu0 0.0
  %3103 = vmatpush1.msra.mxu0 0.0
  %3104 = vmatprep.subr.mxu0 0.0
  %3105 = vmatpush1.msra.mxu0 0.0
  %3106 = vmatprep.subr.mxu0 0.0
  %3107 = vmatpush1.msra.mxu0 0.0
  %3108 = vmatprep.subr.mxu0 0.0
  %3109 = vmatpush1.msra.mxu0 0.0
  %3110 = vmatprep.subr.mxu0 0.0
  %3111 = vmatpush1.msra.mxu0 0.0
  %3112 = vmatprep.subr.mxu0 0.0
  %3113 = vmatpush1.msra.mxu0 0.0
  %3114 = vmatprep.subr.mxu0 0.0
  %3115 = vmatpush1.msra.mxu0 0.0
  %3116 = vmatprep.subr.mxu0 0.0
  %3117 = vmatpush1.msra.mxu0 0.0
  %3118 = vmatprep.subr.mxu0 0.0
  %3119 = vmatpush1.msra.mxu0 0.0
  %3120 = vmatprep.subr.mxu0 0.0
  %3121 = vmatpush1.msra.mxu0 0.0
  %3122 = vmatprep.subr.mxu0 0.0
  %3123 = vmatpush1.msra.mxu0 0.0
  %3124 = vmatprep.mubr.f32.mxu0 0.0
  %3125 = vmatmul.mubr.f32.gmra.mrb[0].mxu0 %v2972
  %v3126 = vpop.f32.mrb[0].mxu0
  %v3127 = vadd.f32 0.0, %v3126
  %v3128 = vpop.f32.mrb[0].mxu0
  %3129 = vdwg.mxu0
  %v3130 = vmul.f32 %v3127, 0.03125
  %v3131 = vmul.f32 %v3059, %v3059
  %v3132 = vsub.f32 %v3130, %v3131
  %v3133 = vld [vmem:[%s13] sm:$0x1]
  %v3134 = vadd.f32 %v3132, 1e-05
  %v3135 = vrsqrt.pop %v3134
  %v3136 = vmul.f32 %v3133, %v3135
  %v3137 = vld [vmem:[%s14] sm:$0x1]
  %v3138 = vmul.f32 %v3059, %v3136
  %v3139 = vsub.f32 %v3137, %v3138
  %v3141 = vlaneseq
  %v3142 = vshrl.u32 %v3141, 7
  %v3143 = vsub.s32 0, %v3142
  %v3144 = vrot.slane %v3136, %v3143
  %v3146 = vmul.f32 %v2680, %v3144
  %v3148 = vlaneseq
  %v3149 = vshrl.u32 %v3148, 7
  %v3150 = vsub.s32 0, %v3149
  %v3151 = vrot.slane %v3139, %v3150
  %v3153 = vadd.f32 %v3146, %v3151
  %vm3154 = vcmp.ge.f32.partialorder %v3153, 0.0
  %v3155 = vmul.f32 %v3153, 0.02
  %v3156 = vsel %vm3154, %v3153, %v3155
  %v3157 = vpack.c.bf16 %v3156, %v3156
  %v3158 = vld [vmem:[%s15] sm:$0xf]
  %v3159 = vld [vmem:[%s15 + $0x4] sm:$0xf]
  %v3160 = vld [vmem:[%s15 + $0x8] sm:$0xf]
  %v3161 = vld [vmem:[%s15 + $0xc] sm:$0xf]
  %v3162 = vld [vmem:[%s15 + $0x10] sm:$0xf]
  %v3163 = vld [vmem:[%s15 + $0x14] sm:$0xf]
  %v3164 = vld [vmem:[%s15 + $0x18] sm:$0xf]
  %v3165 = vld [vmem:[%s15 + $0x1c] sm:$0xf]
  %v3166 = vld [vmem:[%s15 + $0x20] sm:$0xf]
  %v3167 = vld [vmem:[%s15 + $0x24] sm:$0xf]
  %v3168 = vld [vmem:[%s15 + $0x28] sm:$0xf]
  %v3169 = vld [vmem:[%s15 + $0x2c] sm:$0xf]
  %v3170 = vld [vmem:[%s15 + $0x30] sm:$0xf]
  %v3171 = vld [vmem:[%s15 + $0x34] sm:$0xf]
  %v3172 = vld [vmem:[%s15 + $0x38] sm:$0xf]
  %v3173 = vld [vmem:[%s15 + $0x3c] sm:$0xf]
  %s3174 = scalar_lea.vmem %s15, 64
  %v3175 = vld [vmem:[%s3174] sm:$0xf]
  %v3176 = vld [vmem:[%s3174 + $0x4] sm:$0xf]
  %v3177 = vld [vmem:[%s3174 + $0x8] sm:$0xf]
  %v3178 = vld [vmem:[%s3174 + $0xc] sm:$0xf]
  %v3179 = vld [vmem:[%s3174 + $0x10] sm:$0xf]
  %v3180 = vld [vmem:[%s3174 + $0x14] sm:$0xf]
  %v3181 = vld [vmem:[%s3174 + $0x18] sm:$0xf]
  %v3182 = vld [vmem:[%s3174 + $0x1c] sm:$0xf]
  %v3183 = vld [vmem:[%s3174 + $0x20] sm:$0xf]
  %v3184 = vld [vmem:[%s3174 + $0x24] sm:$0xf]
  %v3185 = vld [vmem:[%s3174 + $0x28] sm:$0xf]
  %v3186 = vld [vmem:[%s3174 + $0x2c] sm:$0xf]
  %v3187 = vld [vmem:[%s3174 + $0x30] sm:$0xf]
  %v3188 = vld [vmem:[%s3174 + $0x34] sm:$0xf]
  %v3189 = vld [vmem:[%s3174 + $0x38] sm:$0xf]
  %v3190 = vld [vmem:[%s3174 + $0x3c] sm:$0xf]
  %v3192 = vshrl.u32 %v3157, 16
  %v3211 = vunpack.c.l.b16 %v3175
  %v3212 = vunpack.c.l.b16 %v3176
  %v3213 = vunpack.c.l.b16 %v3177
  %v3214 = vunpack.c.l.b16 %v3178
  %v3215 = vunpack.c.l.b16 %v3179
  %v3216 = vunpack.c.l.b16 %v3180
  %v3217 = vunpack.c.l.b16 %v3181
  %v3218 = vunpack.c.l.b16 %v3182
  %v3219 = vunpack.c.l.b16 %v3183
  %v3220 = vunpack.c.l.b16 %v3184
  %v3221 = vunpack.c.l.b16 %v3185
  %v3222 = vunpack.c.l.b16 %v3186
  %v3223 = vunpack.c.l.b16 %v3187
  %v3224 = vunpack.c.l.b16 %v3188
  %v3225 = vunpack.c.l.b16 %v3189
  %v3226 = vunpack.c.l.b16 %v3190
  %v3227 = vpack.c.b16 %v3212, %v3211
  %v3228 = vpack.c.b16 %v3214, %v3213
  %v3229 = vpack.c.b16 %v3216, %v3215
  %v3230 = vpack.c.b16 %v3218, %v3217
  %v3231 = vpack.c.b16 %v3220, %v3219
  %v3232 = vpack.c.b16 %v3222, %v3221
  %v3233 = vpack.c.b16 %v3224, %v3223
  %v3234 = vpack.c.b16 %v3226, %v3225
  %3243 = vmatprep.subr.bf16.mxu0 0
  %3244 = vmatpush1.bf16.msra.mxu0 %v3227
  %3245 = vmatprep.subr.bf16.mxu0 0
  %3246 = vmatpush1.bf16.msra.mxu0 %v3228
  %3247 = vmatprep.subr.bf16.mxu0 0
  %3248 = vmatpush1.bf16.msra.mxu0 %v3229
  %3249 = vmatprep.subr.bf16.mxu0 0
  %3250 = vmatpush1.bf16.msra.mxu0 %v3230
  %3251 = vmatprep.subr.bf16.mxu0 0
  %3252 = vmatpush1.bf16.msra.mxu0 %v3231
  %3253 = vmatprep.subr.bf16.mxu0 0
  %3254 = vmatpush1.bf16.msra.mxu0 %v3232
  %3255 = vmatprep.subr.bf16.mxu0 0
  %3256 = vmatpush1.bf16.msra.mxu0 %v3233
  %3257 = vmatprep.subr.bf16.mxu0 0
  %3258 = vmatpush1.bf16.msra.mxu0 %v3234
  %3259 = vmatprep.subr.bf16.mxu0 0
  %3260 = vmatpush1.bf16.msra.mxu0 0
  %3261 = vmatprep.subr.bf16.mxu0 0
  %3262 = vmatpush1.bf16.msra.mxu0 0
  %3263 = vmatprep.subr.bf16.mxu0 0
  %3264 = vmatpush1.bf16.msra.mxu0 0
  %3265 = vmatprep.subr.bf16.mxu0 0
  %3266 = vmatpush1.bf16.msra.mxu0 0
  %3267 = vmatprep.subr.bf16.mxu0 0
  %3268 = vmatpush1.bf16.msra.mxu0 0
  %3269 = vmatprep.subr.bf16.mxu0 0
  %3270 = vmatpush1.bf16.msra.mxu0 0
  %3271 = vmatprep.subr.bf16.mxu0 0
  %3272 = vmatpush1.bf16.msra.mxu0 0
  %3273 = vmatprep.subr.bf16.mxu0 0
  %3274 = vmatpush1.bf16.msra.mxu0 0
  %3275 = vmatprep.mubr.bf16.mxu0 0
  %3276 = vmatmul.mubr.bf16.gmra.mrb[0].mxu0 %v3192
  %v3277 = vpop.f32.mrb[0].mxu0
  %v3278 = vadd.f32 0.0, %v3277
  %v3279 = vpop.f32.mrb[0].mxu0
  %v3280 = vpop.f32.mrb[0].mxu0
  %v3281 = vpop.f32.mrb[0].mxu0
  %3282 = vdwg.mxu0
  %v3299 = vunpack.c.l.b16 %v3158
  %v3300 = vunpack.c.l.b16 %v3159
  %v3301 = vunpack.c.l.b16 %v3160
  %v3302 = vunpack.c.l.b16 %v3161
  %v3303 = vunpack.c.l.b16 %v3162
  %v3304 = vunpack.c.l.b16 %v3163
  %v3305 = vunpack.c.l.b16 %v3164
  %v3306 = vunpack.c.l.b16 %v3165
  %v3307 = vunpack.c.l.b16 %v3166
  %v3308 = vunpack.c.l.b16 %v3167
  %v3309 = vunpack.c.l.b16 %v3168
  %v3310 = vunpack.c.l.b16 %v3169
  %v3311 = vunpack.c.l.b16 %v3170
  %v3312 = vunpack.c.l.b16 %v3171
  %v3313 = vunpack.c.l.b16 %v3172
  %v3314 = vunpack.c.l.b16 %v3173
  %v3315 = vpack.c.b16 %v3300, %v3299
  %v3316 = vpack.c.b16 %v3302, %v3301
  %v3317 = vpack.c.b16 %v3304, %v3303
  %v3318 = vpack.c.b16 %v3306, %v3305
  %v3319 = vpack.c.b16 %v3308, %v3307
  %v3320 = vpack.c.b16 %v3310, %v3309
  %v3321 = vpack.c.b16 %v3312, %v3311
  %v3322 = vpack.c.b16 %v3314, %v3313
  %3331 = vmatprep.subr.bf16.mxu0 0
  %3332 = vmatpush1.bf16.msra.mxu0 %v3315
  %3333 = vmatprep.subr.bf16.mxu0 0
  %3334 = vmatpush1.bf16.msra.mxu0 %v3316
  %3335 = vmatprep.subr.bf16.mxu0 0
  %3336 = vmatpush1.bf16.msra.mxu0 %v3317
  %3337 = vmatprep.subr.bf16.mxu0 0
  %3338 = vmatpush1.bf16.msra.mxu0 %v3318
  %3339 = vmatprep.subr.bf16.mxu0 0
  %3340 = vmatpush1.bf16.msra.mxu0 %v3319
  %3341 = vmatprep.subr.bf16.mxu0 0
  %3342 = vmatpush1.bf16.msra.mxu0 %v3320
  %3343 = vmatprep.subr.bf16.mxu0 0
  %3344 = vmatpush1.bf16.msra.mxu0 %v3321
  %3345 = vmatprep.subr.bf16.mxu0 0
  %3346 = vmatpush1.bf16.msra.mxu0 %v3322
  %3347 = vmatprep.subr.bf16.mxu0 0
  %3348 = vmatpush1.bf16.msra.mxu0 0
  %3349 = vmatprep.subr.bf16.mxu0 0
  %3350 = vmatpush1.bf16.msra.mxu0 0
  %3351 = vmatprep.subr.bf16.mxu0 0
  %3352 = vmatpush1.bf16.msra.mxu0 0
  %3353 = vmatprep.subr.bf16.mxu0 0
  %3354 = vmatpush1.bf16.msra.mxu0 0
  %3355 = vmatprep.subr.bf16.mxu0 0
  %3356 = vmatpush1.bf16.msra.mxu0 0
  %3357 = vmatprep.subr.bf16.mxu0 0
  %3358 = vmatpush1.bf16.msra.mxu0 0
  %3359 = vmatprep.subr.bf16.mxu0 0
  %3360 = vmatpush1.bf16.msra.mxu0 0
  %3361 = vmatprep.subr.bf16.mxu0 0
  %3362 = vmatpush1.bf16.msra.mxu0 0
  %3363 = vmatprep.mubr.bf16.mxu0 0
  %3364 = vmatmul.mubr.bf16.gmra.mrb[0].mxu0 %v3157
  %v3365 = vpop.f32.mrb[0].mxu0
  %v3366 = vadd.f32 %v3278, %v3365
  %v3367 = vpop.f32.mrb[0].mxu0
  %v3368 = vpop.f32.mrb[0].mxu0
  %v3369 = vpop.f32.mrb[0].mxu0
  %3370 = vdwg.mxu0
  %s3371 = scalar_lea.vmem %s15, 128
  %v3372 = vld [vmem:[%s3371] sm:$0xf]
  %v3373 = vld [vmem:[%s3371 + $0x4] sm:$0xf]
  %v3374 = vld [vmem:[%s3371 + $0x8] sm:$0xf]
  %v3375 = vld [vmem:[%s3371 + $0xc] sm:$0xf]
  %v3376 = vld [vmem:[%s3371 + $0x10] sm:$0xf]
  %v3377 = vld [vmem:[%s3371 + $0x14] sm:$0xf]
  %v3378 = vld [vmem:[%s3371 + $0x18] sm:$0xf]
  %v3379 = vld [vmem:[%s3371 + $0x1c] sm:$0xf]
  %v3380 = vld [vmem:[%s3371 + $0x20] sm:$0xf]
  %v3381 = vld [vmem:[%s3371 + $0x24] sm:$0xf]
  %v3382 = vld [vmem:[%s3371 + $0x28] sm:$0xf]
  %v3383 = vld [vmem:[%s3371 + $0x2c] sm:$0xf]
  %v3384 = vld [vmem:[%s3371 + $0x30] sm:$0xf]
  %v3385 = vld [vmem:[%s3371 + $0x34] sm:$0xf]
  %v3386 = vld [vmem:[%s3371 + $0x38] sm:$0xf]
  %v3387 = vld [vmem:[%s3371 + $0x3c] sm:$0xf]
  %v3389 = vrot.slane %v3157, 1
  %v3407 = vunpack.c.l.b16 %v3372
  %v3408 = vunpack.c.l.b16 %v3373
  %v3409 = vunpack.c.l.b16 %v3374
  %v3410 = vunpack.c.l.b16 %v3375
  %v3411 = vunpack.c.l.b16 %v3376
  %v3412 = vunpack.c.l.b16 %v3377
  %v3413 = vunpack.c.l.b16 %v3378
  %v3414 = vunpack.c.l.b16 %v3379
  %v3415 = vunpack.c.l.b16 %v3380
  %v3416 = vunpack.c.l.b16 %v3381
  %v3417 = vunpack.c.l.b16 %v3382
  %v3418 = vunpack.c.l.b16 %v3383
  %v3419 = vunpack.c.l.b16 %v3384
  %v3420 = vunpack.c.l.b16 %v3385
  %v3421 = vunpack.c.l.b16 %v3386
  %v3422 = vunpack.c.l.b16 %v3387
  %v3423 = vpack.c.b16 %v3408, %v3407
  %v3424 = vpack.c.b16 %v3410, %v3409
  %v3425 = vpack.c.b16 %v3412, %v3411
  %v3426 = vpack.c.b16 %v3414, %v3413
  %v3427 = vpack.c.b16 %v3416, %v3415
  %v3428 = vpack.c.b16 %v3418, %v3417
  %v3429 = vpack.c.b16 %v3420, %v3419
  %v3430 = vpack.c.b16 %v3422, %v3421
  %3439 = vmatprep.subr.bf16.mxu0 0
  %3440 = vmatpush1.bf16.msra.mxu0 %v3423
  %3441 = vmatprep.subr.bf16.mxu0 0
  %3442 = vmatpush1.bf16.msra.mxu0 %v3424
  %3443 = vmatprep.subr.bf16.mxu0 0
  %3444 = vmatpush1.bf16.msra.mxu0 %v3425
  %3445 = vmatprep.subr.bf16.mxu0 0
  %3446 = vmatpush1.bf16.msra.mxu0 %v3426
  %3447 = vmatprep.subr.bf16.mxu0 0
  %3448 = vmatpush1.bf16.msra.mxu0 %v3427
  %3449 = vmatprep.subr.bf16.mxu0 0
  %3450 = vmatpush1.bf16.msra.mxu0 %v3428
  %3451 = vmatprep.subr.bf16.mxu0 0
  %3452 = vmatpush1.bf16.msra.mxu0 %v3429
  %3453 = vmatprep.subr.bf16.mxu0 0
  %3454 = vmatpush1.bf16.msra.mxu0 %v3430
  %3455 = vmatprep.subr.bf16.mxu0 0
  %3456 = vmatpush1.bf16.msra.mxu0 0
  %3457 = vmatprep.subr.bf16.mxu0 0
  %3458 = vmatpush1.bf16.msra.mxu0 0
  %3459 = vmatprep.subr.bf16.mxu0 0
  %3460 = vmatpush1.bf16.msra.mxu0 0
  %3461 = vmatprep.subr.bf16.mxu0 0
  %3462 = vmatpush1.bf16.msra.mxu0 0
  %3463 = vmatprep.subr.bf16.mxu0 0
  %3464 = vmatpush1.bf16.msra.mxu0 0
  %3465 = vmatprep.subr.bf16.mxu0 0
  %3466 = vmatpush1.bf16.msra.mxu0 0
  %3467 = vmatprep.subr.bf16.mxu0 0
  %3468 = vmatpush1.bf16.msra.mxu0 0
  %3469 = vmatprep.subr.bf16.mxu0 0
  %3470 = vmatpush1.bf16.msra.mxu0 0
  %3471 = vmatprep.mubr.bf16.mxu0 0
  %3472 = vmatmul.mubr.bf16.gmra.mrb[0].mxu0 %v3389
  %v3473 = vpop.f32.mrb[0].mxu0
  %v3474 = vadd.f32 0.0, %v3473
  %v3475 = vpop.f32.mrb[0].mxu0
  %v3476 = vpop.f32.mrb[0].mxu0
  %v3477 = vpop.f32.mrb[0].mxu0
  %3478 = vdwg.mxu0
  %v3479 = vadd.f32 %v3366, %v3474
  %s3480 = scalar_lea.vmem %s15, 192
  %v3481 = vld [vmem:[%s3480] sm:$0xf]
  %v3482 = vld [vmem:[%s3480 + $0x4] sm:$0xf]
  %v3483 = vld [vmem:[%s3480 + $0x8] sm:$0xf]
  %v3484 = vld [vmem:[%s3480 + $0xc] sm:$0xf]
  %v3485 = vld [vmem:[%s3480 + $0x10] sm:$0xf]
  %v3486 = vld [vmem:[%s3480 + $0x14] sm:$0xf]
  %v3487 = vld [vmem:[%s3480 + $0x18] sm:$0xf]
  %v3488 = vld [vmem:[%s3480 + $0x1c] sm:$0xf]
  %v3489 = vld [vmem:[%s3480 + $0x20] sm:$0xf]
  %v3490 = vld [vmem:[%s3480 + $0x24] sm:$0xf]
  %v3491 = vld [vmem:[%s3480 + $0x28] sm:$0xf]
  %v3492 = vld [vmem:[%s3480 + $0x2c] sm:$0xf]
  %v3493 = vld [vmem:[%s3480 + $0x30] sm:$0xf]
  %v3494 = vld [vmem:[%s3480 + $0x34] sm:$0xf]
  %v3495 = vld [vmem:[%s3480 + $0x38] sm:$0xf]
  %v3496 = vld [vmem:[%s3480 + $0x3c] sm:$0xf]
  %v3497 = vrot.slane %v3192, 1
  %v3515 = vunpack.c.l.b16 %v3481
  %v3516 = vunpack.c.l.b16 %v3482
  %v3517 = vunpack.c.l.b16 %v3483
  %v3518 = vunpack.c.l.b16 %v3484
  %v3519 = vunpack.c.l.b16 %v3485
  %v3520 = vunpack.c.l.b16 %v3486
  %v3521 = vunpack.c.l.b16 %v3487
  %v3522 = vunpack.c.l.b16 %v3488
  %v3523 = vunpack.c.l.b16 %v3489
  %v3524 = vunpack.c.l.b16 %v3490
  %v3525 = vunpack.c.l.b16 %v3491
  %v3526 = vunpack.c.l.b16 %v3492
  %v3527 = vunpack.c.l.b16 %v3493
  %v3528 = vunpack.c.l.b16 %v3494
  %v3529 = vunpack.c.l.b16 %v3495
  %v3530 = vunpack.c.l.b16 %v3496
  %v3531 = vpack.c.b16 %v3516, %v3515
  %v3532 = vpack.c.b16 %v3518, %v3517
  %v3533 = vpack.c.b16 %v3520, %v3519
  %v3534 = vpack.c.b16 %v3522, %v3521
  %v3535 = vpack.c.b16 %v3524, %v3523
  %v3536 = vpack.c.b16 %v3526, %v3525
  %v3537 = vpack.c.b16 %v3528, %v3527
  %v3538 = vpack.c.b16 %v3530, %v3529
  %3547 = vmatprep.subr.bf16.mxu0 0
  %3548 = vmatpush1.bf16.msra.mxu0 %v3531
  %3549 = vmatprep.subr.bf16.mxu0 0
  %3550 = vmatpush1.bf16.msra.mxu0 %v3532
  %3551 = vmatprep.subr.bf16.mxu0 0
  %3552 = vmatpush1.bf16.msra.mxu0 %v3533
  %3553 = vmatprep.subr.bf16.mxu0 0
  %3554 = vmatpush1.bf16.msra.mxu0 %v3534
  %3555 = vmatprep.subr.bf16.mxu0 0
  %3556 = vmatpush1.bf16.msra.mxu0 %v3535
  %3557 = vmatprep.subr.bf16.mxu0 0
  %3558 = vmatpush1.bf16.msra.mxu0 %v3536
  %3559 = vmatprep.subr.bf16.mxu0 0
  %3560 = vmatpush1.bf16.msra.mxu0 %v3537
  %3561 = vmatprep.subr.bf16.mxu0 0
  %3562 = vmatpush1.bf16.msra.mxu0 %v3538
  %3563 = vmatprep.subr.bf16.mxu0 0
  %3564 = vmatpush1.bf16.msra.mxu0 0
  %3565 = vmatprep.subr.bf16.mxu0 0
  %3566 = vmatpush1.bf16.msra.mxu0 0
  %3567 = vmatprep.subr.bf16.mxu0 0
  %3568 = vmatpush1.bf16.msra.mxu0 0
  %3569 = vmatprep.subr.bf16.mxu0 0
  %3570 = vmatpush1.bf16.msra.mxu0 0
  %3571 = vmatprep.subr.bf16.mxu0 0
  %3572 = vmatpush1.bf16.msra.mxu0 0
  %3573 = vmatprep.subr.bf16.mxu0 0
  %3574 = vmatpush1.bf16.msra.mxu0 0
  %3575 = vmatprep.subr.bf16.mxu0 0
  %3576 = vmatpush1.bf16.msra.mxu0 0
  %3577 = vmatprep.subr.bf16.mxu0 0
  %3578 = vmatpush1.bf16.msra.mxu0 0
  %3579 = vmatprep.mubr.bf16.mxu0 0
  %3580 = vmatmul.mubr.bf16.gmra.mrb[0].mxu0 %v3497
  %v3581 = vpop.f32.mrb[0].mxu0
  %v3582 = vadd.f32 0.0, %v3581
  %v3583 = vpop.f32.mrb[0].mxu0
  %v3584 = vpop.f32.mrb[0].mxu0
  %v3585 = vpop.f32.mrb[0].mxu0
  %3586 = vdwg.mxu0
  %v3587 = vadd.f32 %v3479, %v3582
  %v3588 = vld [vmem:[#allocation2] sm:$0x1]
  %v3589 = vadd.f32 %v3587, %v3588
  %v3590 = vmul.f32 %v3589, 0.5
  %v3591 = vtanh.pop %v3590
  %v3592 = vadd.f32 %v3591, 1.0
  %v3593 = vmul.f32 %v3592, 0.5
  %vm3594 = vcmask 0
  %3595 = vst.msk [vmem:[%s17] sm:$0x1] %vm3594, %v3593
  %v3596 = vmul.f32 %v2955, %v3144
  %v3597 = vadd.f32 %v3596, %v3151
  %vm3598 = vcmp.ge.f32.partialorder %v3597, 0.0
  %v3599 = vmul.f32 %v3597, 0.02
  %v3600 = vsel %vm3598, %v3597, %v3599
  %v3601 = vpack.c.bf16 %v3600, %v3600
  %v3602 = vld [vmem:[%s15] sm:$0xf]
  %v3603 = vld [vmem:[%s15 + $0x4] sm:$0xf]
  %v3604 = vld [vmem:[%s15 + $0x8] sm:$0xf]
  %v3605 = vld [vmem:[%s15 + $0xc] sm:$0xf]
  %v3606 = vld [vmem:[%s15 + $0x10] sm:$0xf]
  %v3607 = vld [vmem:[%s15 + $0x14] sm:$0xf]
  %v3608 = vld [vmem:[%s15 + $0x18] sm:$0xf]
  %v3609 = vld [vmem:[%s15 + $0x1c] sm:$0xf]
  %v3610 = vld [vmem:[%s15 + $0x20] sm:$0xf]
  %v3611 = vld [vmem:[%s15 + $0x24] sm:$0xf]
  %v3612 = vld [vmem:[%s15 + $0x28] sm:$0xf]
  %v3613 = vld [vmem:[%s15 + $0x2c] sm:$0xf]
  %v3614 = vld [vmem:[%s15 + $0x30] sm:$0xf]
  %v3615 = vld [vmem:[%s15 + $0x34] sm:$0xf]
  %v3616 = vld [vmem:[%s15 + $0x38] sm:$0xf]
  %v3617 = vld [vmem:[%s15 + $0x3c] sm:$0xf]
  %v3618 = vld [vmem:[%s3174] sm:$0xf]
  %v3619 = vld [vmem:[%s3174 + $0x4] sm:$0xf]
  %v3620 = vld [vmem:[%s3174 + $0x8] sm:$0xf]
  %v3621 = vld [vmem:[%s3174 + $0xc] sm:$0xf]
  %v3622 = vld [vmem:[%s3174 + $0x10] sm:$0xf]
  %v3623 = vld [vmem:[%s3174 + $0x14] sm:$0xf]
  %v3624 = vld [vmem:[%s3174 + $0x18] sm:$0xf]
  %v3625 = vld [vmem:[%s3174 + $0x1c] sm:$0xf]
  %v3626 = vld [vmem:[%s3174 + $0x20] sm:$0xf]
  %v3627 = vld [vmem:[%s3174 + $0x24] sm:$0xf]
  %v3628 = vld [vmem:[%s3174 + $0x28] sm:$0xf]
  %v3629 = vld [vmem:[%s3174 + $0x2c] sm:$0xf]
  %v3630 = vld [vmem:[%s3174 + $0x30] sm:$0xf]
  %v3631 = vld [vmem:[%s3174 + $0x34] sm:$0xf]
  %v3632 = vld [vmem:[%s3174 + $0x38] sm:$0xf]
  %v3633 = vld [vmem:[%s3174 + $0x3c] sm:$0xf]
  %v3635 = vshrl.u32 %v3601, 16
  %v3654 = vunpack.c.l.b16 %v3618
  %v3655 = vunpack.c.l.b16 %v3619
  %v3656 = vunpack.c.l.b16 %v3620
  %v3657 = vunpack.c.l.b16 %v3621
  %v3658 = vunpack.c.l.b16 %v3622
  %v3659 = vunpack.c.l.b16 %v3623
  %v3660 = vunpack.c.l.b16 %v3624
  %v3661 = vunpack.c.l.b16 %v3625
  %v3662 = vunpack.c.l.b16 %v3626
  %v3663 = vunpack.c.l.b16 %v3627
  %v3664 = vunpack.c.l.b16 %v3628
  %v3665 = vunpack.c.l.b16 %v3629
  %v3666 = vunpack.c.l.b16 %v3630
  %v3667 = vunpack.c.l.b16 %v3631
  %v3668 = vunpack.c.l.b16 %v3632
  %v3669 = vunpack.c.l.b16 %v3633
  %v3670 = vpack.c.b16 %v3655, %v3654
  %v3671 = vpack.c.b16 %v3657, %v3656
  %v3672 = vpack.c.b16 %v3659, %v3658
  %v3673 = vpack.c.b16 %v3661, %v3660
  %v3674 = vpack.c.b16 %v3663, %v3662
  %v3675 = vpack.c.b16 %v3665, %v3664
  %v3676 = vpack.c.b16 %v3667, %v3666
  %v3677 = vpack.c.b16 %v3669, %v3668
  %3686 = vmatprep.subr.bf16.mxu0 0
  %3687 = vmatpush1.bf16.msra.mxu0 %v3670
  %3688 = vmatprep.subr.bf16.mxu0 0
  %3689 = vmatpush1.bf16.msra.mxu0 %v3671
  %3690 = vmatprep.subr.bf16.mxu0 0
  %3691 = vmatpush1.bf16.msra.mxu0 %v3672
  %3692 = vmatprep.subr.bf16.mxu0 0
  %3693 = vmatpush1.bf16.msra.mxu0 %v3673
  %3694 = vmatprep.subr.bf16.mxu0 0
  %3695 = vmatpush1.bf16.msra.mxu0 %v3674
  %3696 = vmatprep.subr.bf16.mxu0 0
  %3697 = vmatpush1.bf16.msra.mxu0 %v3675
  %3698 = vmatprep.subr.bf16.mxu0 0
  %3699 = vmatpush1.bf16.msra.mxu0 %v3676
  %3700 = vmatprep.subr.bf16.mxu0 0
  %3701 = vmatpush1.bf16.msra.mxu0 %v3677
  %3702 = vmatprep.subr.bf16.mxu0 0
  %3703 = vmatpush1.bf16.msra.mxu0 0
  %3704 = vmatprep.subr.bf16.mxu0 0
  %3705 = vmatpush1.bf16.msra.mxu0 0
  %3706 = vmatprep.subr.bf16.mxu0 0
  %3707 = vmatpush1.bf16.msra.mxu0 0
  %3708 = vmatprep.subr.bf16.mxu0 0
  %3709 = vmatpush1.bf16.msra.mxu0 0
  %3710 = vmatprep.subr.bf16.mxu0 0
  %3711 = vmatpush1.bf16.msra.mxu0 0
  %3712 = vmatprep.subr.bf16.mxu0 0
  %3713 = vmatpush1.bf16.msra.mxu0 0
  %3714 = vmatprep.subr.bf16.mxu0 0
  %3715 = vmatpush1.bf16.msra.mxu0 0
  %3716 = vmatprep.subr.bf16.mxu0 0
  %3717 = vmatpush1.bf16.msra.mxu0 0
  %3718 = vmatprep.mubr.bf16.mxu0 0
  %3719 = vmatmul.mubr.bf16.gmra.mrb[0].mxu0 %v3635
  %v3720 = vpop.f32.mrb[0].mxu0
  %v3721 = vadd.f32 0.0, %v3720
  %v3722 = vpop.f32.mrb[0].mxu0
  %v3723 = vpop.f32.mrb[0].mxu0
  %v3724 = vpop.f32.mrb[0].mxu0
  %3725 = vdwg.mxu0
  %v3742 = vunpack.c.l.b16 %v3602
  %v3743 = vunpack.c.l.b16 %v3603
  %v3744 = vunpack.c.l.b16 %v3604
  %v3745 = vunpack.c.l.b16 %v3605
  %v3746 = vunpack.c.l.b16 %v3606
  %v3747 = vunpack.c.l.b16 %v3607
  %v3748 = vunpack.c.l.b16 %v3608
  %v3749 = vunpack.c.l.b16 %v3609
  %v3750 = vunpack.c.l.b16 %v3610
  %v3751 = vunpack.c.l.b16 %v3611
  %v3752 = vunpack.c.l.b16 %v3612
  %v3753 = vunpack.c.l.b16 %v3613
  %v3754 = vunpack.c.l.b16 %v3614
  %v3755 = vunpack.c.l.b16 %v3615
  %v3756 = vunpack.c.l.b16 %v3616
  %v3757 = vunpack.c.l.b16 %v3617
  %v3758 = vpack.c.b16 %v3743, %v3742
  %v3759 = vpack.c.b16 %v3745, %v3744
  %v3760 = vpack.c.b16 %v3747, %v3746
  %v3761 = vpack.c.b16 %v3749, %v3748
  %v3762 = vpack.c.b16 %v3751, %v3750
  %v3763 = vpack.c.b16 %v3753, %v3752
  %v3764 = vpack.c.b16 %v3755, %v3754
  %v3765 = vpack.c.b16 %v3757, %v3756
  %3774 = vmatprep.subr.bf16.mxu0 0
  %3775 = vmatpush1.bf16.msra.mxu0 %v3758
  %3776 = vmatprep.subr.bf16.mxu0 0
  %3777 = vmatpush1.bf16.msra.mxu0 %v3759
  %3778 = vmatprep.subr.bf16.mxu0 0
  %3779 = vmatpush1.bf16.msra.mxu0 %v3760
  %3780 = vmatprep.subr.bf16.mxu0 0
  %3781 = vmatpush1.bf16.msra.mxu0 %v3761
  %3782 = vmatprep.subr.bf16.mxu0 0
  %3783 = vmatpush1.bf16.msra.mxu0 %v3762
  %3784 = vmatprep.subr.bf16.mxu0 0
  %3785 = vmatpush1.bf16.msra.mxu0 %v3763
  %3786 = vmatprep.subr.bf16.mxu0 0
  %3787 = vmatpush1.bf16.msra.mxu0 %v3764
  %3788 = vmatprep.subr.bf16.mxu0 0
  %3789 = vmatpush1.bf16.msra.mxu0 %v3765
  %3790 = vmatprep.subr.bf16.mxu0 0
  %3791 = vmatpush1.bf16.msra.mxu0 0
  %3792 = vmatprep.subr.bf16.mxu0 0
  %3793 = vmatpush1.bf16.msra.mxu0 0
  %3794 = vmatprep.subr.bf16.mxu0 0
  %3795 = vmatpush1.bf16.msra.mxu0 0
  %3796 = vmatprep.subr.bf16.mxu0 0
  %3797 = vmatpush1.bf16.msra.mxu0 0
  %3798 = vmatprep.subr.bf16.mxu0 0
  %3799 = vmatpush1.bf16.msra.mxu0 0
  %3800 = vmatprep.subr.bf16.mxu0 0
  %3801 = vmatpush1.bf16.msra.mxu0 0
  %3802 = vmatprep.subr.bf16.mxu0 0
  %3803 = vmatpush1.bf16.msra.mxu0 0
  %3804 = vmatprep.subr.bf16.mxu0 0
  %3805 = vmatpush1.bf16.msra.mxu0 0
  %3806 = vmatprep.mubr.bf16.mxu0 0
  %3807 = vmatmul.mubr.bf16.gmra.mrb[0].mxu0 %v3601
  %v3808 = vpop.f32.mrb[0].mxu0
  %v3809 = vadd.f32 %v3721, %v3808
  %v3810 = vpop.f32.mrb[0].mxu0
  %v3811 = vpop.f32.mrb[0].mxu0
  %v3812 = vpop.f32.mrb[0].mxu0
  %3813 = vdwg.mxu0
  %v3814 = vld [vmem:[%s3371] sm:$0xf]
  %v3815 = vld [vmem:[%s3371 + $0x4] sm:$0xf]
  %v3816 = vld [vmem:[%s3371 + $0x8] sm:$0xf]
  %v3817 = vld [vmem:[%s3371 + $0xc] sm:$0xf]
  %v3818 = vld [vmem:[%s3371 + $0x10] sm:$0xf]
  %v3819 = vld [vmem:[%s3371 + $0x14] sm:$0xf]
  %v3820 = vld [vmem:[%s3371 + $0x18] sm:$0xf]
  %v3821 = vld [vmem:[%s3371 + $0x1c] sm:$0xf]
  %v3822 = vld [vmem:[%s3371 + $0x20] sm:$0xf]
  %v3823 = vld [vmem:[%s3371 + $0x24] sm:$0xf]
  %v3824 = vld [vmem:[%s3371 + $0x28] sm:$0xf]
  %v3825 = vld [vmem:[%s3371 + $0x2c] sm:$0xf]
  %v3826 = vld [vmem:[%s3371 + $0x30] sm:$0xf]
  %v3827 = vld [vmem:[%s3371 + $0x34] sm:$0xf]
  %v3828 = vld [vmem:[%s3371 + $0x38] sm:$0xf]
  %v3829 = vld [vmem:[%s3371 + $0x3c] sm:$0xf]
  %v3831 = vrot.slane %v3601, 1
  %v3849 = vunpack.c.l.b16 %v3814
  %v3850 = vunpack.c.l.b16 %v3815
  %v3851 = vunpack.c.l.b16 %v3816
  %v3852 = vunpack.c.l.b16 %v3817
  %v3853 = vunpack.c.l.b16 %v3818
  %v3854 = vunpack.c.l.b16 %v3819
  %v3855 = vunpack.c.l.b16 %v3820
  %v3856 = vunpack.c.l.b16 %v3821
  %v3857 = vunpack.c.l.b16 %v3822
  %v3858 = vunpack.c.l.b16 %v3823
  %v3859 = vunpack.c.l.b16 %v3824
  %v3860 = vunpack.c.l.b16 %v3825
  %v3861 = vunpack.c.l.b16 %v3826
  %v3862 = vunpack.c.l.b16 %v3827
  %v3863 = vunpack.c.l.b16 %v3828
  %v3864 = vunpack.c.l.b16 %v3829
  %v3865 = vpack.c.b16 %v3850, %v3849
  %v3866 = vpack.c.b16 %v3852, %v3851
  %v3867 = vpack.c.b16 %v3854, %v3853
  %v3868 = vpack.c.b16 %v3856, %v3855
  %v3869 = vpack.c.b16 %v3858, %v3857
  %v3870 = vpack.c.b16 %v3860, %v3859
  %v3871 = vpack.c.b16 %v3862, %v3861
  %v3872 = vpack.c.b16 %v3864, %v3863
  %3881 = vmatprep.subr.bf16.mxu0 0
  %3882 = vmatpush1.bf16.msra.mxu0 %v3865
  %3883 = vmatprep.subr.bf16.mxu0 0
  %3884 = vmatpush1.bf16.msra.mxu0 %v3866
  %3885 = vmatprep.subr.bf16.mxu0 0
  %3886 = vmatpush1.bf16.msra.mxu0 %v3867
  %3887 = vmatprep.subr.bf16.mxu0 0
  %3888 = vmatpush1.bf16.msra.mxu0 %v3868
  %3889 = vmatprep.subr.bf16.mxu0 0
  %3890 = vmatpush1.bf16.msra.mxu0 %v3869
  %3891 = vmatprep.subr.bf16.mxu0 0
  %3892 = vmatpush1.bf16.msra.mxu0 %v3870
  %3893 = vmatprep.subr.bf16.mxu0 0
  %3894 = vmatpush1.bf16.msra.mxu0 %v3871
  %3895 = vmatprep.subr.bf16.mxu0 0
  %3896 = vmatpush1.bf16.msra.mxu0 %v3872
  %3897 = vmatprep.subr.bf16.mxu0 0
  %3898 = vmatpush1.bf16.msra.mxu0 0
  %3899 = vmatprep.subr.bf16.mxu0 0
  %3900 = vmatpush1.bf16.msra.mxu0 0
  %3901 = vmatprep.subr.bf16.mxu0 0
  %3902 = vmatpush1.bf16.msra.mxu0 0
  %3903 = vmatprep.subr.bf16.mxu0 0
  %3904 = vmatpush1.bf16.msra.mxu0 0
  %3905 = vmatprep.subr.bf16.mxu0 0
  %3906 = vmatpush1.bf16.msra.mxu0 0
  %3907 = vmatprep.subr.bf16.mxu0 0
  %3908 = vmatpush1.bf16.msra.mxu0 0
  %3909 = vmatprep.subr.bf16.mxu0 0
  %3910 = vmatpush1.bf16.msra.mxu0 0
  %3911 = vmatprep.subr.bf16.mxu0 0
  %3912 = vmatpush1.bf16.msra.mxu0 0
  %3913 = vmatprep.mubr.bf16.mxu0 0
  %3914 = vmatmul.mubr.bf16.gmra.mrb[0].mxu0 %v3831
  %v3915 = vpop.f32.mrb[0].mxu0
  %v3916 = vadd.f32 0.0, %v3915
  %v3917 = vpop.f32.mrb[0].mxu0
  %v3918 = vpop.f32.mrb[0].mxu0
  %v3919 = vpop.f32.mrb[0].mxu0
  %3920 = vdwg.mxu0
  %v3921 = vadd.f32 %v3809, %v3916
  %v3922 = vld [vmem:[%s3480] sm:$0xf]
  %v3923 = vld [vmem:[%s3480 + $0x4] sm:$0xf]
  %v3924 = vld [vmem:[%s3480 + $0x8] sm:$0xf]
  %v3925 = vld [vmem:[%s3480 + $0xc] sm:$0xf]
  %v3926 = vld [vmem:[%s3480 + $0x10] sm:$0xf]
  %v3927 = vld [vmem:[%s3480 + $0x14] sm:$0xf]
  %v3928 = vld [vmem:[%s3480 + $0x18] sm:$0xf]
  %v3929 = vld [vmem:[%s3480 + $0x1c] sm:$0xf]
  %v3930 = vld [vmem:[%s3480 + $0x20] sm:$0xf]
  %v3931 = vld [vmem:[%s3480 + $0x24] sm:$0xf]
  %v3932 = vld [vmem:[%s3480 + $0x28] sm:$0xf]
  %v3933 = vld [vmem:[%s3480 + $0x2c] sm:$0xf]
  %v3934 = vld [vmem:[%s3480 + $0x30] sm:$0xf]
  %v3935 = vld [vmem:[%s3480 + $0x34] sm:$0xf]
  %v3936 = vld [vmem:[%s3480 + $0x38] sm:$0xf]
  %v3937 = vld [vmem:[%s3480 + $0x3c] sm:$0xf]
  %v3938 = vrot.slane %v3635, 1
  %v3956 = vunpack.c.l.b16 %v3922
  %v3957 = vunpack.c.l.b16 %v3923
  %v3958 = vunpack.c.l.b16 %v3924
  %v3959 = vunpack.c.l.b16 %v3925
  %v3960 = vunpack.c.l.b16 %v3926
  %v3961 = vunpack.c.l.b16 %v3927
  %v3962 = vunpack.c.l.b16 %v3928
  %v3963 = vunpack.c.l.b16 %v3929
  %v3964 = vunpack.c.l.b16 %v3930
  %v3965 = vunpack.c.l.b16 %v3931
  %v3966 = vunpack.c.l.b16 %v3932
  %v3967 = vunpack.c.l.b16 %v3933
  %v3968 = vunpack.c.l.b16 %v3934
  %v3969 = vunpack.c.l.b16 %v3935
  %v3970 = vunpack.c.l.b16 %v3936
  %v3971 = vunpack.c.l.b16 %v3937
  %v3972 = vpack.c.b16 %v3957, %v3956
  %v3973 = vpack.c.b16 %v3959, %v3958
  %v3974 = vpack.c.b16 %v3961, %v3960
  %v3975 = vpack.c.b16 %v3963, %v3962
  %v3976 = vpack.c.b16 %v3965, %v3964
  %v3977 = vpack.c.b16 %v3967, %v3966
  %v3978 = vpack.c.b16 %v3969, %v3968
  %v3979 = vpack.c.b16 %v3971, %v3970
  %3988 = vmatprep.subr.bf16.mxu0 0
  %3989 = vmatpush1.bf16.msra.mxu0 %v3972
  %3990 = vmatprep.subr.bf16.mxu0 0
  %3991 = vmatpush1.bf16.msra.mxu0 %v3973
  %3992 = vmatprep.subr.bf16.mxu0 0
  %3993 = vmatpush1.bf16.msra.mxu0 %v3974
  %3994 = vmatprep.subr.bf16.mxu0 0
  %3995 = vmatpush1.bf16.msra.mxu0 %v3975
  %3996 = vmatprep.subr.bf16.mxu0 0
  %3997 = vmatpush1.bf16.msra.mxu0 %v3976
  %3998 = vmatprep.subr.bf16.mxu0 0
  %3999 = vmatpush1.bf16.msra.mxu0 %v3977
  %4000 = vmatprep.subr.bf16.mxu0 0
  %4001 = vmatpush1.bf16.msra.mxu0 %v3978
  %4002 = vmatprep.subr.bf16.mxu0 0
  %4003 = vmatpush1.bf16.msra.mxu0 %v3979
  %4004 = vmatprep.subr.bf16.mxu0 0
  %4005 = vmatpush1.bf16.msra.mxu0 0
  %4006 = vmatprep.subr.bf16.mxu0 0
  %4007 = vmatpush1.bf16.msra.mxu0 0
  %4008 = vmatprep.subr.bf16.mxu0 0
  %4009 = vmatpush1.bf16.msra.mxu0 0
  %4010 = vmatprep.subr.bf16.mxu0 0
  %4011 = vmatpush1.bf16.msra.mxu0 0
  %4012 = vmatprep.subr.bf16.mxu0 0
  %4013 = vmatpush1.bf16.msra.mxu0 0
  %4014 = vmatprep.subr.bf16.mxu0 0
  %4015 = vmatpush1.bf16.msra.mxu0 0
  %4016 = vmatprep.subr.bf16.mxu0 0
  %4017 = vmatpush1.bf16.msra.mxu0 0
  %4018 = vmatprep.subr.bf16.mxu0 0
  %4019 = vmatpush1.bf16.msra.mxu0 0
  %4020 = vmatprep.mubr.bf16.mxu0 0
  %4021 = vmatmul.mubr.bf16.gmra.mrb[0].mxu0 %v3938
  %v4022 = vpop.f32.mrb[0].mxu0
  %v4023 = vadd.f32 0.0, %v4022
  %v4024 = vpop.f32.mrb[0].mxu0
  %v4025 = vpop.f32.mrb[0].mxu0
  %v4026 = vpop.f32.mrb[0].mxu0
  %4027 = vdwg.mxu0
  %v4028 = vadd.f32 %v3921, %v4023
  %v4029 = vld [vmem:[#allocation2] sm:$0x1]
  %v4030 = vadd.f32 %v4028, %v4029
  %v4031 = vmul.f32 %v4030, 0.5
  %v4032 = vtanh.pop %v4031
  %v4033 = vadd.f32 %v4032, 1.0
  %v4034 = vmul.f32 %v4033, 0.5
  %4035 = vst.msk [vmem:[%s17 + $0x1] sm:$0x1] %vm3594, %v4034
  // Predicated region
  $region70: #{discriminator_forward.1} parent=0 // pred_check
    _
  $region71: #{discriminator_forward.1} parent=0 // pred_check_branch
    %4037 = sbr.rel (0) target = $region73
  $region72: #{discriminator_forward.1} parent=0 // pred_region
    _
  $region73: #{discriminator_forward.1} parent=0 // pred_fallthru
    _
  // Predicated region
  $region74: #{discriminator_forward.1} parent=0 // pred_check
    _
  $region75: #{discriminator_forward.1} parent=0 // pred_check_branch
    %4039 = sbr.rel (0) target = $region77
  $region76: #{discriminator_forward.1} parent=0 // pred_region
    _
  $region77: #{discriminator_forward.1} parent=0 // pred_fallthru
    _

</llo_original>
